<compile_context>
chip_gen: v7x
topology: tpu7x:2x2x1
jax: 0.10.0
libtpu: 0.0.40
codegen_flags: <defaults>
</compile_context>

<pallas_src>
import functools
import math

import jax
import jax.numpy as jnp
from jax import lax
from jax.experimental import pallas as pl
from jax.experimental.pallas import tpu as pltpu


def _round_up(x, m):
    return ((x + m - 1) // m) * m


# --------------------------------------------------------------------------- #
# Kernel
# --------------------------------------------------------------------------- #
def _attention_decoder_kernel(emb_ref, hcat_ref, enc_ref,
                              w_gru_ref, w_misc_ref, b_ref,
                              w_out_ref, b_out_ref,
                              logp_ref, hnew_ref, attn_ref,
                              cat_sc, m_sc, l_sc,
                              *, s_valid):
    f32 = jnp.float32
    E = emb_ref.shape[1]
    H2 = hcat_ref.shape[1]            # 2 * hidden_dim
    H4, H6 = 2 * H2, 3 * H2
    Sp = enc_ref.shape[1]             # lane-padded encoder length
    Vt = w_out_ref.shape[1]           # vocab tile width (multiple of 128)

    v = pl.program_id(1)
    nv = pl.num_programs(1)

    # ---- per-batch-tile prologue: GRU step + attention + concat layer -------
    @pl.when(v == 0)
    def _():
        x = emb_ref[...]              # [TB, E]
        h = hcat_ref[...]             # [TB, 2H] = [h_fwd | h_bwd]
        enc = enc_ref[...]            # [TB, Sp, 2H]  (batch-major)
        cdt = x.dtype

        # Bidirectional GRU, single step: 2 fused MXU dots.
        # Fused gate columns: [ r_f r_b | z_f z_b | n_f n_b ].
        gi = jnp.dot(x, w_gru_ref[0:E, :], preferred_element_type=f32) + b_ref[0:1, :]
        gh = jnp.dot(h, w_gru_ref[E:E + H2, :], preferred_element_type=f32) + b_ref[1:2, :]
        r = jax.nn.sigmoid(gi[:, 0:H2] + gh[:, 0:H2])
        z = jax.nn.sigmoid(gi[:, H2:H4] + gh[:, H2:H4])
        n = jnp.tanh(gi[:, H4:H6] + r * gh[:, H4:H6])
        out = (1.0 - z) * n + z * h.astype(f32)       # [TB, 2H] = [h_f' | h_b']
        hnew_ref[...] = out                           # == GRU output @ t=0

        out_c = out.astype(cdt)

        # Attention, method='general'.  w_misc cols: [W_att | W_cat_out | W_cat_ctx].
        # W_att is used UN-transposed on purpose:
        #   sum_k out_k (enc @ W_att.T)_k == sum_j enc_j (out @ W_att)_j .
        mo = jnp.dot(out_c, w_misc_ref[:, 0:H4], preferred_element_type=f32)
        m = mo[:, 0:H2]
        cat_from_out = mo[:, H2:H4]

        # score[t, s] = sum_h enc[t, s, h] * m[t, h]  (product in compute dtype,
        # reduction accumulated in f32).  b_att is constant over S -> cancels in
        # the softmax and is dropped.
        score = jnp.sum(enc * m.astype(cdt)[:, None, :], axis=2, dtype=f32)  # [TB, Sp]
        if Sp != s_valid:             # mask lane padding of S (static branch)
            col = lax.broadcasted_iota(jnp.int32, score.shape, 1)
            score = jnp.where(col < s_valid, score, -1e30)
        score = score - jnp.max(score, axis=1, keepdims=True)
        p = jnp.exp(score)
        attn = p * pl.reciprocal(jnp.sum(p, axis=1, keepdims=True), approx=True)
        attn_ref[...] = attn          # lane-dense [TB, Sp]

        # ctx[t, h] = sum_s attn[t, s] * enc[t, s, h]
        ctx = jnp.sum(attn.astype(cdt)[:, :, None] * enc, axis=1, dtype=f32)  # [TB, 2H]

        cat = jnp.tanh(cat_from_out
                       + jnp.dot(ctx.astype(cdt), w_misc_ref[:, H4:H6],
                                 preferred_element_type=f32)
                       + b_ref[2:3, 0:H2])
        cat_sc[...] = cat                          # persists across the V axis
        m_sc[...] = jnp.full_like(m_sc, -jnp.inf)  # online log-softmax init
        l_sc[...] = jnp.zeros_like(l_sc)

    # ---- per-V-tile logits + online log-softmax -----------------------------
    w_tile = w_out_ref[...]                                      # [2H, Vt]
    tile = (jnp.dot(cat_sc[...].astype(w_tile.dtype), w_tile,
                    preferred_element_type=f32)
            + b_out_ref[...])                                    # [TB, Vt] (pads ~ -1e30)
    col0 = pl.multiple_of(v * Vt, 128)
    logp_ref[:, pl.ds(col0, Vt)] = tile                          # raw logits for now

    t_max = jnp.max(tile, axis=1, keepdims=True)
    m_new = jnp.maximum(m_sc[...], t_max)
    l_sc[...] = (l_sc[...] * jnp.exp(m_sc[...] - m_new)
                 + jnp.sum(jnp.exp(tile - m_new), axis=1, keepdims=True))
    m_sc[...] = m_new

    @pl.when(v == nv - 1)
    def _():
        lse = m_sc[...] + jnp.log(l_sc[...])
        logp_ref[...] = logp_ref[...] - lse                      # normalize in place


# --------------------------------------------------------------------------- #
# One-time parameter packing (NOT done per forward call)
# --------------------------------------------------------------------------- #
def pack_attention_decoder_params(params, compute_dtype=jnp.float32, v_tile=None):
    V, E = params["emb"].shape
    H = params["whh_f"].shape[1]
    G = 6 * H                                 # (r,z,n) x (fwd,bwd)
    Gp = _round_up(G, 128)
    Vt = v_tile if v_tile is not None else min(_round_up(V, 128), 2048)
    Vt = _round_up(Vt, 128)
    Vp = _round_up(V, Vt)                     # pad cols confined to the last tile

    def gate_rows(w):
        return w[:H], w[H:2 * H], w[2 * H:]

    ir_f, iz_f, in_f = gate_rows(params["wih_f"])
    ir_b, iz_b, in_b = gate_rows(params["wih_b"])
    w_ih = jnp.concatenate([ir_f.T, ir_b.T, iz_f.T, iz_b.T, in_f.T, in_b.T], axis=1)

    # Block-diagonal hidden->hidden so one dot on [h_f | h_b] makes both
    # directions' gates.  (Low priority per review: two [H,3H] dots if ever
    # MXU-bound.)
    hr_f, hz_f, hn_f = gate_rows(params["whh_f"])
    hr_b, hz_b, hn_b = gate_rows(params["whh_b"])
    zblk = jnp.zeros((H, H), jnp.float32)
    w_hh = jnp.concatenate([
        jnp.concatenate([hr_f.T, zblk, hz_f.T, zblk, hn_f.T, zblk], axis=1),
        jnp.concatenate([zblk, hr_b.T, zblk, hz_b.T, zblk, hn_b.T], axis=1),
    ], axis=0)                                                     # [2H, 6H]

    w_gru = jnp.zeros((E + 2 * H, Gp), jnp.float32)
    w_gru = w_gru.at[:E, :G].set(w_ih).at[E:, :G].set(w_hh)

    def gate_b(b):
        return b[:H], b[H:2 * H], b[2 * H:]
    bir_f, biz_f, bin_f = gate_b(params["bih_f"])
    bir_b, biz_b, bin_b = gate_b(params["bih_b"])
    bhr_f, bhz_f, bhn_f = gate_b(params["bhh_f"])
    bhr_b, bhz_b, bhn_b = gate_b(params["bhh_b"])
    b_ih = jnp.concatenate([bir_f, bir_b, biz_f, biz_b, bin_f, bin_b])
    b_hh = jnp.concatenate([bhr_f, bhr_b, bhz_f, bhz_b, bhn_f, bhn_b])

    # Misc weights: [ W_att | W_cat[:, :2H].T | W_cat[:, 2H:].T ]  (W_att kept
    # un-transposed -- see kernel note).  b_att is dropped (cancels in softmax).
    w_misc = jnp.concatenate(
        [params["w_att"], params["w_cat"][:, :2 * H].T, params["w_cat"][:, 2 * H:].T],
        axis=1)                                                    # [2H, 6H]

    w_out = jnp.zeros((2 * H, Vp), jnp.float32).at[:, :V].set(params["w_out"].T)

    biases = jnp.zeros((3, Gp), jnp.float32)
    biases = biases.at[0, :G].set(b_ih).at[1, :G].set(b_hh)
    biases = biases.at[2, :2 * H].set(params["b_cat"])

    # b_out has its own V-tile-indexed buffer; -1e30 in the pad columns so the
    # padded logits vanish under the online LSE.
    b_out = jnp.full((1, Vp), -1e30, jnp.float32).at[0, :V].set(params["b_out"])

    return {
        "emb":    params["emb"].astype(compute_dtype),
        "w_gru":  w_gru.astype(compute_dtype),
        "w_misc": w_misc.astype(compute_dtype),
        "w_out":  w_out.astype(compute_dtype),
        "biases": biases,                        # f32
        "b_out":  b_out,                         # f32
        "dims":   {"E": E, "H": H, "V": V, "Gp": Gp, "Vt": Vt, "Vp": Vp},
    }


# --------------------------------------------------------------------------- #
# Forward wrapper
# --------------------------------------------------------------------------- #
def attention_decoder_forward(token_inputs, last_hidden, encoder_output, packed,
                              *, batch_tile=None):
    d = packed["dims"]
    E, H, V, Vt, Vp = d["E"], d["H"], d["V"], d["Vt"], d["Vp"]
    H2 = 2 * H
    cdt = packed["w_gru"].dtype
    B = token_inputs.shape[0]
    S = encoder_output.shape[0]

    # Batch tile: %8 == 0; pick TB < B at real batch sizes so the "parallel"
    # axis has >= 2 programs (v7x megacore).  Batch is padded, never truncated.
    TB = batch_tile if batch_tile is not None else min(_round_up(B, 8), 32)
    TB = max(8, _round_up(TB, 8))
    Bp = _round_up(B, TB)
    Sp = _round_up(S, 128)            # lane-dense [TB, Sp] attention output

    # JAX glue: embedding gather (eval-mode dropout == identity), [h_f|h_b]
    # packing, batch-major encoder layout + padding.  In production the caller
    # should keep encoder_output batch-major to avoid this per-step transpose.
    x = jnp.take(packed["emb"], token_inputs, axis=0)                        # [B, E]
    h_cat = jnp.concatenate([last_hidden[0], last_hidden[1]], axis=1).astype(cdt)
    enc = jnp.transpose(encoder_output, (1, 0, 2)).astype(cdt)               # [B, S, 2H]
    if Bp != B:
        x = jnp.pad(x, ((0, Bp - B), (0, 0)))
        h_cat = jnp.pad(h_cat, ((0, Bp - B), (0, 0)))
        enc = jnp.pad(enc, ((0, Bp - B), (0, 0), (0, 0)))
    if Sp != S:
        enc = jnp.pad(enc, ((0, 0), (0, Sp - S), (0, 0)))

    grid = (Bp // TB, Vp // Vt)       # vocab (reduction/online-LSE) axis last
    kernel = functools.partial(_attention_decoder_kernel, s_valid=S)

    out_shape = (
        jax.ShapeDtypeStruct((Bp, Vp), jnp.float32),   # log-probs (lane padded)
        jax.ShapeDtypeStruct((Bp, H2), jnp.float32),   # [h_f' | h_b']
        jax.ShapeDtypeStruct((Bp, Sp), jnp.float32),   # attention, [B, S] lane-dense
    )
    logp_p, h_new, attn_p = pl.pallas_call(
        kernel,
        grid=grid,
        in_specs=[
            pl.BlockSpec((TB, E), lambda b, v: (b, 0)),
            pl.BlockSpec((TB, H2), lambda b, v: (b, 0)),
            pl.BlockSpec((TB, Sp, H2), lambda b, v: (b, 0, 0)),
            pl.BlockSpec(packed["w_gru"].shape, lambda b, v: (0, 0)),
            pl.BlockSpec(packed["w_misc"].shape, lambda b, v: (0, 0)),
            pl.BlockSpec(packed["biases"].shape, lambda b, v: (0, 0)),
            pl.BlockSpec((H2, Vt), lambda b, v: (0, v)),   # w_out tile (pipelined DMA)
            pl.BlockSpec((1, Vt), lambda b, v: (0, v)),    # b_out tile
        ],
        out_specs=(
            pl.BlockSpec((TB, Vp), lambda b, v: (b, 0)),   # resident across V axis
            pl.BlockSpec((TB, H2), lambda b, v: (b, 0)),
            pl.BlockSpec((TB, Sp), lambda b, v: (b, 0)),
        ),
        out_shape=out_shape,
        scratch_shapes=[
            pltpu.VMEM((TB, H2), jnp.float32),   # concat-layer activation
            pltpu.VMEM((TB, 1), jnp.float32),    # running max (online LSE)
            pltpu.VMEM((TB, 1), jnp.float32),    # running sum-exp
        ],
        compiler_params=pltpu.CompilerParams(
            dimension_semantics=("parallel", "arbitrary"),
            # Raise v5e/v6e scoped defaults but stay well inside v7x's 64 MiB.
            vmem_limit_bytes=48 * 1024 * 1024,
        ),
    )(x, h_cat, enc, packed["w_gru"], packed["w_misc"], packed["biases"],
      packed["w_out"], packed["b_out"])

    log_probs = logp_p[:B, :V] if (Bp != B or Vp != V) else logp_p
    hidden = jnp.stack([h_new[:B, :H], h_new[:B, H:]], axis=0)       # [2, B, H]
    attn_weights = attn_p[:B, :S][:, None, :]                        # [B, 1, S]
    return log_probs, hidden, attn_weights


# --------------------------------------------------------------------------- #
# Pure-JAX reference mirroring the PyTorch module exactly (eval mode)
# --------------------------------------------------------------------------- #
def reference_forward(token_inputs, last_hidden, encoder_output, params):
    embedded = params["emb"][token_inputs]                      # [B, E]

    def gru_cell(x, h, wih, whh, bih, bhh):
        H = h.shape[1]
        gi = x @ wih.T + bih
        gh = h @ whh.T + bhh
        r = jax.nn.sigmoid(gi[:, :H] + gh[:, :H])
        z = jax.nn.sigmoid(gi[:, H:2 * H] + gh[:, H:2 * H])
        n = jnp.tanh(gi[:, 2 * H:] + r * gh[:, 2 * H:])
        return (1.0 - z) * n + z * h

    h_f = gru_cell(embedded, last_hidden[0], params["wih_f"], params["whh_f"],
                   params["bih_f"], params["bhh_f"])
    h_b = gru_cell(embedded, last_hidden[1], params["wih_b"], params["whh_b"],
                   params["bih_b"], params["bhh_b"])
    hidden = jnp.stack([h_f, h_b])
    out = jnp.concatenate([h_f, h_b], axis=1)                   # [B, 2H]

    energy = encoder_output @ params["w_att"].T + params["b_att"]   # [S, B, 2H]
    score = jnp.sum(out[None] * energy, axis=2).T               # [B, S]
    attn = jax.nn.softmax(score, axis=1)                        # [B, S]
    context = jnp.einsum("bs,sbh->bh", attn, encoder_output)    # [B, 2H]

    concat_in = jnp.concatenate([out, context], axis=1)
    concat_out = jnp.tanh(concat_in @ params["w_cat"].T + params["b_cat"])
    logits = concat_out @ params["w_out"].T + params["b_out"]
    logp = jax.nn.log_softmax(logits, axis=1)
    return logp, hidden, attn[:, None, :]


def init_params(key, V, E, H):
    ks = jax.random.split(key, 18)
    u = lambda k, shape, s: jax.random.uniform(k, shape, jnp.float32, -s, s)
    sH = 1.0 / math.sqrt(H)
    s2H = 1.0 / math.sqrt(2 * H)
    s4H = 1.0 / math.sqrt(4 * H)
    return {
        "emb":   jax.random.normal(ks[0], (V, E), jnp.float32),
        "wih_f": u(ks[1], (3 * H, E), sH), "whh_f": u(ks[2], (3 * H, H), sH),
        "bih_f": u(ks[3], (3 * H,), sH),   "bhh_f": u(ks[4], (3 * H,), sH),
        "wih_b": u(ks[5], (3 * H, E), sH), "whh_b": u(ks[6], (3 * H, H), sH),
        "bih_b": u(ks[7], (3 * H,), sH),   "bhh_b": u(ks[8], (3 * H,), sH),
        "w_att": u(ks[9], (2 * H, 2 * H), s2H), "b_att": u(ks[10], (2 * H,), s2H),
        "w_cat": u(ks[11], (2 * H, 4 * H), s4H), "b_cat": u(ks[12], (2 * H,), s4H),
        "w_out": u(ks[13], (V, 2 * H), s2H), "b_out": u(ks[14], (V,), s2H),
    }


if __name__ == "__main__":
    V, E, H, B, S = 24, 32, 16, 2, 8   # output_dim, embedding_dim, hidden_dim, batch, seq
    key = jax.random.PRNGKey(0)
    kp, kt, kh, ke = jax.random.split(key, 4)

    params = init_params(kp, V, E, H)
    token_inputs = jax.random.randint(kt, (B,), 0, V, dtype=jnp.int32)
    last_hidden = jax.random.normal(kh, (2, B, H), jnp.float32)
    encoder_output = jax.random.normal(ke, (S, B, 2 * H), jnp.float32)

    logp_r, hidden_r, attn_r = reference_forward(
        token_inputs, last_hidden, encoder_output, params)

    # ---- f32 kernel path: faithful to the module --------------------------------
    packed_f32 = pack_attention_decoder_params(params, jnp.float32)
    logp, hidden, attn = attention_decoder_forward(
        token_inputs, last_hidden, encoder_output, packed_f32)
    jax.block_until_ready((logp, hidden, attn))

    assert logp.shape == (B, V) and hidden.shape == (2, B, H) and attn.shape == (B, 1, S)
    assert jnp.allclose(hidden, hidden_r, atol=1e-4, rtol=1e-4)
    # attention softmax uses the EUP approximate reciprocal -> allow ~1e-3 slack
    assert jnp.allclose(attn, attn_r, atol=5e-3, rtol=0.0)
    assert jnp.allclose(logp, logp_r, atol=5e-3, rtol=0.0)
    assert jnp.allclose(jnp.sum(jnp.exp(logp), axis=1), 1.0, atol=1e-3)

    # ---- bf16 kernel path (perf config: half the DMA bytes; accumulation,
    #      softmax and log-softmax stay f32 inside the kernel) --------------------
    packed_bf16 = pack_attention_decoder_params(params, jnp.bfloat16)
    logp_b, hidden_b, attn_b = attention_decoder_forward(
        token_inputs, last_hidden, encoder_output, packed_bf16)
    jax.block_until_ready((logp_b, hidden_b, attn_b))

    assert logp_b.shape == (B, V) and hidden_b.shape == (2, B, H) and attn_b.shape == (B, 1, S)
    assert bool(jnp.all(jnp.isfinite(logp_b))) and bool(jnp.all(jnp.isfinite(hidden_b)))
    assert jnp.allclose(jnp.sum(jnp.exp(logp_b), axis=1), 1.0, atol=1e-3)
    assert jnp.allclose(jnp.sum(attn_b, axis=-1), 1.0, atol=1e-2)
    assert jnp.allclose(logp_b, logp_r, atol=5e-1, rtol=0.0)
    assert jnp.allclose(hidden_b, hidden_r, atol=2.5e-1, rtol=0.0)
    assert jnp.allclose(attn_b, attn_r, atol=2.5e-1, rtol=0.0)

    print("KERNEL_OK")
</pallas_src>

<mosaic_0001>
module attributes {stable_mosaic.version = 11 : i64} {
  func.func @_attention_decoder_kernel(%arg0: i32, %arg1: i32, %arg2: memref<8x32xf32, #tpu.memory_space<vmem>>, %arg3: memref<8x32xf32, #tpu.memory_space<vmem>>, %arg4: memref<8x128x32xf32, #tpu.memory_space<vmem>>, %arg5: memref<64x128xf32, #tpu.memory_space<vmem>>, %arg6: memref<32x96xf32, #tpu.memory_space<vmem>>, %arg7: memref<3x128xf32, #tpu.memory_space<vmem>>, %arg8: memref<32x128xf32, #tpu.memory_space<vmem>>, %arg9: memref<1x128xf32, #tpu.memory_space<vmem>>, %arg10: memref<8x128xf32, #tpu.memory_space<vmem>>, %arg11: memref<8x32xf32, #tpu.memory_space<vmem>>, %arg12: memref<8x128xf32, #tpu.memory_space<vmem>>, %arg13: memref<8x32xf32, #tpu.memory_space<vmem>>, %arg14: memref<8x1xf32, #tpu.memory_space<vmem>>, %arg15: memref<8x1xf32, #tpu.memory_space<vmem>>) attributes {dimension_semantics = [#tpu.dimension_semantics<parallel>, #tpu.dimension_semantics<arbitrary>], iteration_bounds = array<i64: 1, 1>, scalar_prefetch = 0 : i64, scratch_operands = 3 : i64, tpu.core_type = #tpu.core_type<tc>, window_params = [{transform_indices = @transform_0, window_bounds = array<i64: 8, 32>}, {transform_indices = @transform_1, window_bounds = array<i64: 8, 32>}, {transform_indices = @transform_2, window_bounds = array<i64: 8, 128, 32>}, {pipeline_mode = #tpu.pipeline_mode<synchronous>, transform_indices = @transform_3, window_bounds = array<i64: 64, 128>}, {pipeline_mode = #tpu.pipeline_mode<synchronous>, transform_indices = @transform_4, window_bounds = array<i64: 32, 96>}, {pipeline_mode = #tpu.pipeline_mode<synchronous>, transform_indices = @transform_5, window_bounds = array<i64: 3, 128>}, {transform_indices = @transform_6, window_bounds = array<i64: 32, 128>}, {transform_indices = @transform_7, window_bounds = array<i64: 1, 128>}, {transform_indices = @transform_8, window_bounds = array<i64: 8, 128>}, {transform_indices = @transform_9, window_bounds = array<i64: 8, 32>}, {transform_indices = @transform_10, window_bounds = array<i64: 8, 128>}]} {
    %c0_i32 = arith.constant 0 : i32
    %0 = arith.cmpi eq, %arg1, %c0_i32 : i32
    %1 = arith.extui %0 : i1 to i32
    %c0_i32_0 = arith.constant 0 : i32
    %2 = arith.cmpi ne, %1, %c0_i32_0 : i32
    scf.if %2 {
      %c0_21 = arith.constant 0 : index
      %c0_22 = arith.constant 0 : index
      %33 = vector.load %arg2[%c0_21, %c0_22] : memref<8x32xf32, #tpu.memory_space<vmem>>, vector<8x32xf32>
      %c0_23 = arith.constant 0 : index
      %c0_24 = arith.constant 0 : index
      %34 = vector.load %arg3[%c0_23, %c0_24] : memref<8x32xf32, #tpu.memory_space<vmem>>, vector<8x32xf32>
      %c0_25 = arith.constant 0 : index
      %c0_26 = arith.constant 0 : index
      %c0_27 = arith.constant 0 : index
      %35 = vector.load %arg4[%c0_25, %c0_26, %c0_27] : memref<8x128x32xf32, #tpu.memory_space<vmem>>, vector<8x128x32xf32>
      %c0_28 = arith.constant 0 : index
      %c0_29 = arith.constant 0 : index
      %36 = vector.load %arg5[%c0_28, %c0_29] : memref<64x128xf32, #tpu.memory_space<vmem>>, vector<32x128xf32>
      %cst_30 = arith.constant dense<0.000000e+00> : vector<8x128xf32>
      %37 = tpu.matmul %33, %36, %cst_30 {dimension_numbers = #tpu.dot_dimension_numbers<[1], [0], [0], [1], [0, 0, 1, 1], [], []>} : vector<8x32xf32>, vector<32x128xf32>, vector<8x128xf32> -> vector<8x128xf32>
      %c0_31 = arith.constant 0 : index
      %c0_32 = arith.constant 0 : index
      %38 = vector.load %arg7[%c0_31, %c0_32] : memref<3x128xf32, #tpu.memory_space<vmem>>, vector<1x128xf32>
      %39 = vector.broadcast %38 : vector<1x128xf32> to vector<8x128xf32>
      %40 = arith.addf %37, %39 : vector<8x128xf32>
      %c32 = arith.constant 32 : index
      %c0_33 = arith.constant 0 : index
      %41 = vector.load %arg5[%c32, %c0_33] : memref<64x128xf32, #tpu.memory_space<vmem>>, vector<32x128xf32>
      %cst_34 = arith.constant dense<0.000000e+00> : vector<8x128xf32>
      %42 = tpu.matmul %34, %41, %cst_34 {dimension_numbers = #tpu.dot_dimension_numbers<[1], [0], [0], [1], [0, 0, 1, 1], [], []>} : vector<8x32xf32>, vector<32x128xf32>, vector<8x128xf32> -> vector<8x128xf32>
      %c1 = arith.constant 1 : index
      %c0_35 = arith.constant 0 : index
      %43 = vector.load %arg7[%c1, %c0_35] : memref<3x128xf32, #tpu.memory_space<vmem>>, vector<1x128xf32>
      %44 = vector.broadcast %43 : vector<1x128xf32> to vector<8x128xf32>
      %45 = arith.addf %42, %44 : vector<8x128xf32>
      %46 = vector.extract_strided_slice %40 {offsets = [0, 0], sizes = [8, 32], strides = [1, 1]} : vector<8x128xf32> to vector<8x32xf32>
      %47 = vector.extract_strided_slice %45 {offsets = [0, 0], sizes = [8, 32], strides = [1, 1]} : vector<8x128xf32> to vector<8x32xf32>
      %48 = arith.addf %46, %47 : vector<8x32xf32>
      %49 = arith.negf %48 : vector<8x32xf32>
      %50 = math.exp %49 : vector<8x32xf32>
      %cst_36 = arith.constant 1.000000e+00 : f32
      %51 = vector.broadcast %cst_36 : f32 to vector<8x32xf32>
      %52 = arith.addf %51, %50 : vector<8x32xf32>
      %53 = arith.divf %51, %52 : vector<8x32xf32>
      %54 = vector.extract_strided_slice %40 {offsets = [0, 32], sizes = [8, 32], strides = [1, 1]} : vector<8x128xf32> to vector<8x32xf32>
      %55 = vector.extract_strided_slice %45 {offsets = [0, 32], sizes = [8, 32], strides = [1, 1]} : vector<8x128xf32> to vector<8x32xf32>
      %56 = arith.addf %54, %55 : vector<8x32xf32>
      %57 = arith.negf %56 : vector<8x32xf32>
      %58 = math.exp %57 : vector<8x32xf32>
      %cst_37 = arith.constant 1.000000e+00 : f32
      %59 = vector.broadcast %cst_37 : f32 to vector<8x32xf32>
      %60 = arith.addf %59, %58 : vector<8x32xf32>
      %61 = arith.divf %59, %60 : vector<8x32xf32>
      %62 = vector.extract_strided_slice %40 {offsets = [0, 64], sizes = [8, 32], strides = [1, 1]} : vector<8x128xf32> to vector<8x32xf32>
      %63 = vector.extract_strided_slice %45 {offsets = [0, 64], sizes = [8, 32], strides = [1, 1]} : vector<8x128xf32> to vector<8x32xf32>
      %64 = arith.mulf %53, %63 : vector<8x32xf32>
      %65 = arith.addf %62, %64 : vector<8x32xf32>
      %66 = math.tanh %65 : vector<8x32xf32>
      %cst_38 = arith.constant 1.000000e+00 : f32
      %67 = vector.broadcast %cst_38 : f32 to vector<8x32xf32>
      %68 = arith.subf %67, %61 : vector<8x32xf32>
      %69 = arith.mulf %68, %66 : vector<8x32xf32>
      %70 = arith.mulf %61, %34 : vector<8x32xf32>
      %71 = arith.addf %69, %70 : vector<8x32xf32>
      %c0_39 = arith.constant 0 : index
      %c0_40 = arith.constant 0 : index
      %72 = vector.load %arg11[%c0_39, %c0_40] : memref<8x32xf32, #tpu.memory_space<vmem>>, vector<8x32xf32>
      tpu.vector_store %arg11[%c0_39, %c0_40], %71 {strides = array<i32>} : memref<8x32xf32, #tpu.memory_space<vmem>>, vector<8x32xf32>,
      %c0_41 = arith.constant 0 : index
      %c0_42 = arith.constant 0 : index
      %73 = vector.load %arg6[%c0_41, %c0_42] : memref<32x96xf32, #tpu.memory_space<vmem>>, vector<32x64xf32>
      %cst_43 = arith.constant dense<0.000000e+00> : vector<8x64xf32>
      %74 = tpu.matmul %71, %73, %cst_43 {dimension_numbers = #tpu.dot_dimension_numbers<[1], [0], [0], [1], [0, 0, 1, 1], [], []>} : vector<8x32xf32>, vector<32x64xf32>, vector<8x64xf32> -> vector<8x64xf32>
      %75 = vector.extract_strided_slice %74 {offsets = [0, 0], sizes = [8, 32], strides = [1, 1]} : vector<8x64xf32> to vector<8x32xf32>
      %76 = vector.extract_strided_slice %74 {offsets = [0, 32], sizes = [8, 32], strides = [1, 1]} : vector<8x64xf32> to vector<8x32xf32>
      %77 = vector.shape_cast %75 : vector<8x32xf32> to vector<8x1x32xf32>
      %78 = vector.broadcast %77 : vector<8x1x32xf32> to vector<8x128x32xf32>
      %79 = arith.mulf %35, %78 : vector<8x128x32xf32>
      %cst_44 = arith.constant dense<0.000000e+00> : vector<8x128xf32>
      %80 = vector.multi_reduction <add>, %79, %cst_44 [2] : vector<8x128x32xf32> to vector<8x128xf32>
      %81 = tpu.iota {dimensions = array<i32: 1>} : vector<8x128xi32>
      %c8_i32 = arith.constant 8 : i32
      %82 = vector.broadcast %c8_i32 : i32 to vector<8x128xi32>
      %83 = arith.cmpi slt, %81, %82 : vector<8x128xi32>
      %cst_45 = arith.constant -1.000000e+30 : f32
      %84 = vector.broadcast %cst_45 : f32 to vector<8x128xf32>
      %85 = arith.select %83, %80, %84 : vector<8x128xi1>, vector<8x128xf32>
      %cst_46 = arith.constant dense<0xFF800000> : vector<8xf32>
      %86 = vector.multi_reduction <maximumf>, %85, %cst_46 [1] : vector<8x128xf32> to vector<8xf32>
      %87 = vector.shape_cast %86 : vector<8xf32> to vector<8x1xf32>
      %88 = vector.broadcast %87 : vector<8x1xf32> to vector<8x128xf32>
      %89 = arith.subf %85, %88 : vector<8x128xf32>
      %90 = math.exp %89 : vector<8x128xf32>
      %cst_47 = arith.constant dense<0.000000e+00> : vector<8xf32>
      %91 = vector.multi_reduction <add>, %90, %cst_47 [1] : vector<8x128xf32> to vector<8xf32>
      %92 = vector.shape_cast %91 : vector<8xf32> to vector<8x1xf32>
      %93 = tpu.reciprocal %92 {approx = true} : vector<8x1xf32> -> vector<8x1xf32>
      %94 = vector.broadcast %93 : vector<8x1xf32> to vector<8x128xf32>
      %95 = arith.mulf %90, %94 : vector<8x128xf32>
      %c0_48 = arith.constant 0 : index
      %c0_49 = arith.constant 0 : index
      %96 = vector.load %arg12[%c0_48, %c0_49] : memref<8x128xf32, #tpu.memory_space<vmem>>, vector<8x128xf32>
      tpu.vector_store %arg12[%c0_48, %c0_49], %95 {strides = array<i32>} : memref<8x128xf32, #tpu.memory_space<vmem>>, vector<8x128xf32>,
      %97 = vector.shape_cast %95 : vector<8x128xf32> to vector<8x128x1xf32>
      %98 = vector.broadcast %97 : vector<8x128x1xf32> to vector<8x128x32xf32>
      %99 = arith.mulf %98, %35 : vector<8x128x32xf32>
      %cst_50 = arith.constant dense<0.000000e+00> : vector<8x32xf32>
      %100 = vector.multi_reduction <add>, %99, %cst_50 [1] : vector<8x128x32xf32> to vector<8x32xf32>
      %c0_51 = arith.constant 0 : index
      %c64 = arith.constant 64 : index
      %101 = vector.load %arg6[%c0_51, %c64] : memref<32x96xf32, #tpu.memory_space<vmem>>, vector<32x32xf32>
      %cst_52 = arith.constant dense<0.000000e+00> : vector<8x32xf32>
      %102 = tpu.matmul %100, %101, %cst_52 {dimension_numbers = #tpu.dot_dimension_numbers<[1], [0], [0], [1], [0, 0, 1, 1], [], []>} : vector<8x32xf32>, vector<32x32xf32>, vector<8x32xf32> -> vector<8x32xf32>
      %103 = arith.addf %76, %102 : vector<8x32xf32>
      %c2 = arith.constant 2 : index
      %c0_53 = arith.constant 0 : index
      %104 = vector.load %arg7[%c2, %c0_53] : memref<3x128xf32, #tpu.memory_space<vmem>>, vector<1x32xf32>
      %105 = vector.broadcast %104 : vector<1x32xf32> to vector<8x32xf32>
      %106 = arith.addf %103, %105 : vector<8x32xf32>
      %107 = math.tanh %106 : vector<8x32xf32>
      %c0_54 = arith.constant 0 : index
      %c0_55 = arith.constant 0 : index
      %108 = vector.load %arg13[%c0_54, %c0_55] : memref<8x32xf32, #tpu.memory_space<vmem>>, vector<8x32xf32>
      tpu.vector_store %arg13[%c0_54, %c0_55], %107 {strides = array<i32>} : memref<8x32xf32, #tpu.memory_space<vmem>>, vector<8x32xf32>,
      %cst_56 = arith.constant 0xFF800000 : f32
      %109 = vector.broadcast %cst_56 : f32 to vector<8x1xf32>
      %c0_57 = arith.constant 0 : index
      %c0_58 = arith.constant 0 : index
      %110 = vector.load %arg14[%c0_57, %c0_58] : memref<8x1xf32, #tpu.memory_space<vmem>>, vector<8x1xf32>
      tpu.vector_store %arg14[%c0_57, %c0_58], %109 {strides = array<i32>} : memref<8x1xf32, #tpu.memory_space<vmem>>, vector<8x1xf32>,
      %cst_59 = arith.constant 0.000000e+00 : f32
      %111 = vector.broadcast %cst_59 : f32 to vector<8x1xf32>
      %c0_60 = arith.constant 0 : index
      %c0_61 = arith.constant 0 : index
      %112 = vector.load %arg15[%c0_60, %c0_61] : memref<8x1xf32, #tpu.memory_space<vmem>>, vector<8x1xf32>
      tpu.vector_store %arg15[%c0_60, %c0_61], %111 {strides = array<i32>} : memref<8x1xf32, #tpu.memory_space<vmem>>, vector<8x1xf32>,
    } else {
    }
    %c0 = arith.constant 0 : index
    %c0_1 = arith.constant 0 : index
    %3 = vector.load %arg8[%c0, %c0_1] : memref<32x128xf32, #tpu.memory_space<vmem>>, vector<32x128xf32>
    %c0_2 = arith.constant 0 : index
    %c0_3 = arith.constant 0 : index
    %4 = vector.load %arg13[%c0_2, %c0_3] : memref<8x32xf32, #tpu.memory_space<vmem>>, vector<8x32xf32>
    %cst = arith.constant dense<0.000000e+00> : vector<8x128xf32>
    %5 = tpu.matmul %4, %3, %cst {dimension_numbers = #tpu.dot_dimension_numbers<[1], [0], [0], [1], [0, 0, 1, 1], [], []>} : vector<8x32xf32>, vector<32x128xf32>, vector<8x128xf32> -> vector<8x128xf32>
    %c0_4 = arith.constant 0 : index
    %c0_5 = arith.constant 0 : index
    %6 = vector.load %arg9[%c0_4, %c0_5] : memref<1x128xf32, #tpu.memory_space<vmem>>, vector<1x128xf32>
    %7 = vector.broadcast %6 : vector<1x128xf32> to vector<8x128xf32>
    %8 = arith.addf %5, %7 : vector<8x128xf32>
    %c128_i32 = arith.constant 128 : i32
    %9 = arith.muli %arg1, %c128_i32 : i32
    %10 = tpu.assume_multiple %9, 128 : i32
    %c0_6 = arith.constant 0 : index
    %11 = arith.index_cast %10 : i32 to index
    %12 = vector.load %arg10[%c0_6, %11] : memref<8x128xf32, #tpu.memory_space<vmem>>, vector<8x128xf32>
    tpu.vector_store %arg10[%c0_6, %11], %8 {strides = array<i32>} : memref<8x128xf32, #tpu.memory_space<vmem>>, vector<8x128xf32>,
    %cst_7 = arith.constant dense<0xFF800000> : vector<8xf32>
    %13 = vector.multi_reduction <maximumf>, %8, %cst_7 [1] : vector<8x128xf32> to vector<8xf32>
    %14 = vector.shape_cast %13 : vector<8xf32> to vector<8x1xf32>
    %c0_8 = arith.constant 0 : index
    %c0_9 = arith.constant 0 : index
    %15 = vector.load %arg14[%c0_8, %c0_9] : memref<8x1xf32, #tpu.memory_space<vmem>>, vector<8x1xf32>
    %16 = arith.maximumf %15, %14 : vector<8x1xf32>
    %c0_10 = arith.constant 0 : index
    %c0_11 = arith.constant 0 : index
    %17 = vector.load %arg15[%c0_10, %c0_11] : memref<8x1xf32, #tpu.memory_space<vmem>>, vector<8x1xf32>
    %c0_12 = arith.constant 0 : index
    %c0_13 = arith.constant 0 : index
    %18 = vector.load %arg14[%c0_12, %c0_13] : memref<8x1xf32, #tpu.memory_space<vmem>>, vector<8x1xf32>
    %19 = arith.subf %18, %16 : vector<8x1xf32>
    %20 = math.exp %19 : vector<8x1xf32>
    %21 = arith.mulf %17, %20 : vector<8x1xf32>
    %22 = vector.broadcast %16 : vector<8x1xf32> to vector<8x128xf32>
    %23 = arith.subf %8, %22 : vector<8x128xf32>
    %24 = math.exp %23 : vector<8x128xf32>
    %cst_14 = arith.constant dense<0.000000e+00> : vector<8xf32>
    %25 = vector.multi_reduction <add>, %24, %cst_14 [1] : vector<8x128xf32> to vector<8xf32>
    %26 = vector.shape_cast %25 : vector<8xf32> to vector<8x1xf32>
    %27 = arith.addf %21, %26 : vector<8x1xf32>
    %c0_15 = arith.constant 0 : index
    %c0_16 = arith.constant 0 : index
    %28 = vector.load %arg15[%c0_15, %c0_16] : memref<8x1xf32, #tpu.memory_space<vmem>>, vector<8x1xf32>
    tpu.vector_store %arg15[%c0_15, %c0_16], %27 {strides = array<i32>} : memref<8x1xf32, #tpu.memory_space<vmem>>, vector<8x1xf32>,
    %c0_17 = arith.constant 0 : index
    %c0_18 = arith.constant 0 : index
    %29 = vector.load %arg14[%c0_17, %c0_18] : memref<8x1xf32, #tpu.memory_space<vmem>>, vector<8x1xf32>
    tpu.vector_store %arg14[%c0_17, %c0_18], %16 {strides = array<i32>} : memref<8x1xf32, #tpu.memory_space<vmem>>, vector<8x1xf32>,
    %c0_i32_19 = arith.constant 0 : i32
    %30 = arith.cmpi eq, %arg1, %c0_i32_19 : i32
    %31 = arith.extui %30 : i1 to i32
    %c0_i32_20 = arith.constant 0 : i32
    %32 = arith.cmpi ne, %31, %c0_i32_20 : i32
    scf.if %32 {
      %c0_21 = arith.constant 0 : index
      %c0_22 = arith.constant 0 : index
      %33 = vector.load %arg14[%c0_21, %c0_22] : memref<8x1xf32, #tpu.memory_space<vmem>>, vector<8x1xf32>
      %c0_23 = arith.constant 0 : index
      %c0_24 = arith.constant 0 : index
      %34 = vector.load %arg15[%c0_23, %c0_24] : memref<8x1xf32, #tpu.memory_space<vmem>>, vector<8x1xf32>
      %35 = math.log %34 : vector<8x1xf32>
      %36 = arith.addf %33, %35 : vector<8x1xf32>
      %c0_25 = arith.constant 0 : index
      %c0_26 = arith.constant 0 : index
      %37 = vector.load %arg10[%c0_25, %c0_26] : memref<8x128xf32, #tpu.memory_space<vmem>>, vector<8x128xf32>
      %38 = vector.broadcast %36 : vector<8x1xf32> to vector<8x128xf32>
      %39 = arith.subf %37, %38 : vector<8x128xf32>
      %c0_27 = arith.constant 0 : index
      %c0_28 = arith.constant 0 : index
      %40 = vector.load %arg10[%c0_27, %c0_28] : memref<8x128xf32, #tpu.memory_space<vmem>>, vector<8x128xf32>
      tpu.vector_store %arg10[%c0_27, %c0_28], %39 {strides = array<i32>} : memref<8x128xf32, #tpu.memory_space<vmem>>, vector<8x128xf32>,
    } else {
    }
    return
  }
  func.func @transform_0(%arg0: i32, %arg1: i32) -> (i32, i32) {
    %c0_i32 = arith.constant 0 : i32
    %c0_i32_0 = arith.constant 0 : i32
    return %arg0, %c0_i32 : i32, i32
  }
  func.func @transform_1(%arg0: i32, %arg1: i32) -> (i32, i32) {
    %c0_i32 = arith.constant 0 : i32
    %c0_i32_0 = arith.constant 0 : i32
    return %arg0, %c0_i32 : i32, i32
  }
  func.func @transform_2(%arg0: i32, %arg1: i32) -> (i32, i32, i32) {
    %c0_i32 = arith.constant 0 : i32
    %c0_i32_0 = arith.constant 0 : i32
    %c0_i32_1 = arith.constant 0 : i32
    return %arg0, %c0_i32, %c0_i32_0 : i32, i32, i32
  }
  func.func @transform_3(%arg0: i32, %arg1: i32) -> (i32, i32) {
    %c0_i32 = arith.constant 0 : i32
    %c0_i32_0 = arith.constant 0 : i32
    %c0_i32_1 = arith.constant 0 : i32
    return %c0_i32, %c0_i32_0 : i32, i32
  }
  func.func @transform_4(%arg0: i32, %arg1: i32) -> (i32, i32) {
    %c0_i32 = arith.constant 0 : i32
    %c0_i32_0 = arith.constant 0 : i32
    %c0_i32_1 = arith.constant 0 : i32
    return %c0_i32, %c0_i32_0 : i32, i32
  }
  func.func @transform_5(%arg0: i32, %arg1: i32) -> (i32, i32) {
    %c0_i32 = arith.constant 0 : i32
    %c0_i32_0 = arith.constant 0 : i32
    %c0_i32_1 = arith.constant 0 : i32
    return %c0_i32, %c0_i32_0 : i32, i32
  }
  func.func @transform_6(%arg0: i32, %arg1: i32) -> (i32, i32) {
    %c0_i32 = arith.constant 0 : i32
    %c0_i32_0 = arith.constant 0 : i32
    return %c0_i32, %arg1 : i32, i32
  }
  func.func @transform_7(%arg0: i32, %arg1: i32) -> (i32, i32) {
    %c0_i32 = arith.constant 0 : i32
    %c0_i32_0 = arith.constant 0 : i32
    return %c0_i32, %arg1 : i32, i32
  }
  func.func @transform_8(%arg0: i32, %arg1: i32) -> (i32, i32) {
    %c0_i32 = arith.constant 0 : i32
    %c0_i32_0 = arith.constant 0 : i32
    return %arg0, %c0_i32 : i32, i32
  }
  func.func @transform_9(%arg0: i32, %arg1: i32) -> (i32, i32) {
    %c0_i32 = arith.constant 0 : i32
    %c0_i32_0 = arith.constant 0 : i32
    return %arg0, %c0_i32 : i32, i32
  }
  func.func @transform_10(%arg0: i32, %arg1: i32) -> (i32, i32) {
    %c0_i32 = arith.constant 0 : i32
    %c0_i32_0 = arith.constant 0 : i32
    return %arg0, %c0_i32 : i32, i32
  }
}

</mosaic_0001>

<llo_original>
// kernel: tpu_custom_call.1
$region0: #{tpu_custom_call.1}
  #allocation0 [shape = 'u32[]', space=smem, size = 0x4, offset = 0x4, fixed_abs, tag = 'smem constant byte address 0x4 - core index']
  #allocation1 [shape = 'u32[144,128]{1,0:T(1,128)}', space=vmem, size = 0x12000, scoped, tag = 'internal scratch']
  #allocation2 [shape = 'f32[8,32]{1,0:T(8,128)}', space=vmem, size = 0x1000, scoped, tag = 'scratch operand']
  #allocation3 [shape = 'f32[8,1]{1,0:T(8,128)}', space=vmem, size = 0x1000, scoped, tag = 'scratch operand']
  #allocation4 [shape = 'f32[8,1]{1,0:T(8,128)}', space=vmem, size = 0x1000, scoped, tag = 'scratch operand']
  %s0 = inlined_call_operand.vmem [shape: f32[8,32], index: 0, kind: input, shape index: {}]
  %s1 = inlined_call_operand.vmem [shape: f32[8,32], index: 1, kind: input, shape index: {}]
  %s2 = inlined_call_operand.vmem [shape: f32[8,128,32], index: 2, kind: input, shape index: {}]
  %s3 = inlined_call_operand.vmem [shape: f32[64,128], index: 3, kind: input, shape index: {}]
  %s4 = inlined_call_operand.vmem [shape: f32[32,96], index: 4, kind: input, shape index: {}]
  %s5 = inlined_call_operand.vmem [shape: f32[3,128], index: 5, kind: input, shape index: {}]
  %s6 = inlined_call_operand.vmem [shape: f32[32,128], index: 6, kind: input, shape index: {}]
  %s7 = inlined_call_operand.vmem [shape: f32[1,128], index: 7, kind: input, shape index: {}]
  %s8 = inlined_call_operand.hbm [shape: f32[8,128], index: 8, kind: output, shape index: {0}]
  %s9 = inlined_call_operand.hbm [shape: f32[8,32], index: 9, kind: output, shape index: {1}]
  %s10 = inlined_call_operand.hbm [shape: f32[8,128], index: 10, kind: output, shape index: {2}]
  %11 = xla_tuple %s8, %s9, %s10
  %s12 = sld [smem:[#allocation0]]
  $region66: #{tpu_custom_call.1} parent=0
    _
  %s14 = ssub.s32 1, %s12
  %s15 = scalar_select 0, %s14, %s12
  $region1: #{tpu_custom_call.1} parent=0
    #allocation5 [shape = 'u8[4096]{0}', space=vmem, size = 0x1000, scoped, tag = 'output window, operand 0, single buffered']
    #allocation6 [shape = 's32[1]{0}', space=sflag, size = 0x4, scoped, tag = 'scoped memory for tpu_custom_call.1']
    #allocation7 [shape = 'u8[4096]{0}', space=vmem, size = 0x1000, scoped, tag = 'output window, operand 1, single buffered']
    #allocation8 [shape = 's32[1]{0}', space=sflag, size = 0x4, scoped, tag = 'scoped memory for tpu_custom_call.1']
    #allocation9 [shape = 'u8[4096]{0}', space=vmem, size = 0x1000, scoped, tag = 'output window, operand 2, single buffered']
    %16 = vsyncpa [#allocation6], 0
    %17 = vsyncpa [#allocation8], 0
    // Predicated region
    $region2: #{tpu_custom_call.1} parent=1 // pred_check
      _
    $region3: #{tpu_custom_call.1} parent=1 // pred_check_branch
      %19 = sbr.rel (0) target = $region5
    $region4: #{tpu_custom_call.1} parent=1 // pred_region
      _
    $region5: #{tpu_custom_call.1} parent=1 // pred_fallthru
      _
    // Predicated region
    $region6: #{tpu_custom_call.1} parent=1 // pred_check
      _
    $region7: #{tpu_custom_call.1} parent=1 // pred_check_branch
      %21 = sbr.rel (0) target = $region9
    $region8: #{tpu_custom_call.1} parent=1 // pred_region
      _
    $region9: #{tpu_custom_call.1} parent=1 // pred_fallthru
      _
    // Predicated region
    $region10: #{tpu_custom_call.1} parent=1 // pred_check
      _
    $region11: #{tpu_custom_call.1} parent=1 // pred_check_branch
      %23 = sbr.rel (0) target = $region13
    $region12: #{tpu_custom_call.1} parent=1 // pred_region
      _
    $region13: #{tpu_custom_call.1} parent=1 // pred_fallthru
      _
    // Predicated region
    $region14: #{tpu_custom_call.1} parent=1 // pred_check
      _
    $region15: #{tpu_custom_call.1} parent=1 // pred_check_branch
      %25 = sbr.rel (0) target = $region17
    $region16: #{tpu_custom_call.1} parent=1 // pred_region
      _
    $region17: #{tpu_custom_call.1} parent=1 // pred_fallthru
      _
    // Predicated region
    $region18: #{tpu_custom_call.1} parent=1 // pred_check
      _
    $region19: #{tpu_custom_call.1} parent=1 // pred_check_branch
      %27 = sbr.rel (0) target = $region21
    $region20: #{tpu_custom_call.1} parent=1 // pred_region
      _
    $region21: #{tpu_custom_call.1} parent=1 // pred_fallthru
      _
    // Predicated region
    $region22: #{tpu_custom_call.1} parent=1 // pred_check
      _
    $region23: #{tpu_custom_call.1} parent=1 // pred_check_branch
      %29 = sbr.rel (0) target = $region25
    $region24: #{tpu_custom_call.1} parent=1 // pred_region
      _
    $region25: #{tpu_custom_call.1} parent=1 // pred_fallthru
      _
    // Predicated region
    $region26: #{tpu_custom_call.1} parent=1 // pred_check
      _
    $region27: #{tpu_custom_call.1} parent=1 // pred_check_branch
      %31 = sbr.rel (0) target = $region29
    $region28: #{tpu_custom_call.1} parent=1 // pred_region
      _
    $region29: #{tpu_custom_call.1} parent=1 // pred_fallthru
      _
    // Predicated region
    $region30: #{tpu_custom_call.1} parent=1 // pred_check
      _
    $region31: #{tpu_custom_call.1} parent=1 // pred_check_branch
      %33 = sbr.rel (0) target = $region33
    $region32: #{tpu_custom_call.1} parent=1 // pred_region
      _
    $region33: #{tpu_custom_call.1} parent=1 // pred_fallthru
      _
    %p34 = scmp.eq.s32.totalorder 0, 0
    // Predicated region
    $region34: #{tpu_custom_call.1} parent=1 // pred_check
      %p35 = pneg %p34
    $region35: #{tpu_custom_call.1} parent=1 // pred_check_branch
      %37 = sbr.rel (%p35) target = $region37
    $region36: #{tpu_custom_call.1} parent=1 // pred_region
      %v38 = vld [vmem:[%s0] sm:$0xff]
      %v39 = vld [vmem:[%s1] sm:$0xff]
      %v40 = vld [vmem:[%s2] sm:$0xff]
      %v41 = vld [vmem:[%s2 + $0x8] sm:$0xff]
      %v42 = vld [vmem:[%s2 + $0x10] sm:$0xff]
      %v43 = vld [vmem:[%s2 + $0x18] sm:$0xff]
      %v44 = vld [vmem:[%s2 + $0x20] sm:$0xff]
      %v45 = vld [vmem:[%s2 + $0x28] sm:$0xff]
      %v46 = vld [vmem:[%s2 + $0x30] sm:$0xff]
      %v47 = vld [vmem:[%s2 + $0x38] sm:$0xff]
      %v48 = vld [vmem:[%s2 + $0x40] sm:$0xff]
      %v49 = vld [vmem:[%s2 + $0x48] sm:$0xff]
      %v50 = vld [vmem:[%s2 + $0x50] sm:$0xff]
      %v51 = vld [vmem:[%s2 + $0x58] sm:$0xff]
      %v52 = vld [vmem:[%s2 + $0x60] sm:$0xff]
      %v53 = vld [vmem:[%s2 + $0x68] sm:$0xff]
      %v54 = vld [vmem:[%s2 + $0x70] sm:$0xff]
      %v55 = vld [vmem:[%s2 + $0x78] sm:$0xff]
      %v56 = vld [vmem:[%s2 + $0x80] sm:$0xff]
      %v57 = vld [vmem:[%s2 + $0x88] sm:$0xff]
      %v58 = vld [vmem:[%s2 + $0x90] sm:$0xff]
      %v59 = vld [vmem:[%s2 + $0x98] sm:$0xff]
      %v60 = vld [vmem:[%s2 + $0xa0] sm:$0xff]
      %v61 = vld [vmem:[%s2 + $0xa8] sm:$0xff]
      %v62 = vld [vmem:[%s2 + $0xb0] sm:$0xff]
      %v63 = vld [vmem:[%s2 + $0xb8] sm:$0xff]
      %v64 = vld [vmem:[%s2 + $0xc0] sm:$0xff]
      %v65 = vld [vmem:[%s2 + $0xc8] sm:$0xff]
      %v66 = vld [vmem:[%s2 + $0xd0] sm:$0xff]
      %v67 = vld [vmem:[%s2 + $0xd8] sm:$0xff]
      %v68 = vld [vmem:[%s2 + $0xe0] sm:$0xff]
      %v69 = vld [vmem:[%s2 + $0xe8] sm:$0xff]
      %v70 = vld [vmem:[%s2 + $0xf0] sm:$0xff]
      %v71 = vld [vmem:[%s2 + $0xf8] sm:$0xff]
      %v72 = vld [vmem:[%s2 + $0x100] sm:$0xff]
      %v73 = vld [vmem:[%s2 + $0x108] sm:$0xff]
      %v74 = vld [vmem:[%s2 + $0x110] sm:$0xff]
      %v75 = vld [vmem:[%s2 + $0x118] sm:$0xff]
      %v76 = vld [vmem:[%s2 + $0x120] sm:$0xff]
      %v77 = vld [vmem:[%s2 + $0x128] sm:$0xff]
      %v78 = vld [vmem:[%s2 + $0x130] sm:$0xff]
      %v79 = vld [vmem:[%s2 + $0x138] sm:$0xff]
      %v80 = vld [vmem:[%s2 + $0x140] sm:$0xff]
      %v81 = vld [vmem:[%s2 + $0x148] sm:$0xff]
      %v82 = vld [vmem:[%s2 + $0x150] sm:$0xff]
      %v83 = vld [vmem:[%s2 + $0x158] sm:$0xff]
      %v84 = vld [vmem:[%s2 + $0x160] sm:$0xff]
      %v85 = vld [vmem:[%s2 + $0x168] sm:$0xff]
      %v86 = vld [vmem:[%s2 + $0x170] sm:$0xff]
      %v87 = vld [vmem:[%s2 + $0x178] sm:$0xff]
      %v88 = vld [vmem:[%s2 + $0x180] sm:$0xff]
      %v89 = vld [vmem:[%s2 + $0x188] sm:$0xff]
      %v90 = vld [vmem:[%s2 + $0x190] sm:$0xff]
      %v91 = vld [vmem:[%s2 + $0x198] sm:$0xff]
      %v92 = vld [vmem:[%s2 + $0x1a0] sm:$0xff]
      %v93 = vld [vmem:[%s2 + $0x1a8] sm:$0xff]
      %v94 = vld [vmem:[%s2 + $0x1b0] sm:$0xff]
      %v95 = vld [vmem:[%s2 + $0x1b8] sm:$0xff]
      %v96 = vld [vmem:[%s2 + $0x1c0] sm:$0xff]
      %v97 = vld [vmem:[%s2 + $0x1c8] sm:$0xff]
      %v98 = vld [vmem:[%s2 + $0x1d0] sm:$0xff]
      %v99 = vld [vmem:[%s2 + $0x1d8] sm:$0xff]
      %v100 = vld [vmem:[%s2 + $0x1e0] sm:$0xff]
      %v101 = vld [vmem:[%s2 + $0x1e8] sm:$0xff]
      %v102 = vld [vmem:[%s2 + $0x1f0] sm:$0xff]
      %v103 = vld [vmem:[%s2 + $0x1f8] sm:$0xff]
      %v104 = vld [vmem:[%s2 + $0x200] sm:$0xff]
      %v105 = vld [vmem:[%s2 + $0x208] sm:$0xff]
      %v106 = vld [vmem:[%s2 + $0x210] sm:$0xff]
      %v107 = vld [vmem:[%s2 + $0x218] sm:$0xff]
      %v108 = vld [vmem:[%s2 + $0x220] sm:$0xff]
      %v109 = vld [vmem:[%s2 + $0x228] sm:$0xff]
      %v110 = vld [vmem:[%s2 + $0x230] sm:$0xff]
      %v111 = vld [vmem:[%s2 + $0x238] sm:$0xff]
      %v112 = vld [vmem:[%s2 + $0x240] sm:$0xff]
      %v113 = vld [vmem:[%s2 + $0x248] sm:$0xff]
      %v114 = vld [vmem:[%s2 + $0x250] sm:$0xff]
      %v115 = vld [vmem:[%s2 + $0x258] sm:$0xff]
      %v116 = vld [vmem:[%s2 + $0x260] sm:$0xff]
      %v117 = vld [vmem:[%s2 + $0x268] sm:$0xff]
      %v118 = vld [vmem:[%s2 + $0x270] sm:$0xff]
      %v119 = vld [vmem:[%s2 + $0x278] sm:$0xff]
      %v120 = vld [vmem:[%s2 + $0x280] sm:$0xff]
      %v121 = vld [vmem:[%s2 + $0x288] sm:$0xff]
      %v122 = vld [vmem:[%s2 + $0x290] sm:$0xff]
      %v123 = vld [vmem:[%s2 + $0x298] sm:$0xff]
      %v124 = vld [vmem:[%s2 + $0x2a0] sm:$0xff]
      %v125 = vld [vmem:[%s2 + $0x2a8] sm:$0xff]
      %v126 = vld [vmem:[%s2 + $0x2b0] sm:$0xff]
      %v127 = vld [vmem:[%s2 + $0x2b8] sm:$0xff]
      %v128 = vld [vmem:[%s2 + $0x2c0] sm:$0xff]
      %v129 = vld [vmem:[%s2 + $0x2c8] sm:$0xff]
      %v130 = vld [vmem:[%s2 + $0x2d0] sm:$0xff]
      %v131 = vld [vmem:[%s2 + $0x2d8] sm:$0xff]
      %v132 = vld [vmem:[%s2 + $0x2e0] sm:$0xff]
      %v133 = vld [vmem:[%s2 + $0x2e8] sm:$0xff]
      %v134 = vld [vmem:[%s2 + $0x2f0] sm:$0xff]
      %v135 = vld [vmem:[%s2 + $0x2f8] sm:$0xff]
      %v136 = vld [vmem:[%s2 + $0x300] sm:$0xff]
      %v137 = vld [vmem:[%s2 + $0x308] sm:$0xff]
      %v138 = vld [vmem:[%s2 + $0x310] sm:$0xff]
      %v139 = vld [vmem:[%s2 + $0x318] sm:$0xff]
      %v140 = vld [vmem:[%s2 + $0x320] sm:$0xff]
      %v141 = vld [vmem:[%s2 + $0x328] sm:$0xff]
      %v142 = vld [vmem:[%s2 + $0x330] sm:$0xff]
      %v143 = vld [vmem:[%s2 + $0x338] sm:$0xff]
      %v144 = vld [vmem:[%s2 + $0x340] sm:$0xff]
      %v145 = vld [vmem:[%s2 + $0x348] sm:$0xff]
      %v146 = vld [vmem:[%s2 + $0x350] sm:$0xff]
      %v147 = vld [vmem:[%s2 + $0x358] sm:$0xff]
      %v148 = vld [vmem:[%s2 + $0x360] sm:$0xff]
      %v149 = vld [vmem:[%s2 + $0x368] sm:$0xff]
      %v150 = vld [vmem:[%s2 + $0x370] sm:$0xff]
      %v151 = vld [vmem:[%s2 + $0x378] sm:$0xff]
      %v152 = vld [vmem:[%s2 + $0x380] sm:$0xff]
      %v153 = vld [vmem:[%s2 + $0x388] sm:$0xff]
      %v154 = vld [vmem:[%s2 + $0x390] sm:$0xff]
      %v155 = vld [vmem:[%s2 + $0x398] sm:$0xff]
      %v156 = vld [vmem:[%s2 + $0x3a0] sm:$0xff]
      %v157 = vld [vmem:[%s2 + $0x3a8] sm:$0xff]
      %v158 = vld [vmem:[%s2 + $0x3b0] sm:$0xff]
      %v159 = vld [vmem:[%s2 + $0x3b8] sm:$0xff]
      %v160 = vld [vmem:[%s2 + $0x3c0] sm:$0xff]
      %v161 = vld [vmem:[%s2 + $0x3c8] sm:$0xff]
      %v162 = vld [vmem:[%s2 + $0x3d0] sm:$0xff]
      %v163 = vld [vmem:[%s2 + $0x3d8] sm:$0xff]
      %v164 = vld [vmem:[%s2 + $0x3e0] sm:$0xff]
      %v165 = vld [vmem:[%s2 + $0x3e8] sm:$0xff]
      %v166 = vld [vmem:[%s2 + $0x3f0] sm:$0xff]
      %v167 = vld [vmem:[%s2 + $0x3f8] sm:$0xff]
      %v168 = vld [vmem:[%s3] sm:$0xff]
      %v169 = vld [vmem:[%s3 + $0x8] sm:$0xff]
      %v170 = vld [vmem:[%s3 + $0x10] sm:$0xff]
      %v171 = vld [vmem:[%s3 + $0x18] sm:$0xff]
      %v172 = vld [vmem:[%s5] sm:$0x1]
      %v173 = vlaneseq
      %v174 = vshrl.u32 %v173, 7
      %v175 = vsub.s32 0, %v174
      %v176 = vrot.slane %v172, %v175
      %vm177 = vcmask 261120
      %v179 = vsel %vm177, %v38, 0
      %181 = vmatprep.subr.mxu0 0.0
      %182 = vmatpush1.msra.mxu0 %v168
      %183 = vmatprep.subr.mxu0 0.0
      %184 = vmatpush1.msra.mxu0 %v169
      %185 = vmatprep.subr.mxu0 0.0
      %186 = vmatpush1.msra.mxu0 %v170
      %187 = vmatprep.subr.mxu0 0.0
      %188 = vmatpush1.msra.mxu0 %v171
      %189 = vmatprep.subr.mxu0 0.0
      %190 = vmatpush1.msra.mxu0 0.0
      %191 = vmatprep.subr.mxu0 0.0
      %192 = vmatpush1.msra.mxu0 0.0
      %193 = vmatprep.subr.mxu0 0.0
      %194 = vmatpush1.msra.mxu0 0.0
      %195 = vmatprep.subr.mxu0 0.0
      %196 = vmatpush1.msra.mxu0 0.0
      %197 = vmatprep.subr.mxu0 0.0
      %198 = vmatpush1.msra.mxu0 0.0
      %199 = vmatprep.subr.mxu0 0.0
      %200 = vmatpush1.msra.mxu0 0.0
      %201 = vmatprep.subr.mxu0 0.0
      %202 = vmatpush1.msra.mxu0 0.0
      %203 = vmatprep.subr.mxu0 0.0
      %204 = vmatpush1.msra.mxu0 0.0
      %205 = vmatprep.subr.mxu0 0.0
      %206 = vmatpush1.msra.mxu0 0.0
      %207 = vmatprep.subr.mxu0 0.0
      %208 = vmatpush1.msra.mxu0 0.0
      %209 = vmatprep.subr.mxu0 0.0
      %210 = vmatpush1.msra.mxu0 0.0
      %211 = vmatprep.subr.mxu0 0.0
      %212 = vmatpush1.msra.mxu0 0.0
      %213 = vmatprep.subr.mxu0 0.0
      %214 = vmatpush1.msra.mxu0 0.0
      %215 = vmatprep.subr.mxu0 0.0
      %216 = vmatpush1.msra.mxu0 0.0
      %217 = vmatprep.subr.mxu0 0.0
      %218 = vmatpush1.msra.mxu0 0.0
      %219 = vmatprep.subr.mxu0 0.0
      %220 = vmatpush1.msra.mxu0 0.0
      %221 = vmatprep.subr.mxu0 0.0
      %222 = vmatpush1.msra.mxu0 0.0
      %223 = vmatprep.subr.mxu0 0.0
      %224 = vmatpush1.msra.mxu0 0.0
      %225 = vmatprep.subr.mxu0 0.0
      %226 = vmatpush1.msra.mxu0 0.0
      %227 = vmatprep.subr.mxu0 0.0
      %228 = vmatpush1.msra.mxu0 0.0
      %229 = vmatprep.subr.mxu0 0.0
      %230 = vmatpush1.msra.mxu0 0.0
      %231 = vmatprep.subr.mxu0 0.0
      %232 = vmatpush1.msra.mxu0 0.0
      %233 = vmatprep.subr.mxu0 0.0
      %234 = vmatpush1.msra.mxu0 0.0
      %235 = vmatprep.subr.mxu0 0.0
      %236 = vmatpush1.msra.mxu0 0.0
      %237 = vmatprep.subr.mxu0 0.0
      %238 = vmatpush1.msra.mxu0 0.0
      %239 = vmatprep.subr.mxu0 0.0
      %240 = vmatpush1.msra.mxu0 0.0
      %241 = vmatprep.subr.mxu0 0.0
      %242 = vmatpush1.msra.mxu0 0.0
      %243 = vmatprep.subr.mxu0 0.0
      %244 = vmatpush1.msra.mxu0 0.0
      %245 = vmatprep.mubr.f32.mxu0 0.0
      %246 = vmatmul.mubr.f32.gmra.mrb[0].mxu0 %v179
      %v247 = vpop.f32.mrb[0].mxu0
      %v248 = vadd.f32 %v176, %v247
      %v249 = vpop.f32.mrb[0].mxu0
      %250 = vdwg.mxu0
      %v251 = vld [vmem:[%s3 + $0x20] sm:$0xff]
      %v252 = vld [vmem:[%s3 + $0x28] sm:$0xff]
      %v253 = vld [vmem:[%s3 + $0x30] sm:$0xff]
      %v254 = vld [vmem:[%s3 + $0x38] sm:$0xff]
      %v255 = vld [vmem:[%s5 + $0x1] sm:$0x1]
      %v256 = vlaneseq
      %v257 = vshrl.u32 %v256, 7
      %v258 = vsub.s32 0, %v257
      %v259 = vrot.slane %v255, %v258
      %v261 = vsel %vm177, %v39, 0
      %263 = vmatprep.subr.mxu0 0.0
      %264 = vmatpush1.msra.mxu0 %v251
      %265 = vmatprep.subr.mxu0 0.0
      %266 = vmatpush1.msra.mxu0 %v252
      %267 = vmatprep.subr.mxu0 0.0
      %268 = vmatpush1.msra.mxu0 %v253
      %269 = vmatprep.subr.mxu0 0.0
      %270 = vmatpush1.msra.mxu0 %v254
      %271 = vmatprep.subr.mxu0 0.0
      %272 = vmatpush1.msra.mxu0 0.0
      %273 = vmatprep.subr.mxu0 0.0
      %274 = vmatpush1.msra.mxu0 0.0
      %275 = vmatprep.subr.mxu0 0.0
      %276 = vmatpush1.msra.mxu0 0.0
      %277 = vmatprep.subr.mxu0 0.0
      %278 = vmatpush1.msra.mxu0 0.0
      %279 = vmatprep.subr.mxu0 0.0
      %280 = vmatpush1.msra.mxu0 0.0
      %281 = vmatprep.subr.mxu0 0.0
      %282 = vmatpush1.msra.mxu0 0.0
      %283 = vmatprep.subr.mxu0 0.0
      %284 = vmatpush1.msra.mxu0 0.0
      %285 = vmatprep.subr.mxu0 0.0
      %286 = vmatpush1.msra.mxu0 0.0
      %287 = vmatprep.subr.mxu0 0.0
      %288 = vmatpush1.msra.mxu0 0.0
      %289 = vmatprep.subr.mxu0 0.0
      %290 = vmatpush1.msra.mxu0 0.0
      %291 = vmatprep.subr.mxu0 0.0
      %292 = vmatpush1.msra.mxu0 0.0
      %293 = vmatprep.subr.mxu0 0.0
      %294 = vmatpush1.msra.mxu0 0.0
      %295 = vmatprep.subr.mxu0 0.0
      %296 = vmatpush1.msra.mxu0 0.0
      %297 = vmatprep.subr.mxu0 0.0
      %298 = vmatpush1.msra.mxu0 0.0
      %299 = vmatprep.subr.mxu0 0.0
      %300 = vmatpush1.msra.mxu0 0.0
      %301 = vmatprep.subr.mxu0 0.0
      %302 = vmatpush1.msra.mxu0 0.0
      %303 = vmatprep.subr.mxu0 0.0
      %304 = vmatpush1.msra.mxu0 0.0
      %305 = vmatprep.subr.mxu0 0.0
      %306 = vmatpush1.msra.mxu0 0.0
      %307 = vmatprep.subr.mxu0 0.0
      %308 = vmatpush1.msra.mxu0 0.0
      %309 = vmatprep.subr.mxu0 0.0
      %310 = vmatpush1.msra.mxu0 0.0
      %311 = vmatprep.subr.mxu0 0.0
      %312 = vmatpush1.msra.mxu0 0.0
      %313 = vmatprep.subr.mxu0 0.0
      %314 = vmatpush1.msra.mxu0 0.0
      %315 = vmatprep.subr.mxu0 0.0
      %316 = vmatpush1.msra.mxu0 0.0
      %317 = vmatprep.subr.mxu0 0.0
      %318 = vmatpush1.msra.mxu0 0.0
      %319 = vmatprep.subr.mxu0 0.0
      %320 = vmatpush1.msra.mxu0 0.0
      %321 = vmatprep.subr.mxu0 0.0
      %322 = vmatpush1.msra.mxu0 0.0
      %323 = vmatprep.subr.mxu0 0.0
      %324 = vmatpush1.msra.mxu0 0.0
      %325 = vmatprep.subr.mxu0 0.0
      %326 = vmatpush1.msra.mxu0 0.0
      %327 = vmatprep.mubr.f32.mxu0 0.0
      %328 = vmatmul.mubr.f32.gmra.mrb[0].mxu0 %v261
      %v329 = vpop.f32.mrb[0].mxu0
      %v330 = vadd.f32 %v259, %v329
      %v331 = vpop.f32.mrb[0].mxu0
      %332 = vdwg.mxu0
      %v333 = vadd.f32 %v248, %v330
      %v334 = vxor.u32 %v333, 2147483648
      %v335 = vmul.f32 %v334, 1.442695
      %v336 = vpow.pop %v335
      %v337 = vadd.f32 %v336, 1.0
      %v338 = vrcp.pop %v337
      %v339 = vmul.f32 1.0, %v338
      %341 = vrot.lane.b32.xlu0 %v330, 64
      %v342 = vpop.permute.xlu0 %341
      %v344 = vmul.f32 %v339, %v342
      %346 = vrot.lane.b32.xlu0 %v344, 64
      %v347 = vpop.permute.xlu0 %346
      %v349 = vadd.f32 %v248, %v347
      %v350 = vtanh.pop %v349
      %v351 = vsub.f32 1.0, %v339
      %353 = vrot.lane.b32.xlu0 %v350, 96
      %v354 = vpop.permute.xlu0 %353
      %v356 = vmul.f32 %v351, %v354
      %357 = vrot.lane.b32.xlu0 %v39, 32
      %v358 = vpop.permute.xlu0 %357
      %v360 = vmul.f32 %v339, %v358
      %v361 = vadd.f32 %v356, %v360
      %363 = vrot.lane.b32.xlu0 %v361, 96
      %v364 = vpop.permute.xlu0 %363
      %366 = vst.msk [vmem:[#allocation7] sm:$0xff] %vm177, %v364
      %v367 = vld [vmem:[%s4] sm:$0xff]
      %v368 = vld [vmem:[%s4 + $0x8] sm:$0xff]
      %v369 = vld [vmem:[%s4 + $0x10] sm:$0xff]
      %v370 = vld [vmem:[%s4 + $0x18] sm:$0xff]
      %v371 = vsel %vm177, %v364, 0
      %373 = vmatprep.subr.mxu0 0.0
      %374 = vmatpush1.msra.mxu0 %v367
      %375 = vmatprep.subr.mxu0 0.0
      %376 = vmatpush1.msra.mxu0 %v368
      %377 = vmatprep.subr.mxu0 0.0
      %378 = vmatpush1.msra.mxu0 %v369
      %379 = vmatprep.subr.mxu0 0.0
      %380 = vmatpush1.msra.mxu0 %v370
      %381 = vmatprep.subr.mxu0 0.0
      %382 = vmatpush1.msra.mxu0 0.0
      %383 = vmatprep.subr.mxu0 0.0
      %384 = vmatpush1.msra.mxu0 0.0
      %385 = vmatprep.subr.mxu0 0.0
      %386 = vmatpush1.msra.mxu0 0.0
      %387 = vmatprep.subr.mxu0 0.0
      %388 = vmatpush1.msra.mxu0 0.0
      %389 = vmatprep.subr.mxu0 0.0
      %390 = vmatpush1.msra.mxu0 0.0
      %391 = vmatprep.subr.mxu0 0.0
      %392 = vmatpush1.msra.mxu0 0.0
      %393 = vmatprep.subr.mxu0 0.0
      %394 = vmatpush1.msra.mxu0 0.0
      %395 = vmatprep.subr.mxu0 0.0
      %396 = vmatpush1.msra.mxu0 0.0
      %397 = vmatprep.subr.mxu0 0.0
      %398 = vmatpush1.msra.mxu0 0.0
      %399 = vmatprep.subr.mxu0 0.0
      %400 = vmatpush1.msra.mxu0 0.0
      %401 = vmatprep.subr.mxu0 0.0
      %402 = vmatpush1.msra.mxu0 0.0
      %403 = vmatprep.subr.mxu0 0.0
      %404 = vmatpush1.msra.mxu0 0.0
      %405 = vmatprep.subr.mxu0 0.0
      %406 = vmatpush1.msra.mxu0 0.0
      %407 = vmatprep.subr.mxu0 0.0
      %408 = vmatpush1.msra.mxu0 0.0
      %409 = vmatprep.subr.mxu0 0.0
      %410 = vmatpush1.msra.mxu0 0.0
      %411 = vmatprep.subr.mxu0 0.0
      %412 = vmatpush1.msra.mxu0 0.0
      %413 = vmatprep.subr.mxu0 0.0
      %414 = vmatpush1.msra.mxu0 0.0
      %415 = vmatprep.subr.mxu0 0.0
      %416 = vmatpush1.msra.mxu0 0.0
      %417 = vmatprep.subr.mxu0 0.0
      %418 = vmatpush1.msra.mxu0 0.0
      %419 = vmatprep.subr.mxu0 0.0
      %420 = vmatpush1.msra.mxu0 0.0
      %421 = vmatprep.subr.mxu0 0.0
      %422 = vmatpush1.msra.mxu0 0.0
      %423 = vmatprep.subr.mxu0 0.0
      %424 = vmatpush1.msra.mxu0 0.0
      %425 = vmatprep.subr.mxu0 0.0
      %426 = vmatpush1.msra.mxu0 0.0
      %427 = vmatprep.subr.mxu0 0.0
      %428 = vmatpush1.msra.mxu0 0.0
      %429 = vmatprep.subr.mxu0 0.0
      %430 = vmatpush1.msra.mxu0 0.0
      %431 = vmatprep.subr.mxu0 0.0
      %432 = vmatpush1.msra.mxu0 0.0
      %433 = vmatprep.subr.mxu0 0.0
      %434 = vmatpush1.msra.mxu0 0.0
      %435 = vmatprep.subr.mxu0 0.0
      %436 = vmatpush1.msra.mxu0 0.0
      %437 = vmatprep.mubr.f32.mxu0 0.0
      %438 = vmatmul.mubr.f32.gmra.mrb[0].mxu0 %v371
      %v439 = vpop.f32.mrb[0].mxu0
      %v440 = vadd.f32 0.0, %v439
      %v441 = vpop.f32.mrb[0].mxu0
      %442 = vdwg.mxu0
      %v444 = vcombine.high %v440, %v440
      %v446 = vunpack.c.l.s4 1966171168
      %v447 = vunpack.c.0.s8 %v446
      %v448 = vlaneseq
      %v449 = vshrl.u32 %v448, 7
      %v450 = vsub.s32 %v447, %v449
      %v451 = vrot.slane %v440, %v450
      %v453 = vunpack.c.l.s4 1966171168
      %v454 = vunpack.c.0.s8 %v453
      %v455 = vlaneseq
      %v456 = vshrl.u32 %v455, 7
      %v457 = vsub.s32 %v454, %v456
      %v458 = vrot.slane %v444, %v457
      %v459 = vcombine.high %v451, %v451
      %v460 = vcombine.high %v458, %v458
      %v462 = vunpack.c.l.s4 1966171168
      %v463 = vunpack.c.0.s8 %v462
      %v464 = vlaneseq
      %v465 = vshrl.u32 %v464, 7
      %v466 = vsub.s32 %v463, %v465
      %v467 = vrot.slane %v451, %v466
      %v469 = vunpack.c.l.s4 1966171168
      %v470 = vunpack.c.0.s8 %v469
      %v471 = vlaneseq
      %v472 = vshrl.u32 %v471, 7
      %v473 = vsub.s32 %v470, %v472
      %v474 = vrot.slane %v458, %v473
      %v476 = vunpack.c.l.s4 1966171168
      %v477 = vunpack.c.0.s8 %v476
      %v478 = vlaneseq
      %v479 = vshrl.u32 %v478, 7
      %v480 = vsub.s32 %v477, %v479
      %v481 = vrot.slane %v459, %v480
      %v483 = vunpack.c.l.s4 1966171168
      %v484 = vunpack.c.0.s8 %v483
      %v485 = vlaneseq
      %v486 = vshrl.u32 %v485, 7
      %v487 = vsub.s32 %v484, %v486
      %v488 = vrot.slane %v460, %v487
      %v489 = vcombine.high %v467, %v467
      %v490 = vcombine.high %v474, %v474
      %v491 = vcombine.high %v481, %v481
      %v492 = vcombine.high %v488, %v488
      %v493 = vlaneseq
      %v494 = vshrl.u32 %v493, 7
      %v495 = vsub.s32 0, %v494
      %v496 = vrot.slane %v467, %v495
      %v497 = vlaneseq
      %v498 = vshrl.u32 %v497, 7
      %v499 = vsub.s32 0, %v498
      %v500 = vrot.slane %v481, %v499
      %v501 = vlaneseq
      %v502 = vshrl.u32 %v501, 7
      %v503 = vsub.s32 0, %v502
      %v504 = vrot.slane %v489, %v503
      %v505 = vlaneseq
      %v506 = vshrl.u32 %v505, 7
      %v507 = vsub.s32 0, %v506
      %v508 = vrot.slane %v491, %v507
      %v509 = vlaneseq
      %v510 = vshrl.u32 %v509, 7
      %v511 = vsub.s32 0, %v510
      %v512 = vrot.slane %v474, %v511
      %v513 = vlaneseq
      %v514 = vshrl.u32 %v513, 7
      %v515 = vsub.s32 0, %v514
      %v516 = vrot.slane %v488, %v515
      %v517 = vlaneseq
      %v518 = vshrl.u32 %v517, 7
      %v519 = vsub.s32 0, %v518
      %v520 = vrot.slane %v490, %v519
      %v521 = vlaneseq
      %v522 = vshrl.u32 %v521, 7
      %v523 = vsub.s32 0, %v522
      %v524 = vrot.slane %v492, %v523
      %v533 = vmul.f32 %v40, %v496
      %v534 = vmul.f32 %v41, %v496
      %v535 = vmul.f32 %v42, %v496
      %v536 = vmul.f32 %v43, %v496
      %v537 = vmul.f32 %v44, %v496
      %v538 = vmul.f32 %v45, %v496
      %v539 = vmul.f32 %v46, %v496
      %v540 = vmul.f32 %v47, %v496
      %v541 = vmul.f32 %v48, %v496
      %v542 = vmul.f32 %v49, %v496
      %v543 = vmul.f32 %v50, %v496
      %v544 = vmul.f32 %v51, %v496
      %v545 = vmul.f32 %v52, %v496
      %v546 = vmul.f32 %v53, %v496
      %v547 = vmul.f32 %v54, %v496
      %v548 = vmul.f32 %v55, %v496
      %v549 = vmul.f32 %v56, %v500
      %v550 = vmul.f32 %v57, %v500
      %v551 = vmul.f32 %v58, %v500
      %v552 = vmul.f32 %v59, %v500
      %v553 = vmul.f32 %v60, %v500
      %v554 = vmul.f32 %v61, %v500
      %v555 = vmul.f32 %v62, %v500
      %v556 = vmul.f32 %v63, %v500
      %v557 = vmul.f32 %v64, %v500
      %v558 = vmul.f32 %v65, %v500
      %v559 = vmul.f32 %v66, %v500
      %v560 = vmul.f32 %v67, %v500
      %v561 = vmul.f32 %v68, %v500
      %v562 = vmul.f32 %v69, %v500
      %v563 = vmul.f32 %v70, %v500
      %v564 = vmul.f32 %v71, %v500
      %v565 = vmul.f32 %v72, %v504
      %v566 = vmul.f32 %v73, %v504
      %v567 = vmul.f32 %v74, %v504
      %v568 = vmul.f32 %v75, %v504
      %v569 = vmul.f32 %v76, %v504
      %v570 = vmul.f32 %v77, %v504
      %v571 = vmul.f32 %v78, %v504
      %v572 = vmul.f32 %v79, %v504
      %v573 = vmul.f32 %v80, %v504
      %v574 = vmul.f32 %v81, %v504
      %v575 = vmul.f32 %v82, %v504
      %v576 = vmul.f32 %v83, %v504
      %v577 = vmul.f32 %v84, %v504
      %v578 = vmul.f32 %v85, %v504
      %v579 = vmul.f32 %v86, %v504
      %v580 = vmul.f32 %v87, %v504
      %v581 = vmul.f32 %v88, %v508
      %v582 = vmul.f32 %v89, %v508
      %v583 = vmul.f32 %v90, %v508
      %v584 = vmul.f32 %v91, %v508
      %v585 = vmul.f32 %v92, %v508
      %v586 = vmul.f32 %v93, %v508
      %v587 = vmul.f32 %v94, %v508
      %v588 = vmul.f32 %v95, %v508
      %v589 = vmul.f32 %v96, %v508
      %v590 = vmul.f32 %v97, %v508
      %v591 = vmul.f32 %v98, %v508
      %v592 = vmul.f32 %v99, %v508
      %v593 = vmul.f32 %v100, %v508
      %v594 = vmul.f32 %v101, %v508
      %v595 = vmul.f32 %v102, %v508
      %v596 = vmul.f32 %v103, %v508
      %v597 = vmul.f32 %v104, %v512
      %v598 = vmul.f32 %v105, %v512
      %v599 = vmul.f32 %v106, %v512
      %v600 = vmul.f32 %v107, %v512
      %v601 = vmul.f32 %v108, %v512
      %v602 = vmul.f32 %v109, %v512
      %v603 = vmul.f32 %v110, %v512
      %v604 = vmul.f32 %v111, %v512
      %v605 = vmul.f32 %v112, %v512
      %v606 = vmul.f32 %v113, %v512
      %v607 = vmul.f32 %v114, %v512
      %v608 = vmul.f32 %v115, %v512
      %v609 = vmul.f32 %v116, %v512
      %v610 = vmul.f32 %v117, %v512
      %v611 = vmul.f32 %v118, %v512
      %v612 = vmul.f32 %v119, %v512
      %v613 = vmul.f32 %v120, %v516
      %v614 = vmul.f32 %v121, %v516
      %v615 = vmul.f32 %v122, %v516
      %v616 = vmul.f32 %v123, %v516
      %v617 = vmul.f32 %v124, %v516
      %v618 = vmul.f32 %v125, %v516
      %v619 = vmul.f32 %v126, %v516
      %v620 = vmul.f32 %v127, %v516
      %v621 = vmul.f32 %v128, %v516
      %v622 = vmul.f32 %v129, %v516
      %v623 = vmul.f32 %v130, %v516
      %v624 = vmul.f32 %v131, %v516
      %v625 = vmul.f32 %v132, %v516
      %v626 = vmul.f32 %v133, %v516
      %v627 = vmul.f32 %v134, %v516
      %v628 = vmul.f32 %v135, %v516
      %v629 = vmul.f32 %v136, %v520
      %v630 = vmul.f32 %v137, %v520
      %v631 = vmul.f32 %v138, %v520
      %v632 = vmul.f32 %v139, %v520
      %v633 = vmul.f32 %v140, %v520
      %v634 = vmul.f32 %v141, %v520
      %v635 = vmul.f32 %v142, %v520
      %v636 = vmul.f32 %v143, %v520
      %v637 = vmul.f32 %v144, %v520
      %v638 = vmul.f32 %v145, %v520
      %v639 = vmul.f32 %v146, %v520
      %v640 = vmul.f32 %v147, %v520
      %v641 = vmul.f32 %v148, %v520
      %v642 = vmul.f32 %v149, %v520
      %v643 = vmul.f32 %v150, %v520
      %v644 = vmul.f32 %v151, %v520
      %v645 = vmul.f32 %v152, %v524
      %v646 = vmul.f32 %v153, %v524
      %v647 = vmul.f32 %v154, %v524
      %v648 = vmul.f32 %v155, %v524
      %v649 = vmul.f32 %v156, %v524
      %v650 = vmul.f32 %v157, %v524
      %v651 = vmul.f32 %v158, %v524
      %v652 = vmul.f32 %v159, %v524
      %v653 = vmul.f32 %v160, %v524
      %v654 = vmul.f32 %v161, %v524
      %v655 = vmul.f32 %v162, %v524
      %v656 = vmul.f32 %v163, %v524
      %v657 = vmul.f32 %v164, %v524
      %v658 = vmul.f32 %v165, %v524
      %v659 = vmul.f32 %v166, %v524
      %v660 = vmul.f32 %v167, %v524
      %v661 = vsel %vm177, %v533, 0.0
      %662 = vadd.xlane.f32.xlu0 %v661
      %v663 = vpop.xlane.xlu0 %662
      %v664 = vsel %vm177, %v534, 0.0
      %665 = vadd.xlane.f32.xlu0 %v664
      %v666 = vpop.xlane.xlu0 %665
      %v667 = vsel %vm177, %v535, 0.0
      %668 = vadd.xlane.f32.xlu0 %v667
      %v669 = vpop.xlane.xlu0 %668
      %v670 = vsel %vm177, %v536, 0.0
      %671 = vadd.xlane.f32.xlu0 %v670
      %v672 = vpop.xlane.xlu0 %671
      %v673 = vsel %vm177, %v537, 0.0
      %674 = vadd.xlane.f32.xlu0 %v673
      %v675 = vpop.xlane.xlu0 %674
      %v676 = vsel %vm177, %v538, 0.0
      %677 = vadd.xlane.f32.xlu0 %v676
      %v678 = vpop.xlane.xlu0 %677
      %v679 = vsel %vm177, %v539, 0.0
      %680 = vadd.xlane.f32.xlu0 %v679
      %v681 = vpop.xlane.xlu0 %680
      %v682 = vsel %vm177, %v540, 0.0
      %683 = vadd.xlane.f32.xlu0 %v682
      %v684 = vpop.xlane.xlu0 %683
      %v685 = vsel %vm177, %v541, 0.0
      %686 = vadd.xlane.f32.xlu0 %v685
      %v687 = vpop.xlane.xlu0 %686
      %v688 = vsel %vm177, %v542, 0.0
      %689 = vadd.xlane.f32.xlu0 %v688
      %v690 = vpop.xlane.xlu0 %689
      %v691 = vsel %vm177, %v543, 0.0
      %692 = vadd.xlane.f32.xlu0 %v691
      %v693 = vpop.xlane.xlu0 %692
      %v694 = vsel %vm177, %v544, 0.0
      %695 = vadd.xlane.f32.xlu0 %v694
      %v696 = vpop.xlane.xlu0 %695
      %v697 = vsel %vm177, %v545, 0.0
      %698 = vadd.xlane.f32.xlu0 %v697
      %v699 = vpop.xlane.xlu0 %698
      %v700 = vsel %vm177, %v546, 0.0
      %701 = vadd.xlane.f32.xlu0 %v700
      %v702 = vpop.xlane.xlu0 %701
      %v703 = vsel %vm177, %v547, 0.0
      %704 = vadd.xlane.f32.xlu0 %v703
      %v705 = vpop.xlane.xlu0 %704
      %v706 = vsel %vm177, %v548, 0.0
      %707 = vadd.xlane.f32.xlu0 %v706
      %v708 = vpop.xlane.xlu0 %707
      %v709 = vsel %vm177, %v549, 0.0
      %710 = vadd.xlane.f32.xlu0 %v709
      %v711 = vpop.xlane.xlu0 %710
      %v712 = vsel %vm177, %v550, 0.0
      %713 = vadd.xlane.f32.xlu0 %v712
      %v714 = vpop.xlane.xlu0 %713
      %v715 = vsel %vm177, %v551, 0.0
      %716 = vadd.xlane.f32.xlu0 %v715
      %v717 = vpop.xlane.xlu0 %716
      %v718 = vsel %vm177, %v552, 0.0
      %719 = vadd.xlane.f32.xlu0 %v718
      %v720 = vpop.xlane.xlu0 %719
      %v721 = vsel %vm177, %v553, 0.0
      %722 = vadd.xlane.f32.xlu0 %v721
      %v723 = vpop.xlane.xlu0 %722
      %v724 = vsel %vm177, %v554, 0.0
      %725 = vadd.xlane.f32.xlu0 %v724
      %v726 = vpop.xlane.xlu0 %725
      %v727 = vsel %vm177, %v555, 0.0
      %728 = vadd.xlane.f32.xlu0 %v727
      %v729 = vpop.xlane.xlu0 %728
      %v730 = vsel %vm177, %v556, 0.0
      %731 = vadd.xlane.f32.xlu0 %v730
      %v732 = vpop.xlane.xlu0 %731
      %v733 = vsel %vm177, %v557, 0.0
      %734 = vadd.xlane.f32.xlu0 %v733
      %v735 = vpop.xlane.xlu0 %734
      %v736 = vsel %vm177, %v558, 0.0
      %737 = vadd.xlane.f32.xlu0 %v736
      %v738 = vpop.xlane.xlu0 %737
      %v739 = vsel %vm177, %v559, 0.0
      %740 = vadd.xlane.f32.xlu0 %v739
      %v741 = vpop.xlane.xlu0 %740
      %v742 = vsel %vm177, %v560, 0.0
      %743 = vadd.xlane.f32.xlu0 %v742
      %v744 = vpop.xlane.xlu0 %743
      %v745 = vsel %vm177, %v561, 0.0
      %746 = vadd.xlane.f32.xlu0 %v745
      %v747 = vpop.xlane.xlu0 %746
      %v748 = vsel %vm177, %v562, 0.0
      %749 = vadd.xlane.f32.xlu0 %v748
      %v750 = vpop.xlane.xlu0 %749
      %v751 = vsel %vm177, %v563, 0.0
      %752 = vadd.xlane.f32.xlu0 %v751
      %v753 = vpop.xlane.xlu0 %752
      %v754 = vsel %vm177, %v564, 0.0
      %755 = vadd.xlane.f32.xlu0 %v754
      %v756 = vpop.xlane.xlu0 %755
      %v757 = vsel %vm177, %v565, 0.0
      %758 = vadd.xlane.f32.xlu0 %v757
      %v759 = vpop.xlane.xlu0 %758
      %v760 = vsel %vm177, %v566, 0.0
      %761 = vadd.xlane.f32.xlu0 %v760
      %v762 = vpop.xlane.xlu0 %761
      %v763 = vsel %vm177, %v567, 0.0
      %764 = vadd.xlane.f32.xlu0 %v763
      %v765 = vpop.xlane.xlu0 %764
      %v766 = vsel %vm177, %v568, 0.0
      %767 = vadd.xlane.f32.xlu0 %v766
      %v768 = vpop.xlane.xlu0 %767
      %v769 = vsel %vm177, %v569, 0.0
      %770 = vadd.xlane.f32.xlu0 %v769
      %v771 = vpop.xlane.xlu0 %770
      %v772 = vsel %vm177, %v570, 0.0
      %773 = vadd.xlane.f32.xlu0 %v772
      %v774 = vpop.xlane.xlu0 %773
      %v775 = vsel %vm177, %v571, 0.0
      %776 = vadd.xlane.f32.xlu0 %v775
      %v777 = vpop.xlane.xlu0 %776
      %v778 = vsel %vm177, %v572, 0.0
      %779 = vadd.xlane.f32.xlu0 %v778
      %v780 = vpop.xlane.xlu0 %779
      %v781 = vsel %vm177, %v573, 0.0
      %782 = vadd.xlane.f32.xlu0 %v781
      %v783 = vpop.xlane.xlu0 %782
      %v784 = vsel %vm177, %v574, 0.0
      %785 = vadd.xlane.f32.xlu0 %v784
      %v786 = vpop.xlane.xlu0 %785
      %v787 = vsel %vm177, %v575, 0.0
      %788 = vadd.xlane.f32.xlu0 %v787
      %v789 = vpop.xlane.xlu0 %788
      %v790 = vsel %vm177, %v576, 0.0
      %791 = vadd.xlane.f32.xlu0 %v790
      %v792 = vpop.xlane.xlu0 %791
      %v793 = vsel %vm177, %v577, 0.0
      %794 = vadd.xlane.f32.xlu0 %v793
      %v795 = vpop.xlane.xlu0 %794
      %v796 = vsel %vm177, %v578, 0.0
      %797 = vadd.xlane.f32.xlu0 %v796
      %v798 = vpop.xlane.xlu0 %797
      %v799 = vsel %vm177, %v579, 0.0
      %800 = vadd.xlane.f32.xlu0 %v799
      %v801 = vpop.xlane.xlu0 %800
      %v802 = vsel %vm177, %v580, 0.0
      %803 = vadd.xlane.f32.xlu0 %v802
      %v804 = vpop.xlane.xlu0 %803
      %v805 = vsel %vm177, %v581, 0.0
      %806 = vadd.xlane.f32.xlu0 %v805
      %v807 = vpop.xlane.xlu0 %806
      %v808 = vsel %vm177, %v582, 0.0
      %809 = vadd.xlane.f32.xlu0 %v808
      %v810 = vpop.xlane.xlu0 %809
      %v811 = vsel %vm177, %v583, 0.0
      %812 = vadd.xlane.f32.xlu0 %v811
      %v813 = vpop.xlane.xlu0 %812
      %v814 = vsel %vm177, %v584, 0.0
      %815 = vadd.xlane.f32.xlu0 %v814
      %v816 = vpop.xlane.xlu0 %815
      %v817 = vsel %vm177, %v585, 0.0
      %818 = vadd.xlane.f32.xlu0 %v817
      %v819 = vpop.xlane.xlu0 %818
      %v820 = vsel %vm177, %v586, 0.0
      %821 = vadd.xlane.f32.xlu0 %v820
      %v822 = vpop.xlane.xlu0 %821
      %v823 = vsel %vm177, %v587, 0.0
      %824 = vadd.xlane.f32.xlu0 %v823
      %v825 = vpop.xlane.xlu0 %824
      %v826 = vsel %vm177, %v588, 0.0
      %827 = vadd.xlane.f32.xlu0 %v826
      %v828 = vpop.xlane.xlu0 %827
      %v829 = vsel %vm177, %v589, 0.0
      %830 = vadd.xlane.f32.xlu0 %v829
      %v831 = vpop.xlane.xlu0 %830
      %v832 = vsel %vm177, %v590, 0.0
      %833 = vadd.xlane.f32.xlu0 %v832
      %v834 = vpop.xlane.xlu0 %833
      %v835 = vsel %vm177, %v591, 0.0
      %836 = vadd.xlane.f32.xlu0 %v835
      %v837 = vpop.xlane.xlu0 %836
      %v838 = vsel %vm177, %v592, 0.0
      %839 = vadd.xlane.f32.xlu0 %v838
      %v840 = vpop.xlane.xlu0 %839
      %v841 = vsel %vm177, %v593, 0.0
      %842 = vadd.xlane.f32.xlu0 %v841
      %v843 = vpop.xlane.xlu0 %842
      %v844 = vsel %vm177, %v594, 0.0
      %845 = vadd.xlane.f32.xlu0 %v844
      %v846 = vpop.xlane.xlu0 %845
      %v847 = vsel %vm177, %v595, 0.0
      %848 = vadd.xlane.f32.xlu0 %v847
      %v849 = vpop.xlane.xlu0 %848
      %v850 = vsel %vm177, %v596, 0.0
      %851 = vadd.xlane.f32.xlu0 %v850
      %v852 = vpop.xlane.xlu0 %851
      %v853 = vsel %vm177, %v597, 0.0
      %854 = vadd.xlane.f32.xlu0 %v853
      %v855 = vpop.xlane.xlu0 %854
      %v856 = vsel %vm177, %v598, 0.0
      %857 = vadd.xlane.f32.xlu0 %v856
      %v858 = vpop.xlane.xlu0 %857
      %v859 = vsel %vm177, %v599, 0.0
      %860 = vadd.xlane.f32.xlu0 %v859
      %v861 = vpop.xlane.xlu0 %860
      %v862 = vsel %vm177, %v600, 0.0
      %863 = vadd.xlane.f32.xlu0 %v862
      %v864 = vpop.xlane.xlu0 %863
      %v865 = vsel %vm177, %v601, 0.0
      %866 = vadd.xlane.f32.xlu0 %v865
      %v867 = vpop.xlane.xlu0 %866
      %v868 = vsel %vm177, %v602, 0.0
      %869 = vadd.xlane.f32.xlu0 %v868
      %v870 = vpop.xlane.xlu0 %869
      %v871 = vsel %vm177, %v603, 0.0
      %872 = vadd.xlane.f32.xlu0 %v871
      %v873 = vpop.xlane.xlu0 %872
      %v874 = vsel %vm177, %v604, 0.0
      %875 = vadd.xlane.f32.xlu0 %v874
      %v876 = vpop.xlane.xlu0 %875
      %v877 = vsel %vm177, %v605, 0.0
      %878 = vadd.xlane.f32.xlu0 %v877
      %v879 = vpop.xlane.xlu0 %878
      %v880 = vsel %vm177, %v606, 0.0
      %881 = vadd.xlane.f32.xlu0 %v880
      %v882 = vpop.xlane.xlu0 %881
      %v883 = vsel %vm177, %v607, 0.0
      %884 = vadd.xlane.f32.xlu0 %v883
      %v885 = vpop.xlane.xlu0 %884
      %v886 = vsel %vm177, %v608, 0.0
      %887 = vadd.xlane.f32.xlu0 %v886
      %v888 = vpop.xlane.xlu0 %887
      %v889 = vsel %vm177, %v609, 0.0
      %890 = vadd.xlane.f32.xlu0 %v889
      %v891 = vpop.xlane.xlu0 %890
      %v892 = vsel %vm177, %v610, 0.0
      %893 = vadd.xlane.f32.xlu0 %v892
      %v894 = vpop.xlane.xlu0 %893
      %v895 = vsel %vm177, %v611, 0.0
      %896 = vadd.xlane.f32.xlu0 %v895
      %v897 = vpop.xlane.xlu0 %896
      %v898 = vsel %vm177, %v612, 0.0
      %899 = vadd.xlane.f32.xlu0 %v898
      %v900 = vpop.xlane.xlu0 %899
      %v901 = vsel %vm177, %v613, 0.0
      %902 = vadd.xlane.f32.xlu0 %v901
      %v903 = vpop.xlane.xlu0 %902
      %v904 = vsel %vm177, %v614, 0.0
      %905 = vadd.xlane.f32.xlu0 %v904
      %v906 = vpop.xlane.xlu0 %905
      %v907 = vsel %vm177, %v615, 0.0
      %908 = vadd.xlane.f32.xlu0 %v907
      %v909 = vpop.xlane.xlu0 %908
      %v910 = vsel %vm177, %v616, 0.0
      %911 = vadd.xlane.f32.xlu0 %v910
      %v912 = vpop.xlane.xlu0 %911
      %v913 = vsel %vm177, %v617, 0.0
      %914 = vadd.xlane.f32.xlu0 %v913
      %v915 = vpop.xlane.xlu0 %914
      %v916 = vsel %vm177, %v618, 0.0
      %917 = vadd.xlane.f32.xlu0 %v916
      %v918 = vpop.xlane.xlu0 %917
      %v919 = vsel %vm177, %v619, 0.0
      %920 = vadd.xlane.f32.xlu0 %v919
      %v921 = vpop.xlane.xlu0 %920
      %v922 = vsel %vm177, %v620, 0.0
      %923 = vadd.xlane.f32.xlu0 %v922
      %v924 = vpop.xlane.xlu0 %923
      %v925 = vsel %vm177, %v621, 0.0
      %926 = vadd.xlane.f32.xlu0 %v925
      %v927 = vpop.xlane.xlu0 %926
      %v928 = vsel %vm177, %v622, 0.0
      %929 = vadd.xlane.f32.xlu0 %v928
      %v930 = vpop.xlane.xlu0 %929
      %v931 = vsel %vm177, %v623, 0.0
      %932 = vadd.xlane.f32.xlu0 %v931
      %v933 = vpop.xlane.xlu0 %932
      %v934 = vsel %vm177, %v624, 0.0
      %935 = vadd.xlane.f32.xlu0 %v934
      %v936 = vpop.xlane.xlu0 %935
      %v937 = vsel %vm177, %v625, 0.0
      %938 = vadd.xlane.f32.xlu0 %v937
      %v939 = vpop.xlane.xlu0 %938
      %v940 = vsel %vm177, %v626, 0.0
      %941 = vadd.xlane.f32.xlu0 %v940
      %v942 = vpop.xlane.xlu0 %941
      %v943 = vsel %vm177, %v627, 0.0
      %944 = vadd.xlane.f32.xlu0 %v943
      %v945 = vpop.xlane.xlu0 %944
      %v946 = vsel %vm177, %v628, 0.0
      %947 = vadd.xlane.f32.xlu0 %v946
      %v948 = vpop.xlane.xlu0 %947
      %v949 = vsel %vm177, %v629, 0.0
      %950 = vadd.xlane.f32.xlu0 %v949
      %v951 = vpop.xlane.xlu0 %950
      %v952 = vsel %vm177, %v630, 0.0
      %953 = vadd.xlane.f32.xlu0 %v952
      %v954 = vpop.xlane.xlu0 %953
      %v955 = vsel %vm177, %v631, 0.0
      %956 = vadd.xlane.f32.xlu0 %v955
      %v957 = vpop.xlane.xlu0 %956
      %v958 = vsel %vm177, %v632, 0.0
      %959 = vadd.xlane.f32.xlu0 %v958
      %v960 = vpop.xlane.xlu0 %959
      %v961 = vsel %vm177, %v633, 0.0
      %962 = vadd.xlane.f32.xlu0 %v961
      %v963 = vpop.xlane.xlu0 %962
      %v964 = vsel %vm177, %v634, 0.0
      %965 = vadd.xlane.f32.xlu0 %v964
      %v966 = vpop.xlane.xlu0 %965
      %v967 = vsel %vm177, %v635, 0.0
      %968 = vadd.xlane.f32.xlu0 %v967
      %v969 = vpop.xlane.xlu0 %968
      %v970 = vsel %vm177, %v636, 0.0
      %971 = vadd.xlane.f32.xlu0 %v970
      %v972 = vpop.xlane.xlu0 %971
      %v973 = vsel %vm177, %v637, 0.0
      %974 = vadd.xlane.f32.xlu0 %v973
      %v975 = vpop.xlane.xlu0 %974
      %v976 = vsel %vm177, %v638, 0.0
      %977 = vadd.xlane.f32.xlu0 %v976
      %v978 = vpop.xlane.xlu0 %977
      %v979 = vsel %vm177, %v639, 0.0
      %980 = vadd.xlane.f32.xlu0 %v979
      %v981 = vpop.xlane.xlu0 %980
      %v982 = vsel %vm177, %v640, 0.0
      %983 = vadd.xlane.f32.xlu0 %v982
      %v984 = vpop.xlane.xlu0 %983
      %v985 = vsel %vm177, %v641, 0.0
      %986 = vadd.xlane.f32.xlu0 %v985
      %v987 = vpop.xlane.xlu0 %986
      %v988 = vsel %vm177, %v642, 0.0
      %989 = vadd.xlane.f32.xlu0 %v988
      %v990 = vpop.xlane.xlu0 %989
      %v991 = vsel %vm177, %v643, 0.0
      %992 = vadd.xlane.f32.xlu0 %v991
      %v993 = vpop.xlane.xlu0 %992
      %v994 = vsel %vm177, %v644, 0.0
      %995 = vadd.xlane.f32.xlu0 %v994
      %v996 = vpop.xlane.xlu0 %995
      %v997 = vsel %vm177, %v645, 0.0
      %998 = vadd.xlane.f32.xlu0 %v997
      %v999 = vpop.xlane.xlu0 %998
      %v1000 = vsel %vm177, %v646, 0.0
      %1001 = vadd.xlane.f32.xlu0 %v1000
      %v1002 = vpop.xlane.xlu0 %1001
      %v1003 = vsel %vm177, %v647, 0.0
      %1004 = vadd.xlane.f32.xlu0 %v1003
      %v1005 = vpop.xlane.xlu0 %1004
      %v1006 = vsel %vm177, %v648, 0.0
      %1007 = vadd.xlane.f32.xlu0 %v1006
      %v1008 = vpop.xlane.xlu0 %1007
      %v1009 = vsel %vm177, %v649, 0.0
      %1010 = vadd.xlane.f32.xlu0 %v1009
      %v1011 = vpop.xlane.xlu0 %1010
      %v1012 = vsel %vm177, %v650, 0.0
      %1013 = vadd.xlane.f32.xlu0 %v1012
      %v1014 = vpop.xlane.xlu0 %1013
      %v1015 = vsel %vm177, %v651, 0.0
      %1016 = vadd.xlane.f32.xlu0 %v1015
      %v1017 = vpop.xlane.xlu0 %1016
      %v1018 = vsel %vm177, %v652, 0.0
      %1019 = vadd.xlane.f32.xlu0 %v1018
      %v1020 = vpop.xlane.xlu0 %1019
      %v1021 = vsel %vm177, %v653, 0.0
      %1022 = vadd.xlane.f32.xlu0 %v1021
      %v1023 = vpop.xlane.xlu0 %1022
      %v1024 = vsel %vm177, %v654, 0.0
      %1025 = vadd.xlane.f32.xlu0 %v1024
      %v1026 = vpop.xlane.xlu0 %1025
      %v1027 = vsel %vm177, %v655, 0.0
      %1028 = vadd.xlane.f32.xlu0 %v1027
      %v1029 = vpop.xlane.xlu0 %1028
      %v1030 = vsel %vm177, %v656, 0.0
      %1031 = vadd.xlane.f32.xlu0 %v1030
      %v1032 = vpop.xlane.xlu0 %1031
      %v1033 = vsel %vm177, %v657, 0.0
      %1034 = vadd.xlane.f32.xlu0 %v1033
      %v1035 = vpop.xlane.xlu0 %1034
      %v1036 = vsel %vm177, %v658, 0.0
      %1037 = vadd.xlane.f32.xlu0 %v1036
      %v1038 = vpop.xlane.xlu0 %1037
      %v1039 = vsel %vm177, %v659, 0.0
      %1040 = vadd.xlane.f32.xlu0 %v1039
      %v1041 = vpop.xlane.xlu0 %1040
      %v1042 = vsel %vm177, %v660, 0.0
      %1043 = vadd.xlane.f32.xlu0 %v1042
      %v1044 = vpop.xlane.xlu0 %1043
      %v1045 = vlaneseq
      %v1046 = vand.u32 %v1045, 127
      %vm1047 = vcmp.lt.s32.totalorder %v1046, 8
      %v1176 = vlaneseq
      %v1177 = vshrl.u32 %v1176, 7
      %v1178 = vsub.s32 %v1046, %v1177
      %v1179 = vrot.slane %v663, %v1178
      %v1180 = vadd.s32 %v1046, 4294967288
      %v1181 = vlaneseq
      %v1182 = vshrl.u32 %v1181, 7
      %v1183 = vsub.s32 %v1180, %v1182
      %v1184 = vrot.slane %v666, %v1183
      %vm1185 = vcmask 130112
      %v1186 = vsel %vm1185, %v1184, %v1179
      %v1187 = vadd.s32 %v1046, 4294967280
      %v1188 = vlaneseq
      %v1189 = vshrl.u32 %v1188, 7
      %v1190 = vsub.s32 %v1187, %v1189
      %v1191 = vrot.slane %v669, %v1190
      %vm1192 = vcmask 195712
      %v1193 = vsel %vm1192, %v1191, %v1186
      %v1194 = vadd.s32 %v1046, 4294967272
      %v1195 = vlaneseq
      %v1196 = vshrl.u32 %v1195, 7
      %v1197 = vsub.s32 %v1194, %v1196
      %v1198 = vrot.slane %v672, %v1197
      %vm1199 = vcmask 261312
      %v1200 = vsel %vm1199, %v1198, %v1193
      %v1201 = vadd.s32 %v1046, 4294967264
      %v1202 = vlaneseq
      %v1203 = vshrl.u32 %v1202, 7
      %v1204 = vsub.s32 %v1201, %v1203
      %v1205 = vrot.slane %v675, %v1204
      %vm1206 = vcmask 326912
      %v1207 = vsel %vm1206, %v1205, %v1200
      %v1208 = vadd.s32 %v1046, 4294967256
      %v1209 = vlaneseq
      %v1210 = vshrl.u32 %v1209, 7
      %v1211 = vsub.s32 %v1208, %v1210
      %v1212 = vrot.slane %v678, %v1211
      %vm1213 = vcmask 392512
      %v1214 = vsel %vm1213, %v1212, %v1207
      %v1215 = vadd.s32 %v1046, 4294967248
      %v1216 = vlaneseq
      %v1217 = vshrl.u32 %v1216, 7
      %v1218 = vsub.s32 %v1215, %v1217
      %v1219 = vrot.slane %v681, %v1218
      %vm1220 = vcmask 458112
      %v1221 = vsel %vm1220, %v1219, %v1214
      %v1222 = vadd.s32 %v1046, 4294967240
      %v1223 = vlaneseq
      %v1224 = vshrl.u32 %v1223, 7
      %v1225 = vsub.s32 %v1222, %v1224
      %v1226 = vrot.slane %v684, %v1225
      %vm1227 = vcmask 523712
      %v1228 = vsel %vm1227, %v1226, %v1221
      %v1229 = vadd.s32 %v1046, 4294967232
      %v1230 = vlaneseq
      %v1231 = vshrl.u32 %v1230, 7
      %v1232 = vsub.s32 %v1229, %v1231
      %v1233 = vrot.slane %v687, %v1232
      %vm1234 = vcmask 589312
      %v1235 = vsel %vm1234, %v1233, %v1228
      %v1236 = vadd.s32 %v1046, 4294967224
      %v1237 = vlaneseq
      %v1238 = vshrl.u32 %v1237, 7
      %v1239 = vsub.s32 %v1236, %v1238
      %v1240 = vrot.slane %v690, %v1239
      %vm1241 = vcmask 654912
      %v1242 = vsel %vm1241, %v1240, %v1235
      %v1243 = vadd.s32 %v1046, 4294967216
      %v1244 = vlaneseq
      %v1245 = vshrl.u32 %v1244, 7
      %v1246 = vsub.s32 %v1243, %v1245
      %v1247 = vrot.slane %v693, %v1246
      %vm1248 = vcmask 720512
      %v1249 = vsel %vm1248, %v1247, %v1242
      %v1250 = vadd.s32 %v1046, 4294967208
      %v1251 = vlaneseq
      %v1252 = vshrl.u32 %v1251, 7
      %v1253 = vsub.s32 %v1250, %v1252
      %v1254 = vrot.slane %v696, %v1253
      %vm1255 = vcmask 786112
      %v1256 = vsel %vm1255, %v1254, %v1249
      %v1257 = vadd.s32 %v1046, 4294967200
      %v1258 = vlaneseq
      %v1259 = vshrl.u32 %v1258, 7
      %v1260 = vsub.s32 %v1257, %v1259
      %v1261 = vrot.slane %v699, %v1260
      %vm1262 = vcmask 851712
      %v1263 = vsel %vm1262, %v1261, %v1256
      %v1264 = vadd.s32 %v1046, 4294967192
      %v1265 = vlaneseq
      %v1266 = vshrl.u32 %v1265, 7
      %v1267 = vsub.s32 %v1264, %v1266
      %v1268 = vrot.slane %v702, %v1267
      %vm1269 = vcmask 917312
      %v1270 = vsel %vm1269, %v1268, %v1263
      %v1271 = vadd.s32 %v1046, 4294967184
      %v1272 = vlaneseq
      %v1273 = vshrl.u32 %v1272, 7
      %v1274 = vsub.s32 %v1271, %v1273
      %v1275 = vrot.slane %v705, %v1274
      %vm1276 = vcmask 982912
      %v1277 = vsel %vm1276, %v1275, %v1270
      %v1278 = vadd.s32 %v1046, 4294967176
      %v1279 = vlaneseq
      %v1280 = vshrl.u32 %v1279, 7
      %v1281 = vsub.s32 %v1278, %v1280
      %v1282 = vrot.slane %v708, %v1281
      %vm1283 = vcmask 1048512
      %v1284 = vsel %vm1283, %v1282, %v1277
      %v1285 = vlaneseq
      %v1286 = vshrl.u32 %v1285, 7
      %v1287 = vsub.s32 %v1046, %v1286
      %v1288 = vrot.slane %v711, %v1287
      %v1289 = vlaneseq
      %v1290 = vshrl.u32 %v1289, 7
      %v1291 = vsub.s32 %v1180, %v1290
      %v1292 = vrot.slane %v714, %v1291
      %v1293 = vsel %vm1185, %v1292, %v1288
      %v1294 = vlaneseq
      %v1295 = vshrl.u32 %v1294, 7
      %v1296 = vsub.s32 %v1187, %v1295
      %v1297 = vrot.slane %v717, %v1296
      %v1298 = vsel %vm1192, %v1297, %v1293
      %v1299 = vlaneseq
      %v1300 = vshrl.u32 %v1299, 7
      %v1301 = vsub.s32 %v1194, %v1300
      %v1302 = vrot.slane %v720, %v1301
      %v1303 = vsel %vm1199, %v1302, %v1298
      %v1304 = vlaneseq
      %v1305 = vshrl.u32 %v1304, 7
      %v1306 = vsub.s32 %v1201, %v1305
      %v1307 = vrot.slane %v723, %v1306
      %v1308 = vsel %vm1206, %v1307, %v1303
      %v1309 = vlaneseq
      %v1310 = vshrl.u32 %v1309, 7
      %v1311 = vsub.s32 %v1208, %v1310
      %v1312 = vrot.slane %v726, %v1311
      %v1313 = vsel %vm1213, %v1312, %v1308
      %v1314 = vlaneseq
      %v1315 = vshrl.u32 %v1314, 7
      %v1316 = vsub.s32 %v1215, %v1315
      %v1317 = vrot.slane %v729, %v1316
      %v1318 = vsel %vm1220, %v1317, %v1313
      %v1319 = vlaneseq
      %v1320 = vshrl.u32 %v1319, 7
      %v1321 = vsub.s32 %v1222, %v1320
      %v1322 = vrot.slane %v732, %v1321
      %v1323 = vsel %vm1227, %v1322, %v1318
      %v1324 = vlaneseq
      %v1325 = vshrl.u32 %v1324, 7
      %v1326 = vsub.s32 %v1229, %v1325
      %v1327 = vrot.slane %v735, %v1326
      %v1328 = vsel %vm1234, %v1327, %v1323
      %v1329 = vlaneseq
      %v1330 = vshrl.u32 %v1329, 7
      %v1331 = vsub.s32 %v1236, %v1330
      %v1332 = vrot.slane %v738, %v1331
      %v1333 = vsel %vm1241, %v1332, %v1328
      %v1334 = vlaneseq
      %v1335 = vshrl.u32 %v1334, 7
      %v1336 = vsub.s32 %v1243, %v1335
      %v1337 = vrot.slane %v741, %v1336
      %v1338 = vsel %vm1248, %v1337, %v1333
      %v1339 = vlaneseq
      %v1340 = vshrl.u32 %v1339, 7
      %v1341 = vsub.s32 %v1250, %v1340
      %v1342 = vrot.slane %v744, %v1341
      %v1343 = vsel %vm1255, %v1342, %v1338
      %v1344 = vlaneseq
      %v1345 = vshrl.u32 %v1344, 7
      %v1346 = vsub.s32 %v1257, %v1345
      %v1347 = vrot.slane %v747, %v1346
      %v1348 = vsel %vm1262, %v1347, %v1343
      %v1349 = vlaneseq
      %v1350 = vshrl.u32 %v1349, 7
      %v1351 = vsub.s32 %v1264, %v1350
      %v1352 = vrot.slane %v750, %v1351
      %v1353 = vsel %vm1269, %v1352, %v1348
      %v1354 = vlaneseq
      %v1355 = vshrl.u32 %v1354, 7
      %v1356 = vsub.s32 %v1271, %v1355
      %v1357 = vrot.slane %v753, %v1356
      %v1358 = vsel %vm1276, %v1357, %v1353
      %v1359 = vlaneseq
      %v1360 = vshrl.u32 %v1359, 7
      %v1361 = vsub.s32 %v1278, %v1360
      %v1362 = vrot.slane %v756, %v1361
      %v1363 = vsel %vm1283, %v1362, %v1358
      %v1364 = vlaneseq
      %v1365 = vshrl.u32 %v1364, 7
      %v1366 = vsub.s32 %v1046, %v1365
      %v1367 = vrot.slane %v759, %v1366
      %v1368 = vlaneseq
      %v1369 = vshrl.u32 %v1368, 7
      %v1370 = vsub.s32 %v1180, %v1369
      %v1371 = vrot.slane %v762, %v1370
      %v1372 = vsel %vm1185, %v1371, %v1367
      %v1373 = vlaneseq
      %v1374 = vshrl.u32 %v1373, 7
      %v1375 = vsub.s32 %v1187, %v1374
      %v1376 = vrot.slane %v765, %v1375
      %v1377 = vsel %vm1192, %v1376, %v1372
      %v1378 = vlaneseq
      %v1379 = vshrl.u32 %v1378, 7
      %v1380 = vsub.s32 %v1194, %v1379
      %v1381 = vrot.slane %v768, %v1380
      %v1382 = vsel %vm1199, %v1381, %v1377
      %v1383 = vlaneseq
      %v1384 = vshrl.u32 %v1383, 7
      %v1385 = vsub.s32 %v1201, %v1384
      %v1386 = vrot.slane %v771, %v1385
      %v1387 = vsel %vm1206, %v1386, %v1382
      %v1388 = vlaneseq
      %v1389 = vshrl.u32 %v1388, 7
      %v1390 = vsub.s32 %v1208, %v1389
      %v1391 = vrot.slane %v774, %v1390
      %v1392 = vsel %vm1213, %v1391, %v1387
      %v1393 = vlaneseq
      %v1394 = vshrl.u32 %v1393, 7
      %v1395 = vsub.s32 %v1215, %v1394
      %v1396 = vrot.slane %v777, %v1395
      %v1397 = vsel %vm1220, %v1396, %v1392
      %v1398 = vlaneseq
      %v1399 = vshrl.u32 %v1398, 7
      %v1400 = vsub.s32 %v1222, %v1399
      %v1401 = vrot.slane %v780, %v1400
      %v1402 = vsel %vm1227, %v1401, %v1397
      %v1403 = vlaneseq
      %v1404 = vshrl.u32 %v1403, 7
      %v1405 = vsub.s32 %v1229, %v1404
      %v1406 = vrot.slane %v783, %v1405
      %v1407 = vsel %vm1234, %v1406, %v1402
      %v1408 = vlaneseq
      %v1409 = vshrl.u32 %v1408, 7
      %v1410 = vsub.s32 %v1236, %v1409
      %v1411 = vrot.slane %v786, %v1410
      %v1412 = vsel %vm1241, %v1411, %v1407
      %v1413 = vlaneseq
      %v1414 = vshrl.u32 %v1413, 7
      %v1415 = vsub.s32 %v1243, %v1414
      %v1416 = vrot.slane %v789, %v1415
      %v1417 = vsel %vm1248, %v1416, %v1412
      %v1418 = vlaneseq
      %v1419 = vshrl.u32 %v1418, 7
      %v1420 = vsub.s32 %v1250, %v1419
      %v1421 = vrot.slane %v792, %v1420
      %v1422 = vsel %vm1255, %v1421, %v1417
      %v1423 = vlaneseq
      %v1424 = vshrl.u32 %v1423, 7
      %v1425 = vsub.s32 %v1257, %v1424
      %v1426 = vrot.slane %v795, %v1425
      %v1427 = vsel %vm1262, %v1426, %v1422
      %v1428 = vlaneseq
      %v1429 = vshrl.u32 %v1428, 7
      %v1430 = vsub.s32 %v1264, %v1429
      %v1431 = vrot.slane %v798, %v1430
      %v1432 = vsel %vm1269, %v1431, %v1427
      %v1433 = vlaneseq
      %v1434 = vshrl.u32 %v1433, 7
      %v1435 = vsub.s32 %v1271, %v1434
      %v1436 = vrot.slane %v801, %v1435
      %v1437 = vsel %vm1276, %v1436, %v1432
      %v1438 = vlaneseq
      %v1439 = vshrl.u32 %v1438, 7
      %v1440 = vsub.s32 %v1278, %v1439
      %v1441 = vrot.slane %v804, %v1440
      %v1442 = vsel %vm1283, %v1441, %v1437
      %v1443 = vlaneseq
      %v1444 = vshrl.u32 %v1443, 7
      %v1445 = vsub.s32 %v1046, %v1444
      %v1446 = vrot.slane %v807, %v1445
      %v1447 = vlaneseq
      %v1448 = vshrl.u32 %v1447, 7
      %v1449 = vsub.s32 %v1180, %v1448
      %v1450 = vrot.slane %v810, %v1449
      %v1451 = vsel %vm1185, %v1450, %v1446
      %v1452 = vlaneseq
      %v1453 = vshrl.u32 %v1452, 7
      %v1454 = vsub.s32 %v1187, %v1453
      %v1455 = vrot.slane %v813, %v1454
      %v1456 = vsel %vm1192, %v1455, %v1451
      %v1457 = vlaneseq
      %v1458 = vshrl.u32 %v1457, 7
      %v1459 = vsub.s32 %v1194, %v1458
      %v1460 = vrot.slane %v816, %v1459
      %v1461 = vsel %vm1199, %v1460, %v1456
      %v1462 = vlaneseq
      %v1463 = vshrl.u32 %v1462, 7
      %v1464 = vsub.s32 %v1201, %v1463
      %v1465 = vrot.slane %v819, %v1464
      %v1466 = vsel %vm1206, %v1465, %v1461
      %v1467 = vlaneseq
      %v1468 = vshrl.u32 %v1467, 7
      %v1469 = vsub.s32 %v1208, %v1468
      %v1470 = vrot.slane %v822, %v1469
      %v1471 = vsel %vm1213, %v1470, %v1466
      %v1472 = vlaneseq
      %v1473 = vshrl.u32 %v1472, 7
      %v1474 = vsub.s32 %v1215, %v1473
      %v1475 = vrot.slane %v825, %v1474
      %v1476 = vsel %vm1220, %v1475, %v1471
      %v1477 = vlaneseq
      %v1478 = vshrl.u32 %v1477, 7
      %v1479 = vsub.s32 %v1222, %v1478
      %v1480 = vrot.slane %v828, %v1479
      %v1481 = vsel %vm1227, %v1480, %v1476
      %v1482 = vlaneseq
      %v1483 = vshrl.u32 %v1482, 7
      %v1484 = vsub.s32 %v1229, %v1483
      %v1485 = vrot.slane %v831, %v1484
      %v1486 = vsel %vm1234, %v1485, %v1481
      %v1487 = vlaneseq
      %v1488 = vshrl.u32 %v1487, 7
      %v1489 = vsub.s32 %v1236, %v1488
      %v1490 = vrot.slane %v834, %v1489
      %v1491 = vsel %vm1241, %v1490, %v1486
      %v1492 = vlaneseq
      %v1493 = vshrl.u32 %v1492, 7
      %v1494 = vsub.s32 %v1243, %v1493
      %v1495 = vrot.slane %v837, %v1494
      %v1496 = vsel %vm1248, %v1495, %v1491
      %v1497 = vlaneseq
      %v1498 = vshrl.u32 %v1497, 7
      %v1499 = vsub.s32 %v1250, %v1498
      %v1500 = vrot.slane %v840, %v1499
      %v1501 = vsel %vm1255, %v1500, %v1496
      %v1502 = vlaneseq
      %v1503 = vshrl.u32 %v1502, 7
      %v1504 = vsub.s32 %v1257, %v1503
      %v1505 = vrot.slane %v843, %v1504
      %v1506 = vsel %vm1262, %v1505, %v1501
      %v1507 = vlaneseq
      %v1508 = vshrl.u32 %v1507, 7
      %v1509 = vsub.s32 %v1264, %v1508
      %v1510 = vrot.slane %v846, %v1509
      %v1511 = vsel %vm1269, %v1510, %v1506
      %v1512 = vlaneseq
      %v1513 = vshrl.u32 %v1512, 7
      %v1514 = vsub.s32 %v1271, %v1513
      %v1515 = vrot.slane %v849, %v1514
      %v1516 = vsel %vm1276, %v1515, %v1511
      %v1517 = vlaneseq
      %v1518 = vshrl.u32 %v1517, 7
      %v1519 = vsub.s32 %v1278, %v1518
      %v1520 = vrot.slane %v852, %v1519
      %v1521 = vsel %vm1283, %v1520, %v1516
      %v1522 = vlaneseq
      %v1523 = vshrl.u32 %v1522, 7
      %v1524 = vsub.s32 %v1046, %v1523
      %v1525 = vrot.slane %v855, %v1524
      %v1526 = vlaneseq
      %v1527 = vshrl.u32 %v1526, 7
      %v1528 = vsub.s32 %v1180, %v1527
      %v1529 = vrot.slane %v858, %v1528
      %v1530 = vsel %vm1185, %v1529, %v1525
      %v1531 = vlaneseq
      %v1532 = vshrl.u32 %v1531, 7
      %v1533 = vsub.s32 %v1187, %v1532
      %v1534 = vrot.slane %v861, %v1533
      %v1535 = vsel %vm1192, %v1534, %v1530
      %v1536 = vlaneseq
      %v1537 = vshrl.u32 %v1536, 7
      %v1538 = vsub.s32 %v1194, %v1537
      %v1539 = vrot.slane %v864, %v1538
      %v1540 = vsel %vm1199, %v1539, %v1535
      %v1541 = vlaneseq
      %v1542 = vshrl.u32 %v1541, 7
      %v1543 = vsub.s32 %v1201, %v1542
      %v1544 = vrot.slane %v867, %v1543
      %v1545 = vsel %vm1206, %v1544, %v1540
      %v1546 = vlaneseq
      %v1547 = vshrl.u32 %v1546, 7
      %v1548 = vsub.s32 %v1208, %v1547
      %v1549 = vrot.slane %v870, %v1548
      %v1550 = vsel %vm1213, %v1549, %v1545
      %v1551 = vlaneseq
      %v1552 = vshrl.u32 %v1551, 7
      %v1553 = vsub.s32 %v1215, %v1552
      %v1554 = vrot.slane %v873, %v1553
      %v1555 = vsel %vm1220, %v1554, %v1550
      %v1556 = vlaneseq
      %v1557 = vshrl.u32 %v1556, 7
      %v1558 = vsub.s32 %v1222, %v1557
      %v1559 = vrot.slane %v876, %v1558
      %v1560 = vsel %vm1227, %v1559, %v1555
      %v1561 = vlaneseq
      %v1562 = vshrl.u32 %v1561, 7
      %v1563 = vsub.s32 %v1229, %v1562
      %v1564 = vrot.slane %v879, %v1563
      %v1565 = vsel %vm1234, %v1564, %v1560
      %v1566 = vlaneseq
      %v1567 = vshrl.u32 %v1566, 7
      %v1568 = vsub.s32 %v1236, %v1567
      %v1569 = vrot.slane %v882, %v1568
      %v1570 = vsel %vm1241, %v1569, %v1565
      %v1571 = vlaneseq
      %v1572 = vshrl.u32 %v1571, 7
      %v1573 = vsub.s32 %v1243, %v1572
      %v1574 = vrot.slane %v885, %v1573
      %v1575 = vsel %vm1248, %v1574, %v1570
      %v1576 = vlaneseq
      %v1577 = vshrl.u32 %v1576, 7
      %v1578 = vsub.s32 %v1250, %v1577
      %v1579 = vrot.slane %v888, %v1578
      %v1580 = vsel %vm1255, %v1579, %v1575
      %v1581 = vlaneseq
      %v1582 = vshrl.u32 %v1581, 7
      %v1583 = vsub.s32 %v1257, %v1582
      %v1584 = vrot.slane %v891, %v1583
      %v1585 = vsel %vm1262, %v1584, %v1580
      %v1586 = vlaneseq
      %v1587 = vshrl.u32 %v1586, 7
      %v1588 = vsub.s32 %v1264, %v1587
      %v1589 = vrot.slane %v894, %v1588
      %v1590 = vsel %vm1269, %v1589, %v1585
      %v1591 = vlaneseq
      %v1592 = vshrl.u32 %v1591, 7
      %v1593 = vsub.s32 %v1271, %v1592
      %v1594 = vrot.slane %v897, %v1593
      %v1595 = vsel %vm1276, %v1594, %v1590
      %v1596 = vlaneseq
      %v1597 = vshrl.u32 %v1596, 7
      %v1598 = vsub.s32 %v1278, %v1597
      %v1599 = vrot.slane %v900, %v1598
      %v1600 = vsel %vm1283, %v1599, %v1595
      %v1601 = vlaneseq
      %v1602 = vshrl.u32 %v1601, 7
      %v1603 = vsub.s32 %v1046, %v1602
      %v1604 = vrot.slane %v903, %v1603
      %v1605 = vlaneseq
      %v1606 = vshrl.u32 %v1605, 7
      %v1607 = vsub.s32 %v1180, %v1606
      %v1608 = vrot.slane %v906, %v1607
      %v1609 = vsel %vm1185, %v1608, %v1604
      %v1610 = vlaneseq
      %v1611 = vshrl.u32 %v1610, 7
      %v1612 = vsub.s32 %v1187, %v1611
      %v1613 = vrot.slane %v909, %v1612
      %v1614 = vsel %vm1192, %v1613, %v1609
      %v1615 = vlaneseq
      %v1616 = vshrl.u32 %v1615, 7
      %v1617 = vsub.s32 %v1194, %v1616
      %v1618 = vrot.slane %v912, %v1617
      %v1619 = vsel %vm1199, %v1618, %v1614
      %v1620 = vlaneseq
      %v1621 = vshrl.u32 %v1620, 7
      %v1622 = vsub.s32 %v1201, %v1621
      %v1623 = vrot.slane %v915, %v1622
      %v1624 = vsel %vm1206, %v1623, %v1619
      %v1625 = vlaneseq
      %v1626 = vshrl.u32 %v1625, 7
      %v1627 = vsub.s32 %v1208, %v1626
      %v1628 = vrot.slane %v918, %v1627
      %v1629 = vsel %vm1213, %v1628, %v1624
      %v1630 = vlaneseq
      %v1631 = vshrl.u32 %v1630, 7
      %v1632 = vsub.s32 %v1215, %v1631
      %v1633 = vrot.slane %v921, %v1632
      %v1634 = vsel %vm1220, %v1633, %v1629
      %v1635 = vlaneseq
      %v1636 = vshrl.u32 %v1635, 7
      %v1637 = vsub.s32 %v1222, %v1636
      %v1638 = vrot.slane %v924, %v1637
      %v1639 = vsel %vm1227, %v1638, %v1634
      %v1640 = vlaneseq
      %v1641 = vshrl.u32 %v1640, 7
      %v1642 = vsub.s32 %v1229, %v1641
      %v1643 = vrot.slane %v927, %v1642
      %v1644 = vsel %vm1234, %v1643, %v1639
      %v1645 = vlaneseq
      %v1646 = vshrl.u32 %v1645, 7
      %v1647 = vsub.s32 %v1236, %v1646
      %v1648 = vrot.slane %v930, %v1647
      %v1649 = vsel %vm1241, %v1648, %v1644
      %v1650 = vlaneseq
      %v1651 = vshrl.u32 %v1650, 7
      %v1652 = vsub.s32 %v1243, %v1651
      %v1653 = vrot.slane %v933, %v1652
      %v1654 = vsel %vm1248, %v1653, %v1649
      %v1655 = vlaneseq
      %v1656 = vshrl.u32 %v1655, 7
      %v1657 = vsub.s32 %v1250, %v1656
      %v1658 = vrot.slane %v936, %v1657
      %v1659 = vsel %vm1255, %v1658, %v1654
      %v1660 = vlaneseq
      %v1661 = vshrl.u32 %v1660, 7
      %v1662 = vsub.s32 %v1257, %v1661
      %v1663 = vrot.slane %v939, %v1662
      %v1664 = vsel %vm1262, %v1663, %v1659
      %v1665 = vlaneseq
      %v1666 = vshrl.u32 %v1665, 7
      %v1667 = vsub.s32 %v1264, %v1666
      %v1668 = vrot.slane %v942, %v1667
      %v1669 = vsel %vm1269, %v1668, %v1664
      %v1670 = vlaneseq
      %v1671 = vshrl.u32 %v1670, 7
      %v1672 = vsub.s32 %v1271, %v1671
      %v1673 = vrot.slane %v945, %v1672
      %v1674 = vsel %vm1276, %v1673, %v1669
      %v1675 = vlaneseq
      %v1676 = vshrl.u32 %v1675, 7
      %v1677 = vsub.s32 %v1278, %v1676
      %v1678 = vrot.slane %v948, %v1677
      %v1679 = vsel %vm1283, %v1678, %v1674
      %v1680 = vlaneseq
      %v1681 = vshrl.u32 %v1680, 7
      %v1682 = vsub.s32 %v1046, %v1681
      %v1683 = vrot.slane %v951, %v1682
      %v1684 = vlaneseq
      %v1685 = vshrl.u32 %v1684, 7
      %v1686 = vsub.s32 %v1180, %v1685
      %v1687 = vrot.slane %v954, %v1686
      %v1688 = vsel %vm1185, %v1687, %v1683
      %v1689 = vlaneseq
      %v1690 = vshrl.u32 %v1689, 7
      %v1691 = vsub.s32 %v1187, %v1690
      %v1692 = vrot.slane %v957, %v1691
      %v1693 = vsel %vm1192, %v1692, %v1688
      %v1694 = vlaneseq
      %v1695 = vshrl.u32 %v1694, 7
      %v1696 = vsub.s32 %v1194, %v1695
      %v1697 = vrot.slane %v960, %v1696
      %v1698 = vsel %vm1199, %v1697, %v1693
      %v1699 = vlaneseq
      %v1700 = vshrl.u32 %v1699, 7
      %v1701 = vsub.s32 %v1201, %v1700
      %v1702 = vrot.slane %v963, %v1701
      %v1703 = vsel %vm1206, %v1702, %v1698
      %v1704 = vlaneseq
      %v1705 = vshrl.u32 %v1704, 7
      %v1706 = vsub.s32 %v1208, %v1705
      %v1707 = vrot.slane %v966, %v1706
      %v1708 = vsel %vm1213, %v1707, %v1703
      %v1709 = vlaneseq
      %v1710 = vshrl.u32 %v1709, 7
      %v1711 = vsub.s32 %v1215, %v1710
      %v1712 = vrot.slane %v969, %v1711
      %v1713 = vsel %vm1220, %v1712, %v1708
      %v1714 = vlaneseq
      %v1715 = vshrl.u32 %v1714, 7
      %v1716 = vsub.s32 %v1222, %v1715
      %v1717 = vrot.slane %v972, %v1716
      %v1718 = vsel %vm1227, %v1717, %v1713
      %v1719 = vlaneseq
      %v1720 = vshrl.u32 %v1719, 7
      %v1721 = vsub.s32 %v1229, %v1720
      %v1722 = vrot.slane %v975, %v1721
      %v1723 = vsel %vm1234, %v1722, %v1718
      %v1724 = vlaneseq
      %v1725 = vshrl.u32 %v1724, 7
      %v1726 = vsub.s32 %v1236, %v1725
      %v1727 = vrot.slane %v978, %v1726
      %v1728 = vsel %vm1241, %v1727, %v1723
      %v1729 = vlaneseq
      %v1730 = vshrl.u32 %v1729, 7
      %v1731 = vsub.s32 %v1243, %v1730
      %v1732 = vrot.slane %v981, %v1731
      %v1733 = vsel %vm1248, %v1732, %v1728
      %v1734 = vlaneseq
      %v1735 = vshrl.u32 %v1734, 7
      %v1736 = vsub.s32 %v1250, %v1735
      %v1737 = vrot.slane %v984, %v1736
      %v1738 = vsel %vm1255, %v1737, %v1733
      %v1739 = vlaneseq
      %v1740 = vshrl.u32 %v1739, 7
      %v1741 = vsub.s32 %v1257, %v1740
      %v1742 = vrot.slane %v987, %v1741
      %v1743 = vsel %vm1262, %v1742, %v1738
      %v1744 = vlaneseq
      %v1745 = vshrl.u32 %v1744, 7
      %v1746 = vsub.s32 %v1264, %v1745
      %v1747 = vrot.slane %v990, %v1746
      %v1748 = vsel %vm1269, %v1747, %v1743
      %v1749 = vlaneseq
      %v1750 = vshrl.u32 %v1749, 7
      %v1751 = vsub.s32 %v1271, %v1750
      %v1752 = vrot.slane %v993, %v1751
      %v1753 = vsel %vm1276, %v1752, %v1748
      %v1754 = vlaneseq
      %v1755 = vshrl.u32 %v1754, 7
      %v1756 = vsub.s32 %v1278, %v1755
      %v1757 = vrot.slane %v996, %v1756
      %v1758 = vsel %vm1283, %v1757, %v1753
      %v1759 = vlaneseq
      %v1760 = vshrl.u32 %v1759, 7
      %v1761 = vsub.s32 %v1046, %v1760
      %v1762 = vrot.slane %v999, %v1761
      %v1763 = vlaneseq
      %v1764 = vshrl.u32 %v1763, 7
      %v1765 = vsub.s32 %v1180, %v1764
      %v1766 = vrot.slane %v1002, %v1765
      %v1767 = vsel %vm1185, %v1766, %v1762
      %v1768 = vlaneseq
      %v1769 = vshrl.u32 %v1768, 7
      %v1770 = vsub.s32 %v1187, %v1769
      %v1771 = vrot.slane %v1005, %v1770
      %v1772 = vsel %vm1192, %v1771, %v1767
      %v1773 = vlaneseq
      %v1774 = vshrl.u32 %v1773, 7
      %v1775 = vsub.s32 %v1194, %v1774
      %v1776 = vrot.slane %v1008, %v1775
      %v1777 = vsel %vm1199, %v1776, %v1772
      %v1778 = vlaneseq
      %v1779 = vshrl.u32 %v1778, 7
      %v1780 = vsub.s32 %v1201, %v1779
      %v1781 = vrot.slane %v1011, %v1780
      %v1782 = vsel %vm1206, %v1781, %v1777
      %v1783 = vlaneseq
      %v1784 = vshrl.u32 %v1783, 7
      %v1785 = vsub.s32 %v1208, %v1784
      %v1786 = vrot.slane %v1014, %v1785
      %v1787 = vsel %vm1213, %v1786, %v1782
      %v1788 = vlaneseq
      %v1789 = vshrl.u32 %v1788, 7
      %v1790 = vsub.s32 %v1215, %v1789
      %v1791 = vrot.slane %v1017, %v1790
      %v1792 = vsel %vm1220, %v1791, %v1787
      %v1793 = vlaneseq
      %v1794 = vshrl.u32 %v1793, 7
      %v1795 = vsub.s32 %v1222, %v1794
      %v1796 = vrot.slane %v1020, %v1795
      %v1797 = vsel %vm1227, %v1796, %v1792
      %v1798 = vlaneseq
      %v1799 = vshrl.u32 %v1798, 7
      %v1800 = vsub.s32 %v1229, %v1799
      %v1801 = vrot.slane %v1023, %v1800
      %v1802 = vsel %vm1234, %v1801, %v1797
      %v1803 = vlaneseq
      %v1804 = vshrl.u32 %v1803, 7
      %v1805 = vsub.s32 %v1236, %v1804
      %v1806 = vrot.slane %v1026, %v1805
      %v1807 = vsel %vm1241, %v1806, %v1802
      %v1808 = vlaneseq
      %v1809 = vshrl.u32 %v1808, 7
      %v1810 = vsub.s32 %v1243, %v1809
      %v1811 = vrot.slane %v1029, %v1810
      %v1812 = vsel %vm1248, %v1811, %v1807
      %v1813 = vlaneseq
      %v1814 = vshrl.u32 %v1813, 7
      %v1815 = vsub.s32 %v1250, %v1814
      %v1816 = vrot.slane %v1032, %v1815
      %v1817 = vsel %vm1255, %v1816, %v1812
      %v1818 = vlaneseq
      %v1819 = vshrl.u32 %v1818, 7
      %v1820 = vsub.s32 %v1257, %v1819
      %v1821 = vrot.slane %v1035, %v1820
      %v1822 = vsel %vm1262, %v1821, %v1817
      %v1823 = vlaneseq
      %v1824 = vshrl.u32 %v1823, 7
      %v1825 = vsub.s32 %v1264, %v1824
      %v1826 = vrot.slane %v1038, %v1825
      %v1827 = vsel %vm1269, %v1826, %v1822
      %v1828 = vlaneseq
      %v1829 = vshrl.u32 %v1828, 7
      %v1830 = vsub.s32 %v1271, %v1829
      %v1831 = vrot.slane %v1041, %v1830
      %v1832 = vsel %vm1276, %v1831, %v1827
      %v1833 = vlaneseq
      %v1834 = vshrl.u32 %v1833, 7
      %v1835 = vsub.s32 %v1278, %v1834
      %v1836 = vrot.slane %v1044, %v1835
      %v1837 = vsel %vm1283, %v1836, %v1832
      %vm1838 = vcmask 1041409
      %v1839 = vsel %vm1838, %v1363, %v1284
      %vm1840 = vcmask 1042434
      %v1841 = vsel %vm1840, %v1442, %v1839
      %vm1842 = vcmask 1043459
      %v1843 = vsel %vm1842, %v1521, %v1841
      %vm1844 = vcmask 1044484
      %v1845 = vsel %vm1844, %v1600, %v1843
      %vm1846 = vcmask 1045509
      %v1847 = vsel %vm1846, %v1679, %v1845
      %vm1848 = vcmask 1046534
      %v1849 = vsel %vm1848, %v1758, %v1847
      %vm1850 = vcmask 1047559
      %v1851 = vsel %vm1850, %v1837, %v1849
      %v1853 = vsel %vm1047, %v1851, -1e+30
      %1854 = vmax.xlane.f32.xlu0 %v1853
      %v1855 = vpop.xlane.xlu0 %1854
      %v1856 = vsub.f32 %v1853, %v1855
      %v1857 = vmul.f32 %v1856, 1.442695
      %v1858 = vpow.pop %v1857
      %1859 = vadd.xlane.f32.xlu0 %v1858
      %v1860 = vpop.xlane.xlu0 %1859
      %v1861 = vrcp.pop %v1860
      %v1862 = vmul.f32 %v1858, %v1861
      %1863 = vst [vmem:[#allocation9] sm:$0xff] %v1862
      %v1864 = vlaneseq
      %v1865 = vshrl.u32 %v1864, 7
      %v1866 = vsub.s32 0, %v1865
      %v1867 = vrot.slane %v1862, %v1866
      %1869 = vbcast.lane.b32.xlu0 %v1867, 256
      %v1870 = vpop.permute.xlu0 %1869
      %s1872 = sor.u32 256, 8
      %1873 = vbcast.lane.b32.xlu0 %v1867, %s1872
      %v1874 = vpop.permute.xlu0 %1873
      %s1876 = sor.u32 256, 16
      %1877 = vbcast.lane.b32.xlu0 %v1867, %s1876
      %v1878 = vpop.permute.xlu0 %1877
      %s1880 = sor.u32 256, 24
      %1881 = vbcast.lane.b32.xlu0 %v1867, %s1880
      %v1882 = vpop.permute.xlu0 %1881
      %s1884 = sor.u32 256, 32
      %1885 = vbcast.lane.b32.xlu0 %v1867, %s1884
      %v1886 = vpop.permute.xlu0 %1885
      %s1888 = sor.u32 256, 40
      %1889 = vbcast.lane.b32.xlu0 %v1867, %s1888
      %v1890 = vpop.permute.xlu0 %1889
      %s1892 = sor.u32 256, 48
      %1893 = vbcast.lane.b32.xlu0 %v1867, %s1892
      %v1894 = vpop.permute.xlu0 %1893
      %s1896 = sor.u32 256, 56
      %1897 = vbcast.lane.b32.xlu0 %v1867, %s1896
      %v1898 = vpop.permute.xlu0 %1897
      %s1900 = sor.u32 256, 64
      %1901 = vbcast.lane.b32.xlu0 %v1867, %s1900
      %v1902 = vpop.permute.xlu0 %1901
      %s1904 = sor.u32 256, 72
      %1905 = vbcast.lane.b32.xlu0 %v1867, %s1904
      %v1906 = vpop.permute.xlu0 %1905
      %s1908 = sor.u32 256, 80
      %1909 = vbcast.lane.b32.xlu0 %v1867, %s1908
      %v1910 = vpop.permute.xlu0 %1909
      %s1912 = sor.u32 256, 88
      %1913 = vbcast.lane.b32.xlu0 %v1867, %s1912
      %v1914 = vpop.permute.xlu0 %1913
      %s1916 = sor.u32 256, 96
      %1917 = vbcast.lane.b32.xlu0 %v1867, %s1916
      %v1918 = vpop.permute.xlu0 %1917
      %s1920 = sor.u32 256, 104
      %1921 = vbcast.lane.b32.xlu0 %v1867, %s1920
      %v1922 = vpop.permute.xlu0 %1921
      %s1924 = sor.u32 256, 112
      %1925 = vbcast.lane.b32.xlu0 %v1867, %s1924
      %v1926 = vpop.permute.xlu0 %1925
      %s1928 = sor.u32 256, 120
      %1929 = vbcast.lane.b32.xlu0 %v1867, %s1928
      %v1930 = vpop.permute.xlu0 %1929
      %v1931 = vlaneseq
      %v1932 = vshrl.u32 %v1931, 7
      %v1933 = vsub.s32 1, %v1932
      %v1934 = vrot.slane %v1862, %v1933
      %1936 = vbcast.lane.b32.xlu0 %v1934, 256
      %v1937 = vpop.permute.xlu0 %1936
      %s1939 = sor.u32 256, 8
      %1940 = vbcast.lane.b32.xlu0 %v1934, %s1939
      %v1941 = vpop.permute.xlu0 %1940
      %s1943 = sor.u32 256, 16
      %1944 = vbcast.lane.b32.xlu0 %v1934, %s1943
      %v1945 = vpop.permute.xlu0 %1944
      %s1947 = sor.u32 256, 24
      %1948 = vbcast.lane.b32.xlu0 %v1934, %s1947
      %v1949 = vpop.permute.xlu0 %1948
      %s1951 = sor.u32 256, 32
      %1952 = vbcast.lane.b32.xlu0 %v1934, %s1951
      %v1953 = vpop.permute.xlu0 %1952
      %s1955 = sor.u32 256, 40
      %1956 = vbcast.lane.b32.xlu0 %v1934, %s1955
      %v1957 = vpop.permute.xlu0 %1956
      %s1959 = sor.u32 256, 48
      %1960 = vbcast.lane.b32.xlu0 %v1934, %s1959
      %v1961 = vpop.permute.xlu0 %1960
      %s1963 = sor.u32 256, 56
      %1964 = vbcast.lane.b32.xlu0 %v1934, %s1963
      %v1965 = vpop.permute.xlu0 %1964
      %s1967 = sor.u32 256, 64
      %1968 = vbcast.lane.b32.xlu0 %v1934, %s1967
      %v1969 = vpop.permute.xlu0 %1968
      %s1971 = sor.u32 256, 72
      %1972 = vbcast.lane.b32.xlu0 %v1934, %s1971
      %v1973 = vpop.permute.xlu0 %1972
      %s1975 = sor.u32 256, 80
      %1976 = vbcast.lane.b32.xlu0 %v1934, %s1975
      %v1977 = vpop.permute.xlu0 %1976
      %s1979 = sor.u32 256, 88
      %1980 = vbcast.lane.b32.xlu0 %v1934, %s1979
      %v1981 = vpop.permute.xlu0 %1980
      %s1983 = sor.u32 256, 96
      %1984 = vbcast.lane.b32.xlu0 %v1934, %s1983
      %v1985 = vpop.permute.xlu0 %1984
      %s1987 = sor.u32 256, 104
      %1988 = vbcast.lane.b32.xlu0 %v1934, %s1987
      %v1989 = vpop.permute.xlu0 %1988
      %s1991 = sor.u32 256, 112
      %1992 = vbcast.lane.b32.xlu0 %v1934, %s1991
      %v1993 = vpop.permute.xlu0 %1992
      %s1995 = sor.u32 256, 120
      %1996 = vbcast.lane.b32.xlu0 %v1934, %s1995
      %v1997 = vpop.permute.xlu0 %1996
      %v1998 = vlaneseq
      %v1999 = vshrl.u32 %v1998, 7
      %v2000 = vsub.s32 2, %v1999
      %v2001 = vrot.slane %v1862, %v2000
      %2003 = vbcast.lane.b32.xlu0 %v2001, 256
      %v2004 = vpop.permute.xlu0 %2003
      %s2006 = sor.u32 256, 8
      %2007 = vbcast.lane.b32.xlu0 %v2001, %s2006
      %v2008 = vpop.permute.xlu0 %2007
      %s2010 = sor.u32 256, 16
      %2011 = vbcast.lane.b32.xlu0 %v2001, %s2010
      %v2012 = vpop.permute.xlu0 %2011
      %s2014 = sor.u32 256, 24
      %2015 = vbcast.lane.b32.xlu0 %v2001, %s2014
      %v2016 = vpop.permute.xlu0 %2015
      %s2018 = sor.u32 256, 32
      %2019 = vbcast.lane.b32.xlu0 %v2001, %s2018
      %v2020 = vpop.permute.xlu0 %2019
      %s2022 = sor.u32 256, 40
      %2023 = vbcast.lane.b32.xlu0 %v2001, %s2022
      %v2024 = vpop.permute.xlu0 %2023
      %s2026 = sor.u32 256, 48
      %2027 = vbcast.lane.b32.xlu0 %v2001, %s2026
      %v2028 = vpop.permute.xlu0 %2027
      %s2030 = sor.u32 256, 56
      %2031 = vbcast.lane.b32.xlu0 %v2001, %s2030
      %v2032 = vpop.permute.xlu0 %2031
      %s2034 = sor.u32 256, 64
      %2035 = vbcast.lane.b32.xlu0 %v2001, %s2034
      %v2036 = vpop.permute.xlu0 %2035
      %s2038 = sor.u32 256, 72
      %2039 = vbcast.lane.b32.xlu0 %v2001, %s2038
      %v2040 = vpop.permute.xlu0 %2039
      %s2042 = sor.u32 256, 80
      %2043 = vbcast.lane.b32.xlu0 %v2001, %s2042
      %v2044 = vpop.permute.xlu0 %2043
      %s2046 = sor.u32 256, 88
      %2047 = vbcast.lane.b32.xlu0 %v2001, %s2046
      %v2048 = vpop.permute.xlu0 %2047
      %s2050 = sor.u32 256, 96
      %2051 = vbcast.lane.b32.xlu0 %v2001, %s2050
      %v2052 = vpop.permute.xlu0 %2051
      %s2054 = sor.u32 256, 104
      %2055 = vbcast.lane.b32.xlu0 %v2001, %s2054
      %v2056 = vpop.permute.xlu0 %2055
      %s2058 = sor.u32 256, 112
      %2059 = vbcast.lane.b32.xlu0 %v2001, %s2058
      %v2060 = vpop.permute.xlu0 %2059
      %s2062 = sor.u32 256, 120
      %2063 = vbcast.lane.b32.xlu0 %v2001, %s2062
      %v2064 = vpop.permute.xlu0 %2063
      %v2065 = vlaneseq
      %v2066 = vshrl.u32 %v2065, 7
      %v2067 = vsub.s32 3, %v2066
      %v2068 = vrot.slane %v1862, %v2067
      %2070 = vbcast.lane.b32.xlu0 %v2068, 256
      %v2071 = vpop.permute.xlu0 %2070
      %s2073 = sor.u32 256, 8
      %2074 = vbcast.lane.b32.xlu0 %v2068, %s2073
      %v2075 = vpop.permute.xlu0 %2074
      %s2077 = sor.u32 256, 16
      %2078 = vbcast.lane.b32.xlu0 %v2068, %s2077
      %v2079 = vpop.permute.xlu0 %2078
      %s2081 = sor.u32 256, 24
      %2082 = vbcast.lane.b32.xlu0 %v2068, %s2081
      %v2083 = vpop.permute.xlu0 %2082
      %s2085 = sor.u32 256, 32
      %2086 = vbcast.lane.b32.xlu0 %v2068, %s2085
      %v2087 = vpop.permute.xlu0 %2086
      %s2089 = sor.u32 256, 40
      %2090 = vbcast.lane.b32.xlu0 %v2068, %s2089
      %v2091 = vpop.permute.xlu0 %2090
      %s2093 = sor.u32 256, 48
      %2094 = vbcast.lane.b32.xlu0 %v2068, %s2093
      %v2095 = vpop.permute.xlu0 %2094
      %s2097 = sor.u32 256, 56
      %2098 = vbcast.lane.b32.xlu0 %v2068, %s2097
      %v2099 = vpop.permute.xlu0 %2098
      %s2101 = sor.u32 256, 64
      %2102 = vbcast.lane.b32.xlu0 %v2068, %s2101
      %v2103 = vpop.permute.xlu0 %2102
      %s2105 = sor.u32 256, 72
      %2106 = vbcast.lane.b32.xlu0 %v2068, %s2105
      %v2107 = vpop.permute.xlu0 %2106
      %s2109 = sor.u32 256, 80
      %2110 = vbcast.lane.b32.xlu0 %v2068, %s2109
      %v2111 = vpop.permute.xlu0 %2110
      %s2113 = sor.u32 256, 88
      %2114 = vbcast.lane.b32.xlu0 %v2068, %s2113
      %v2115 = vpop.permute.xlu0 %2114
      %s2117 = sor.u32 256, 96
      %2118 = vbcast.lane.b32.xlu0 %v2068, %s2117
      %v2119 = vpop.permute.xlu0 %2118
      %s2121 = sor.u32 256, 104
      %2122 = vbcast.lane.b32.xlu0 %v2068, %s2121
      %v2123 = vpop.permute.xlu0 %2122
      %s2125 = sor.u32 256, 112
      %2126 = vbcast.lane.b32.xlu0 %v2068, %s2125
      %v2127 = vpop.permute.xlu0 %2126
      %s2129 = sor.u32 256, 120
      %2130 = vbcast.lane.b32.xlu0 %v2068, %s2129
      %v2131 = vpop.permute.xlu0 %2130
      %v2132 = vlaneseq
      %v2133 = vshrl.u32 %v2132, 7
      %v2134 = vsub.s32 4, %v2133
      %v2135 = vrot.slane %v1862, %v2134
      %2137 = vbcast.lane.b32.xlu0 %v2135, 256
      %v2138 = vpop.permute.xlu0 %2137
      %s2140 = sor.u32 256, 8
      %2141 = vbcast.lane.b32.xlu0 %v2135, %s2140
      %v2142 = vpop.permute.xlu0 %2141
      %s2144 = sor.u32 256, 16
      %2145 = vbcast.lane.b32.xlu0 %v2135, %s2144
      %v2146 = vpop.permute.xlu0 %2145
      %s2148 = sor.u32 256, 24
      %2149 = vbcast.lane.b32.xlu0 %v2135, %s2148
      %v2150 = vpop.permute.xlu0 %2149
      %s2152 = sor.u32 256, 32
      %2153 = vbcast.lane.b32.xlu0 %v2135, %s2152
      %v2154 = vpop.permute.xlu0 %2153
      %s2156 = sor.u32 256, 40
      %2157 = vbcast.lane.b32.xlu0 %v2135, %s2156
      %v2158 = vpop.permute.xlu0 %2157
      %s2160 = sor.u32 256, 48
      %2161 = vbcast.lane.b32.xlu0 %v2135, %s2160
      %v2162 = vpop.permute.xlu0 %2161
      %s2164 = sor.u32 256, 56
      %2165 = vbcast.lane.b32.xlu0 %v2135, %s2164
      %v2166 = vpop.permute.xlu0 %2165
      %s2168 = sor.u32 256, 64
      %2169 = vbcast.lane.b32.xlu0 %v2135, %s2168
      %v2170 = vpop.permute.xlu0 %2169
      %s2172 = sor.u32 256, 72
      %2173 = vbcast.lane.b32.xlu0 %v2135, %s2172
      %v2174 = vpop.permute.xlu0 %2173
      %s2176 = sor.u32 256, 80
      %2177 = vbcast.lane.b32.xlu0 %v2135, %s2176
      %v2178 = vpop.permute.xlu0 %2177
      %s2180 = sor.u32 256, 88
      %2181 = vbcast.lane.b32.xlu0 %v2135, %s2180
      %v2182 = vpop.permute.xlu0 %2181
      %s2184 = sor.u32 256, 96
      %2185 = vbcast.lane.b32.xlu0 %v2135, %s2184
      %v2186 = vpop.permute.xlu0 %2185
      %s2188 = sor.u32 256, 104
      %2189 = vbcast.lane.b32.xlu0 %v2135, %s2188
      %v2190 = vpop.permute.xlu0 %2189
      %s2192 = sor.u32 256, 112
      %2193 = vbcast.lane.b32.xlu0 %v2135, %s2192
      %v2194 = vpop.permute.xlu0 %2193
      %s2196 = sor.u32 256, 120
      %2197 = vbcast.lane.b32.xlu0 %v2135, %s2196
      %v2198 = vpop.permute.xlu0 %2197
      %v2199 = vlaneseq
      %v2200 = vshrl.u32 %v2199, 7
      %v2201 = vsub.s32 5, %v2200
      %v2202 = vrot.slane %v1862, %v2201
      %2204 = vbcast.lane.b32.xlu0 %v2202, 256
      %v2205 = vpop.permute.xlu0 %2204
      %s2207 = sor.u32 256, 8
      %2208 = vbcast.lane.b32.xlu0 %v2202, %s2207
      %v2209 = vpop.permute.xlu0 %2208
      %s2211 = sor.u32 256, 16
      %2212 = vbcast.lane.b32.xlu0 %v2202, %s2211
      %v2213 = vpop.permute.xlu0 %2212
      %s2215 = sor.u32 256, 24
      %2216 = vbcast.lane.b32.xlu0 %v2202, %s2215
      %v2217 = vpop.permute.xlu0 %2216
      %s2219 = sor.u32 256, 32
      %2220 = vbcast.lane.b32.xlu0 %v2202, %s2219
      %v2221 = vpop.permute.xlu0 %2220
      %s2223 = sor.u32 256, 40
      %2224 = vbcast.lane.b32.xlu0 %v2202, %s2223
      %v2225 = vpop.permute.xlu0 %2224
      %s2227 = sor.u32 256, 48
      %2228 = vbcast.lane.b32.xlu0 %v2202, %s2227
      %v2229 = vpop.permute.xlu0 %2228
      %s2231 = sor.u32 256, 56
      %2232 = vbcast.lane.b32.xlu0 %v2202, %s2231
      %v2233 = vpop.permute.xlu0 %2232
      %s2235 = sor.u32 256, 64
      %2236 = vbcast.lane.b32.xlu0 %v2202, %s2235
      %v2237 = vpop.permute.xlu0 %2236
      %s2239 = sor.u32 256, 72
      %2240 = vbcast.lane.b32.xlu0 %v2202, %s2239
      %v2241 = vpop.permute.xlu0 %2240
      %s2243 = sor.u32 256, 80
      %2244 = vbcast.lane.b32.xlu0 %v2202, %s2243
      %v2245 = vpop.permute.xlu0 %2244
      %s2247 = sor.u32 256, 88
      %2248 = vbcast.lane.b32.xlu0 %v2202, %s2247
      %v2249 = vpop.permute.xlu0 %2248
      %s2251 = sor.u32 256, 96
      %2252 = vbcast.lane.b32.xlu0 %v2202, %s2251
      %v2253 = vpop.permute.xlu0 %2252
      %s2255 = sor.u32 256, 104
      %2256 = vbcast.lane.b32.xlu0 %v2202, %s2255
      %v2257 = vpop.permute.xlu0 %2256
      %s2259 = sor.u32 256, 112
      %2260 = vbcast.lane.b32.xlu0 %v2202, %s2259
      %v2261 = vpop.permute.xlu0 %2260
      %s2263 = sor.u32 256, 120
      %2264 = vbcast.lane.b32.xlu0 %v2202, %s2263
      %v2265 = vpop.permute.xlu0 %2264
      %v2266 = vlaneseq
      %v2267 = vshrl.u32 %v2266, 7
      %v2268 = vsub.s32 6, %v2267
      %v2269 = vrot.slane %v1862, %v2268
      %2271 = vbcast.lane.b32.xlu0 %v2269, 256
      %v2272 = vpop.permute.xlu0 %2271
      %s2274 = sor.u32 256, 8
      %2275 = vbcast.lane.b32.xlu0 %v2269, %s2274
      %v2276 = vpop.permute.xlu0 %2275
      %s2278 = sor.u32 256, 16
      %2279 = vbcast.lane.b32.xlu0 %v2269, %s2278
      %v2280 = vpop.permute.xlu0 %2279
      %s2282 = sor.u32 256, 24
      %2283 = vbcast.lane.b32.xlu0 %v2269, %s2282
      %v2284 = vpop.permute.xlu0 %2283
      %s2286 = sor.u32 256, 32
      %2287 = vbcast.lane.b32.xlu0 %v2269, %s2286
      %v2288 = vpop.permute.xlu0 %2287
      %s2290 = sor.u32 256, 40
      %2291 = vbcast.lane.b32.xlu0 %v2269, %s2290
      %v2292 = vpop.permute.xlu0 %2291
      %s2294 = sor.u32 256, 48
      %2295 = vbcast.lane.b32.xlu0 %v2269, %s2294
      %v2296 = vpop.permute.xlu0 %2295
      %s2298 = sor.u32 256, 56
      %2299 = vbcast.lane.b32.xlu0 %v2269, %s2298
      %v2300 = vpop.permute.xlu0 %2299
      %s2302 = sor.u32 256, 64
      %2303 = vbcast.lane.b32.xlu0 %v2269, %s2302
      %v2304 = vpop.permute.xlu0 %2303
      %s2306 = sor.u32 256, 72
      %2307 = vbcast.lane.b32.xlu0 %v2269, %s2306
      %v2308 = vpop.permute.xlu0 %2307
      %s2310 = sor.u32 256, 80
      %2311 = vbcast.lane.b32.xlu0 %v2269, %s2310
      %v2312 = vpop.permute.xlu0 %2311
      %s2314 = sor.u32 256, 88
      %2315 = vbcast.lane.b32.xlu0 %v2269, %s2314
      %v2316 = vpop.permute.xlu0 %2315
      %s2318 = sor.u32 256, 96
      %2319 = vbcast.lane.b32.xlu0 %v2269, %s2318
      %v2320 = vpop.permute.xlu0 %2319
      %s2322 = sor.u32 256, 104
      %2323 = vbcast.lane.b32.xlu0 %v2269, %s2322
      %v2324 = vpop.permute.xlu0 %2323
      %s2326 = sor.u32 256, 112
      %2327 = vbcast.lane.b32.xlu0 %v2269, %s2326
      %v2328 = vpop.permute.xlu0 %2327
      %s2330 = sor.u32 256, 120
      %2331 = vbcast.lane.b32.xlu0 %v2269, %s2330
      %v2332 = vpop.permute.xlu0 %2331
      %v2333 = vlaneseq
      %v2334 = vshrl.u32 %v2333, 7
      %v2335 = vsub.s32 7, %v2334
      %v2336 = vrot.slane %v1862, %v2335
      %2338 = vbcast.lane.b32.xlu0 %v2336, 256
      %v2339 = vpop.permute.xlu0 %2338
      %s2341 = sor.u32 256, 8
      %2342 = vbcast.lane.b32.xlu0 %v2336, %s2341
      %v2343 = vpop.permute.xlu0 %2342
      %s2345 = sor.u32 256, 16
      %2346 = vbcast.lane.b32.xlu0 %v2336, %s2345
      %v2347 = vpop.permute.xlu0 %2346
      %s2349 = sor.u32 256, 24
      %2350 = vbcast.lane.b32.xlu0 %v2336, %s2349
      %v2351 = vpop.permute.xlu0 %2350
      %s2353 = sor.u32 256, 32
      %2354 = vbcast.lane.b32.xlu0 %v2336, %s2353
      %v2355 = vpop.permute.xlu0 %2354
      %s2357 = sor.u32 256, 40
      %2358 = vbcast.lane.b32.xlu0 %v2336, %s2357
      %v2359 = vpop.permute.xlu0 %2358
      %s2361 = sor.u32 256, 48
      %2362 = vbcast.lane.b32.xlu0 %v2336, %s2361
      %v2363 = vpop.permute.xlu0 %2362
      %s2365 = sor.u32 256, 56
      %2366 = vbcast.lane.b32.xlu0 %v2336, %s2365
      %v2367 = vpop.permute.xlu0 %2366
      %s2369 = sor.u32 256, 64
      %2370 = vbcast.lane.b32.xlu0 %v2336, %s2369
      %v2371 = vpop.permute.xlu0 %2370
      %s2373 = sor.u32 256, 72
      %2374 = vbcast.lane.b32.xlu0 %v2336, %s2373
      %v2375 = vpop.permute.xlu0 %2374
      %s2377 = sor.u32 256, 80
      %2378 = vbcast.lane.b32.xlu0 %v2336, %s2377
      %v2379 = vpop.permute.xlu0 %2378
      %s2381 = sor.u32 256, 88
      %2382 = vbcast.lane.b32.xlu0 %v2336, %s2381
      %v2383 = vpop.permute.xlu0 %2382
      %s2385 = sor.u32 256, 96
      %2386 = vbcast.lane.b32.xlu0 %v2336, %s2385
      %v2387 = vpop.permute.xlu0 %2386
      %s2389 = sor.u32 256, 104
      %2390 = vbcast.lane.b32.xlu0 %v2336, %s2389
      %v2391 = vpop.permute.xlu0 %2390
      %s2393 = sor.u32 256, 112
      %2394 = vbcast.lane.b32.xlu0 %v2336, %s2393
      %v2395 = vpop.permute.xlu0 %2394
      %s2397 = sor.u32 256, 120
      %2398 = vbcast.lane.b32.xlu0 %v2336, %s2397
      %v2399 = vpop.permute.xlu0 %2398
      %v2400 = vmul.f32 %v1870, %v40
      %v2401 = vmul.f32 %v1874, %v41
      %v2402 = vmul.f32 %v1878, %v42
      %v2403 = vmul.f32 %v1882, %v43
      %v2404 = vmul.f32 %v1886, %v44
      %v2405 = vmul.f32 %v1890, %v45
      %v2406 = vmul.f32 %v1894, %v46
      %v2407 = vmul.f32 %v1898, %v47
      %v2408 = vmul.f32 %v1902, %v48
      %v2409 = vmul.f32 %v1906, %v49
      %v2410 = vmul.f32 %v1910, %v50
      %v2411 = vmul.f32 %v1914, %v51
      %v2412 = vmul.f32 %v1918, %v52
      %v2413 = vmul.f32 %v1922, %v53
      %v2414 = vmul.f32 %v1926, %v54
      %v2415 = vmul.f32 %v1930, %v55
      %v2416 = vmul.f32 %v1937, %v56
      %v2417 = vmul.f32 %v1941, %v57
      %v2418 = vmul.f32 %v1945, %v58
      %v2419 = vmul.f32 %v1949, %v59
      %v2420 = vmul.f32 %v1953, %v60
      %v2421 = vmul.f32 %v1957, %v61
      %v2422 = vmul.f32 %v1961, %v62
      %v2423 = vmul.f32 %v1965, %v63
      %v2424 = vmul.f32 %v1969, %v64
      %v2425 = vmul.f32 %v1973, %v65
      %v2426 = vmul.f32 %v1977, %v66
      %v2427 = vmul.f32 %v1981, %v67
      %v2428 = vmul.f32 %v1985, %v68
      %v2429 = vmul.f32 %v1989, %v69
      %v2430 = vmul.f32 %v1993, %v70
      %v2431 = vmul.f32 %v1997, %v71
      %v2432 = vmul.f32 %v2004, %v72
      %v2433 = vmul.f32 %v2008, %v73
      %v2434 = vmul.f32 %v2012, %v74
      %v2435 = vmul.f32 %v2016, %v75
      %v2436 = vmul.f32 %v2020, %v76
      %v2437 = vmul.f32 %v2024, %v77
      %v2438 = vmul.f32 %v2028, %v78
      %v2439 = vmul.f32 %v2032, %v79
      %v2440 = vmul.f32 %v2036, %v80
      %v2441 = vmul.f32 %v2040, %v81
      %v2442 = vmul.f32 %v2044, %v82
      %v2443 = vmul.f32 %v2048, %v83
      %v2444 = vmul.f32 %v2052, %v84
      %v2445 = vmul.f32 %v2056, %v85
      %v2446 = vmul.f32 %v2060, %v86
      %v2447 = vmul.f32 %v2064, %v87
      %v2448 = vmul.f32 %v2071, %v88
      %v2449 = vmul.f32 %v2075, %v89
      %v2450 = vmul.f32 %v2079, %v90
      %v2451 = vmul.f32 %v2083, %v91
      %v2452 = vmul.f32 %v2087, %v92
      %v2453 = vmul.f32 %v2091, %v93
      %v2454 = vmul.f32 %v2095, %v94
      %v2455 = vmul.f32 %v2099, %v95
      %v2456 = vmul.f32 %v2103, %v96
      %v2457 = vmul.f32 %v2107, %v97
      %v2458 = vmul.f32 %v2111, %v98
      %v2459 = vmul.f32 %v2115, %v99
      %v2460 = vmul.f32 %v2119, %v100
      %v2461 = vmul.f32 %v2123, %v101
      %v2462 = vmul.f32 %v2127, %v102
      %v2463 = vmul.f32 %v2131, %v103
      %v2464 = vmul.f32 %v2138, %v104
      %v2465 = vmul.f32 %v2142, %v105
      %v2466 = vmul.f32 %v2146, %v106
      %v2467 = vmul.f32 %v2150, %v107
      %v2468 = vmul.f32 %v2154, %v108
      %v2469 = vmul.f32 %v2158, %v109
      %v2470 = vmul.f32 %v2162, %v110
      %v2471 = vmul.f32 %v2166, %v111
      %v2472 = vmul.f32 %v2170, %v112
      %v2473 = vmul.f32 %v2174, %v113
      %v2474 = vmul.f32 %v2178, %v114
      %v2475 = vmul.f32 %v2182, %v115
      %v2476 = vmul.f32 %v2186, %v116
      %v2477 = vmul.f32 %v2190, %v117
      %v2478 = vmul.f32 %v2194, %v118
      %v2479 = vmul.f32 %v2198, %v119
      %v2480 = vmul.f32 %v2205, %v120
      %v2481 = vmul.f32 %v2209, %v121
      %v2482 = vmul.f32 %v2213, %v122
      %v2483 = vmul.f32 %v2217, %v123
      %v2484 = vmul.f32 %v2221, %v124
      %v2485 = vmul.f32 %v2225, %v125
      %v2486 = vmul.f32 %v2229, %v126
      %v2487 = vmul.f32 %v2233, %v127
      %v2488 = vmul.f32 %v2237, %v128
      %v2489 = vmul.f32 %v2241, %v129
      %v2490 = vmul.f32 %v2245, %v130
      %v2491 = vmul.f32 %v2249, %v131
      %v2492 = vmul.f32 %v2253, %v132
      %v2493 = vmul.f32 %v2257, %v133
      %v2494 = vmul.f32 %v2261, %v134
      %v2495 = vmul.f32 %v2265, %v135
      %v2496 = vmul.f32 %v2272, %v136
      %v2497 = vmul.f32 %v2276, %v137
      %v2498 = vmul.f32 %v2280, %v138
      %v2499 = vmul.f32 %v2284, %v139
      %v2500 = vmul.f32 %v2288, %v140
      %v2501 = vmul.f32 %v2292, %v141
      %v2502 = vmul.f32 %v2296, %v142
      %v2503 = vmul.f32 %v2300, %v143
      %v2504 = vmul.f32 %v2304, %v144
      %v2505 = vmul.f32 %v2308, %v145
      %v2506 = vmul.f32 %v2312, %v146
      %v2507 = vmul.f32 %v2316, %v147
      %v2508 = vmul.f32 %v2320, %v148
      %v2509 = vmul.f32 %v2324, %v149
      %v2510 = vmul.f32 %v2328, %v150
      %v2511 = vmul.f32 %v2332, %v151
      %v2512 = vmul.f32 %v2339, %v152
      %v2513 = vmul.f32 %v2343, %v153
      %v2514 = vmul.f32 %v2347, %v154
      %v2515 = vmul.f32 %v2351, %v155
      %v2516 = vmul.f32 %v2355, %v156
      %v2517 = vmul.f32 %v2359, %v157
      %v2518 = vmul.f32 %v2363, %v158
      %v2519 = vmul.f32 %v2367, %v159
      %v2520 = vmul.f32 %v2371, %v160
      %v2521 = vmul.f32 %v2375, %v161
      %v2522 = vmul.f32 %v2379, %v162
      %v2523 = vmul.f32 %v2383, %v163
      %v2524 = vmul.f32 %v2387, %v164
      %v2525 = vmul.f32 %v2391, %v165
      %v2526 = vmul.f32 %v2395, %v166
      %v2527 = vmul.f32 %v2399, %v167
      %v2528 = vsel %vm177, %v2400, 0.0
      %v2529 = vsel %vm177, %v2401, 0.0
      %v2530 = vadd.f32 %v2528, %v2529
      %v2531 = vsel %vm177, %v2402, 0.0
      %v2532 = vadd.f32 %v2530, %v2531
      %v2533 = vsel %vm177, %v2403, 0.0
      %v2534 = vadd.f32 %v2532, %v2533
      %v2535 = vsel %vm177, %v2404, 0.0
      %v2536 = vadd.f32 %v2534, %v2535
      %v2537 = vsel %vm177, %v2405, 0.0
      %v2538 = vadd.f32 %v2536, %v2537
      %v2539 = vsel %vm177, %v2406, 0.0
      %v2540 = vadd.f32 %v2538, %v2539
      %v2541 = vsel %vm177, %v2407, 0.0
      %v2542 = vadd.f32 %v2540, %v2541
      %v2543 = vsel %vm177, %v2408, 0.0
      %v2544 = vadd.f32 %v2542, %v2543
      %v2545 = vsel %vm177, %v2409, 0.0
      %v2546 = vadd.f32 %v2544, %v2545
      %v2547 = vsel %vm177, %v2410, 0.0
      %v2548 = vadd.f32 %v2546, %v2547
      %v2549 = vsel %vm177, %v2411, 0.0
      %v2550 = vadd.f32 %v2548, %v2549
      %v2551 = vsel %vm177, %v2412, 0.0
      %v2552 = vadd.f32 %v2550, %v2551
      %v2553 = vsel %vm177, %v2413, 0.0
      %v2554 = vadd.f32 %v2552, %v2553
      %v2555 = vsel %vm177, %v2414, 0.0
      %v2556 = vadd.f32 %v2554, %v2555
      %v2557 = vsel %vm177, %v2415, 0.0
      %v2558 = vadd.f32 %v2556, %v2557
      %v2559 = vrot.slane %v2558, 4
      %v2560 = vadd.f32 %v2558, %v2559
      %v2561 = vrot.slane %v2560, 2
      %v2562 = vadd.f32 %v2560, %v2561
      %v2563 = vrot.slane %v2562, 1
      %v2564 = vadd.f32 %v2562, %v2563
      %v2565 = vsel %vm177, %v2416, 0.0
      %v2566 = vsel %vm177, %v2417, 0.0
      %v2567 = vadd.f32 %v2565, %v2566
      %v2568 = vsel %vm177, %v2418, 0.0
      %v2569 = vadd.f32 %v2567, %v2568
      %v2570 = vsel %vm177, %v2419, 0.0
      %v2571 = vadd.f32 %v2569, %v2570
      %v2572 = vsel %vm177, %v2420, 0.0
      %v2573 = vadd.f32 %v2571, %v2572
      %v2574 = vsel %vm177, %v2421, 0.0
      %v2575 = vadd.f32 %v2573, %v2574
      %v2576 = vsel %vm177, %v2422, 0.0
      %v2577 = vadd.f32 %v2575, %v2576
      %v2578 = vsel %vm177, %v2423, 0.0
      %v2579 = vadd.f32 %v2577, %v2578
      %v2580 = vsel %vm177, %v2424, 0.0
      %v2581 = vadd.f32 %v2579, %v2580
      %v2582 = vsel %vm177, %v2425, 0.0
      %v2583 = vadd.f32 %v2581, %v2582
      %v2584 = vsel %vm177, %v2426, 0.0
      %v2585 = vadd.f32 %v2583, %v2584
      %v2586 = vsel %vm177, %v2427, 0.0
      %v2587 = vadd.f32 %v2585, %v2586
      %v2588 = vsel %vm177, %v2428, 0.0
      %v2589 = vadd.f32 %v2587, %v2588
      %v2590 = vsel %vm177, %v2429, 0.0
      %v2591 = vadd.f32 %v2589, %v2590
      %v2592 = vsel %vm177, %v2430, 0.0
      %v2593 = vadd.f32 %v2591, %v2592
      %v2594 = vsel %vm177, %v2431, 0.0
      %v2595 = vadd.f32 %v2593, %v2594
      %v2596 = vrot.slane %v2595, 4
      %v2597 = vadd.f32 %v2595, %v2596
      %v2598 = vrot.slane %v2597, 2
      %v2599 = vadd.f32 %v2597, %v2598
      %v2600 = vrot.slane %v2599, 1
      %v2601 = vadd.f32 %v2599, %v2600
      %v2602 = vsel %vm177, %v2432, 0.0
      %v2603 = vsel %vm177, %v2433, 0.0
      %v2604 = vadd.f32 %v2602, %v2603
      %v2605 = vsel %vm177, %v2434, 0.0
      %v2606 = vadd.f32 %v2604, %v2605
      %v2607 = vsel %vm177, %v2435, 0.0
      %v2608 = vadd.f32 %v2606, %v2607
      %v2609 = vsel %vm177, %v2436, 0.0
      %v2610 = vadd.f32 %v2608, %v2609
      %v2611 = vsel %vm177, %v2437, 0.0
      %v2612 = vadd.f32 %v2610, %v2611
      %v2613 = vsel %vm177, %v2438, 0.0
      %v2614 = vadd.f32 %v2612, %v2613
      %v2615 = vsel %vm177, %v2439, 0.0
      %v2616 = vadd.f32 %v2614, %v2615
      %v2617 = vsel %vm177, %v2440, 0.0
      %v2618 = vadd.f32 %v2616, %v2617
      %v2619 = vsel %vm177, %v2441, 0.0
      %v2620 = vadd.f32 %v2618, %v2619
      %v2621 = vsel %vm177, %v2442, 0.0
      %v2622 = vadd.f32 %v2620, %v2621
      %v2623 = vsel %vm177, %v2443, 0.0
      %v2624 = vadd.f32 %v2622, %v2623
      %v2625 = vsel %vm177, %v2444, 0.0
      %v2626 = vadd.f32 %v2624, %v2625
      %v2627 = vsel %vm177, %v2445, 0.0
      %v2628 = vadd.f32 %v2626, %v2627
      %v2629 = vsel %vm177, %v2446, 0.0
      %v2630 = vadd.f32 %v2628, %v2629
      %v2631 = vsel %vm177, %v2447, 0.0
      %v2632 = vadd.f32 %v2630, %v2631
      %v2633 = vrot.slane %v2632, 4
      %v2634 = vadd.f32 %v2632, %v2633
      %v2635 = vrot.slane %v2634, 2
      %v2636 = vadd.f32 %v2634, %v2635
      %v2637 = vrot.slane %v2636, 1
      %v2638 = vadd.f32 %v2636, %v2637
      %v2639 = vsel %vm177, %v2448, 0.0
      %v2640 = vsel %vm177, %v2449, 0.0
      %v2641 = vadd.f32 %v2639, %v2640
      %v2642 = vsel %vm177, %v2450, 0.0
      %v2643 = vadd.f32 %v2641, %v2642
      %v2644 = vsel %vm177, %v2451, 0.0
      %v2645 = vadd.f32 %v2643, %v2644
      %v2646 = vsel %vm177, %v2452, 0.0
      %v2647 = vadd.f32 %v2645, %v2646
      %v2648 = vsel %vm177, %v2453, 0.0
      %v2649 = vadd.f32 %v2647, %v2648
      %v2650 = vsel %vm177, %v2454, 0.0
      %v2651 = vadd.f32 %v2649, %v2650
      %v2652 = vsel %vm177, %v2455, 0.0
      %v2653 = vadd.f32 %v2651, %v2652
      %v2654 = vsel %vm177, %v2456, 0.0
      %v2655 = vadd.f32 %v2653, %v2654
      %v2656 = vsel %vm177, %v2457, 0.0
      %v2657 = vadd.f32 %v2655, %v2656
      %v2658 = vsel %vm177, %v2458, 0.0
      %v2659 = vadd.f32 %v2657, %v2658
      %v2660 = vsel %vm177, %v2459, 0.0
      %v2661 = vadd.f32 %v2659, %v2660
      %v2662 = vsel %vm177, %v2460, 0.0
      %v2663 = vadd.f32 %v2661, %v2662
      %v2664 = vsel %vm177, %v2461, 0.0
      %v2665 = vadd.f32 %v2663, %v2664
      %v2666 = vsel %vm177, %v2462, 0.0
      %v2667 = vadd.f32 %v2665, %v2666
      %v2668 = vsel %vm177, %v2463, 0.0
      %v2669 = vadd.f32 %v2667, %v2668
      %v2670 = vrot.slane %v2669, 4
      %v2671 = vadd.f32 %v2669, %v2670
      %v2672 = vrot.slane %v2671, 2
      %v2673 = vadd.f32 %v2671, %v2672
      %v2674 = vrot.slane %v2673, 1
      %v2675 = vadd.f32 %v2673, %v2674
      %v2676 = vsel %vm177, %v2464, 0.0
      %v2677 = vsel %vm177, %v2465, 0.0
      %v2678 = vadd.f32 %v2676, %v2677
      %v2679 = vsel %vm177, %v2466, 0.0
      %v2680 = vadd.f32 %v2678, %v2679
      %v2681 = vsel %vm177, %v2467, 0.0
      %v2682 = vadd.f32 %v2680, %v2681
      %v2683 = vsel %vm177, %v2468, 0.0
      %v2684 = vadd.f32 %v2682, %v2683
      %v2685 = vsel %vm177, %v2469, 0.0
      %v2686 = vadd.f32 %v2684, %v2685
      %v2687 = vsel %vm177, %v2470, 0.0
      %v2688 = vadd.f32 %v2686, %v2687
      %v2689 = vsel %vm177, %v2471, 0.0
      %v2690 = vadd.f32 %v2688, %v2689
      %v2691 = vsel %vm177, %v2472, 0.0
      %v2692 = vadd.f32 %v2690, %v2691
      %v2693 = vsel %vm177, %v2473, 0.0
      %v2694 = vadd.f32 %v2692, %v2693
      %v2695 = vsel %vm177, %v2474, 0.0
      %v2696 = vadd.f32 %v2694, %v2695
      %v2697 = vsel %vm177, %v2475, 0.0
      %v2698 = vadd.f32 %v2696, %v2697
      %v2699 = vsel %vm177, %v2476, 0.0
      %v2700 = vadd.f32 %v2698, %v2699
      %v2701 = vsel %vm177, %v2477, 0.0
      %v2702 = vadd.f32 %v2700, %v2701
      %v2703 = vsel %vm177, %v2478, 0.0
      %v2704 = vadd.f32 %v2702, %v2703
      %v2705 = vsel %vm177, %v2479, 0.0
      %v2706 = vadd.f32 %v2704, %v2705
      %v2707 = vrot.slane %v2706, 4
      %v2708 = vadd.f32 %v2706, %v2707
      %v2709 = vrot.slane %v2708, 2
      %v2710 = vadd.f32 %v2708, %v2709
      %v2711 = vrot.slane %v2710, 1
      %v2712 = vadd.f32 %v2710, %v2711
      %v2713 = vsel %vm177, %v2480, 0.0
      %v2714 = vsel %vm177, %v2481, 0.0
      %v2715 = vadd.f32 %v2713, %v2714
      %v2716 = vsel %vm177, %v2482, 0.0
      %v2717 = vadd.f32 %v2715, %v2716
      %v2718 = vsel %vm177, %v2483, 0.0
      %v2719 = vadd.f32 %v2717, %v2718
      %v2720 = vsel %vm177, %v2484, 0.0
      %v2721 = vadd.f32 %v2719, %v2720
      %v2722 = vsel %vm177, %v2485, 0.0
      %v2723 = vadd.f32 %v2721, %v2722
      %v2724 = vsel %vm177, %v2486, 0.0
      %v2725 = vadd.f32 %v2723, %v2724
      %v2726 = vsel %vm177, %v2487, 0.0
      %v2727 = vadd.f32 %v2725, %v2726
      %v2728 = vsel %vm177, %v2488, 0.0
      %v2729 = vadd.f32 %v2727, %v2728
      %v2730 = vsel %vm177, %v2489, 0.0
      %v2731 = vadd.f32 %v2729, %v2730
      %v2732 = vsel %vm177, %v2490, 0.0
      %v2733 = vadd.f32 %v2731, %v2732
      %v2734 = vsel %vm177, %v2491, 0.0
      %v2735 = vadd.f32 %v2733, %v2734
      %v2736 = vsel %vm177, %v2492, 0.0
      %v2737 = vadd.f32 %v2735, %v2736
      %v2738 = vsel %vm177, %v2493, 0.0
      %v2739 = vadd.f32 %v2737, %v2738
      %v2740 = vsel %vm177, %v2494, 0.0
      %v2741 = vadd.f32 %v2739, %v2740
      %v2742 = vsel %vm177, %v2495, 0.0
      %v2743 = vadd.f32 %v2741, %v2742
      %v2744 = vrot.slane %v2743, 4
      %v2745 = vadd.f32 %v2743, %v2744
      %v2746 = vrot.slane %v2745, 2
      %v2747 = vadd.f32 %v2745, %v2746
      %v2748 = vrot.slane %v2747, 1
      %v2749 = vadd.f32 %v2747, %v2748
      %v2750 = vsel %vm177, %v2496, 0.0
      %v2751 = vsel %vm177, %v2497, 0.0
      %v2752 = vadd.f32 %v2750, %v2751
      %v2753 = vsel %vm177, %v2498, 0.0
      %v2754 = vadd.f32 %v2752, %v2753
      %v2755 = vsel %vm177, %v2499, 0.0
      %v2756 = vadd.f32 %v2754, %v2755
      %v2757 = vsel %vm177, %v2500, 0.0
      %v2758 = vadd.f32 %v2756, %v2757
      %v2759 = vsel %vm177, %v2501, 0.0
      %v2760 = vadd.f32 %v2758, %v2759
      %v2761 = vsel %vm177, %v2502, 0.0
      %v2762 = vadd.f32 %v2760, %v2761
      %v2763 = vsel %vm177, %v2503, 0.0
      %v2764 = vadd.f32 %v2762, %v2763
      %v2765 = vsel %vm177, %v2504, 0.0
      %v2766 = vadd.f32 %v2764, %v2765
      %v2767 = vsel %vm177, %v2505, 0.0
      %v2768 = vadd.f32 %v2766, %v2767
      %v2769 = vsel %vm177, %v2506, 0.0
      %v2770 = vadd.f32 %v2768, %v2769
      %v2771 = vsel %vm177, %v2507, 0.0
      %v2772 = vadd.f32 %v2770, %v2771
      %v2773 = vsel %vm177, %v2508, 0.0
      %v2774 = vadd.f32 %v2772, %v2773
      %v2775 = vsel %vm177, %v2509, 0.0
      %v2776 = vadd.f32 %v2774, %v2775
      %v2777 = vsel %vm177, %v2510, 0.0
      %v2778 = vadd.f32 %v2776, %v2777
      %v2779 = vsel %vm177, %v2511, 0.0
      %v2780 = vadd.f32 %v2778, %v2779
      %v2781 = vrot.slane %v2780, 4
      %v2782 = vadd.f32 %v2780, %v2781
      %v2783 = vrot.slane %v2782, 2
      %v2784 = vadd.f32 %v2782, %v2783
      %v2785 = vrot.slane %v2784, 1
      %v2786 = vadd.f32 %v2784, %v2785
      %v2787 = vsel %vm177, %v2512, 0.0
      %v2788 = vsel %vm177, %v2513, 0.0
      %v2789 = vadd.f32 %v2787, %v2788
      %v2790 = vsel %vm177, %v2514, 0.0
      %v2791 = vadd.f32 %v2789, %v2790
      %v2792 = vsel %vm177, %v2515, 0.0
      %v2793 = vadd.f32 %v2791, %v2792
      %v2794 = vsel %vm177, %v2516, 0.0
      %v2795 = vadd.f32 %v2793, %v2794
      %v2796 = vsel %vm177, %v2517, 0.0
      %v2797 = vadd.f32 %v2795, %v2796
      %v2798 = vsel %vm177, %v2518, 0.0
      %v2799 = vadd.f32 %v2797, %v2798
      %v2800 = vsel %vm177, %v2519, 0.0
      %v2801 = vadd.f32 %v2799, %v2800
      %v2802 = vsel %vm177, %v2520, 0.0
      %v2803 = vadd.f32 %v2801, %v2802
      %v2804 = vsel %vm177, %v2521, 0.0
      %v2805 = vadd.f32 %v2803, %v2804
      %v2806 = vsel %vm177, %v2522, 0.0
      %v2807 = vadd.f32 %v2805, %v2806
      %v2808 = vsel %vm177, %v2523, 0.0
      %v2809 = vadd.f32 %v2807, %v2808
      %v2810 = vsel %vm177, %v2524, 0.0
      %v2811 = vadd.f32 %v2809, %v2810
      %v2812 = vsel %vm177, %v2525, 0.0
      %v2813 = vadd.f32 %v2811, %v2812
      %v2814 = vsel %vm177, %v2526, 0.0
      %v2815 = vadd.f32 %v2813, %v2814
      %v2816 = vsel %vm177, %v2527, 0.0
      %v2817 = vadd.f32 %v2815, %v2816
      %v2818 = vrot.slane %v2817, 4
      %v2819 = vadd.f32 %v2817, %v2818
      %v2820 = vrot.slane %v2819, 2
      %v2821 = vadd.f32 %v2819, %v2820
      %v2822 = vrot.slane %v2821, 1
      %v2823 = vadd.f32 %v2821, %v2822
      %v2824 = vld [vmem:[%s4] sm:$0xff]
      %v2825 = vld [vmem:[%s4 + $0x8] sm:$0xff]
      %v2826 = vld [vmem:[%s4 + $0x10] sm:$0xff]
      %v2827 = vld [vmem:[%s4 + $0x18] sm:$0xff]
      %v2836 = vsel %vm1838, %v2601, %v2564
      %v2837 = vsel %vm1840, %v2638, %v2836
      %v2838 = vsel %vm1842, %v2675, %v2837
      %v2839 = vsel %vm1844, %v2712, %v2838
      %v2840 = vsel %vm1846, %v2749, %v2839
      %v2841 = vsel %vm1848, %v2786, %v2840
      %v2842 = vsel %vm1850, %v2823, %v2841
      %2847 = vrot.lane.b32.xlu0 %v2824, 64
      %v2848 = vpop.permute.xlu0 %2847
      %2849 = vrot.lane.b32.xlu0 %v2825, 64
      %v2850 = vpop.permute.xlu0 %2849
      %2851 = vrot.lane.b32.xlu0 %v2826, 64
      %v2852 = vpop.permute.xlu0 %2851
      %2853 = vrot.lane.b32.xlu0 %v2827, 64
      %v2854 = vpop.permute.xlu0 %2853
      %v2859 = vsel %vm177, %v2842, 0
      %2861 = vmatprep.subr.mxu0 0.0
      %2862 = vmatpush1.msra.mxu0 %v2848
      %2863 = vmatprep.subr.mxu0 0.0
      %2864 = vmatpush1.msra.mxu0 %v2850
      %2865 = vmatprep.subr.mxu0 0.0
      %2866 = vmatpush1.msra.mxu0 %v2852
      %2867 = vmatprep.subr.mxu0 0.0
      %2868 = vmatpush1.msra.mxu0 %v2854
      %2869 = vmatprep.subr.mxu0 0.0
      %2870 = vmatpush1.msra.mxu0 0.0
      %2871 = vmatprep.subr.mxu0 0.0
      %2872 = vmatpush1.msra.mxu0 0.0
      %2873 = vmatprep.subr.mxu0 0.0
      %2874 = vmatpush1.msra.mxu0 0.0
      %2875 = vmatprep.subr.mxu0 0.0
      %2876 = vmatpush1.msra.mxu0 0.0
      %2877 = vmatprep.subr.mxu0 0.0
      %2878 = vmatpush1.msra.mxu0 0.0
      %2879 = vmatprep.subr.mxu0 0.0
      %2880 = vmatpush1.msra.mxu0 0.0
      %2881 = vmatprep.subr.mxu0 0.0
      %2882 = vmatpush1.msra.mxu0 0.0
      %2883 = vmatprep.subr.mxu0 0.0
      %2884 = vmatpush1.msra.mxu0 0.0
      %2885 = vmatprep.subr.mxu0 0.0
      %2886 = vmatpush1.msra.mxu0 0.0
      %2887 = vmatprep.subr.mxu0 0.0
      %2888 = vmatpush1.msra.mxu0 0.0
      %2889 = vmatprep.subr.mxu0 0.0
      %2890 = vmatpush1.msra.mxu0 0.0
      %2891 = vmatprep.subr.mxu0 0.0
      %2892 = vmatpush1.msra.mxu0 0.0
      %2893 = vmatprep.subr.mxu0 0.0
      %2894 = vmatpush1.msra.mxu0 0.0
      %2895 = vmatprep.subr.mxu0 0.0
      %2896 = vmatpush1.msra.mxu0 0.0
      %2897 = vmatprep.subr.mxu0 0.0
      %2898 = vmatpush1.msra.mxu0 0.0
      %2899 = vmatprep.subr.mxu0 0.0
      %2900 = vmatpush1.msra.mxu0 0.0
      %2901 = vmatprep.subr.mxu0 0.0
      %2902 = vmatpush1.msra.mxu0 0.0
      %2903 = vmatprep.subr.mxu0 0.0
      %2904 = vmatpush1.msra.mxu0 0.0
      %2905 = vmatprep.subr.mxu0 0.0
      %2906 = vmatpush1.msra.mxu0 0.0
      %2907 = vmatprep.subr.mxu0 0.0
      %2908 = vmatpush1.msra.mxu0 0.0
      %2909 = vmatprep.subr.mxu0 0.0
      %2910 = vmatpush1.msra.mxu0 0.0
      %2911 = vmatprep.subr.mxu0 0.0
      %2912 = vmatpush1.msra.mxu0 0.0
      %2913 = vmatprep.subr.mxu0 0.0
      %2914 = vmatpush1.msra.mxu0 0.0
      %2915 = vmatprep.subr.mxu0 0.0
      %2916 = vmatpush1.msra.mxu0 0.0
      %2917 = vmatprep.subr.mxu0 0.0
      %2918 = vmatpush1.msra.mxu0 0.0
      %2919 = vmatprep.subr.mxu0 0.0
      %2920 = vmatpush1.msra.mxu0 0.0
      %2921 = vmatprep.subr.mxu0 0.0
      %2922 = vmatpush1.msra.mxu0 0.0
      %2923 = vmatprep.subr.mxu0 0.0
      %2924 = vmatpush1.msra.mxu0 0.0
      %2925 = vmatprep.mubr.f32.mxu0 0.0
      %2926 = vmatmul.mubr.f32.gmra.mrb[0].mxu0 %v2859
      %v2927 = vpop.f32.mrb[0].mxu0
      %v2928 = vadd.f32 0.0, %v2927
      %v2929 = vpop.f32.mrb[0].mxu0
      %2930 = vdwg.mxu0
      %2932 = vrot.lane.b32.xlu0 %v2928, 32
      %v2933 = vpop.permute.xlu0 %2932
      %v2935 = vadd.f32 %v440, %v2933
      %v2936 = vld [vmem:[%s5 + $0x2] sm:$0x1]
      %v2937 = vlaneseq
      %v2938 = vshrl.u32 %v2937, 7
      %v2939 = vsub.s32 0, %v2938
      %v2940 = vrot.slane %v2936, %v2939
      %2942 = vrot.lane.b32.xlu0 %v2940, 32
      %v2943 = vpop.permute.xlu0 %2942
      %v2945 = vadd.f32 %v2935, %v2943
      %v2946 = vtanh.pop %v2945
      %2948 = vrot.lane.b32.xlu0 %v2946, 96
      %v2949 = vpop.permute.xlu0 %2948
      %2951 = vst.msk [vmem:[#allocation2] sm:$0xff] %vm177, %v2949
      %vm2952 = vcmask 7168
      %2953 = vst.msk [vmem:[#allocation3] sm:$0xff] %vm2952, -inf
      %2954 = vst.msk [vmem:[#allocation4] sm:$0xff] %vm2952, 0.0
    $region37: #{tpu_custom_call.1} parent=1 // pred_fallthru
      _
    %v2955 = vld [vmem:[%s6] sm:$0xff]
    %v2956 = vld [vmem:[%s6 + $0x8] sm:$0xff]
    %v2957 = vld [vmem:[%s6 + $0x10] sm:$0xff]
    %v2958 = vld [vmem:[%s6 + $0x18] sm:$0xff]
    %v2959 = vld [vmem:[#allocation2] sm:$0xff]
    %v2960 = vld [vmem:[%s7] sm:$0x1]
    %v2962 = vlaneseq
    %v2963 = vshrl.u32 %v2962, 7
    %v2964 = vsub.s32 0, %v2963
    %v2965 = vrot.slane %v2960, %v2964
    %vm2967 = vcmask 261120
    %v2969 = vsel %vm2967, %v2959, 0
    %2971 = vmatprep.subr.mxu0 0.0
    %2972 = vmatpush1.msra.mxu0 %v2955
    %2973 = vmatprep.subr.mxu0 0.0
    %2974 = vmatpush1.msra.mxu0 %v2956
    %2975 = vmatprep.subr.mxu0 0.0
    %2976 = vmatpush1.msra.mxu0 %v2957
    %2977 = vmatprep.subr.mxu0 0.0
    %2978 = vmatpush1.msra.mxu0 %v2958
    %2979 = vmatprep.subr.mxu0 0.0
    %2980 = vmatpush1.msra.mxu0 0.0
    %2981 = vmatprep.subr.mxu0 0.0
    %2982 = vmatpush1.msra.mxu0 0.0
    %2983 = vmatprep.subr.mxu0 0.0
    %2984 = vmatpush1.msra.mxu0 0.0
    %2985 = vmatprep.subr.mxu0 0.0
    %2986 = vmatpush1.msra.mxu0 0.0
    %2987 = vmatprep.subr.mxu0 0.0
    %2988 = vmatpush1.msra.mxu0 0.0
    %2989 = vmatprep.subr.mxu0 0.0
    %2990 = vmatpush1.msra.mxu0 0.0
    %2991 = vmatprep.subr.mxu0 0.0
    %2992 = vmatpush1.msra.mxu0 0.0
    %2993 = vmatprep.subr.mxu0 0.0
    %2994 = vmatpush1.msra.mxu0 0.0
    %2995 = vmatprep.subr.mxu0 0.0
    %2996 = vmatpush1.msra.mxu0 0.0
    %2997 = vmatprep.subr.mxu0 0.0
    %2998 = vmatpush1.msra.mxu0 0.0
    %2999 = vmatprep.subr.mxu0 0.0
    %3000 = vmatpush1.msra.mxu0 0.0
    %3001 = vmatprep.subr.mxu0 0.0
    %3002 = vmatpush1.msra.mxu0 0.0
    %3003 = vmatprep.subr.mxu0 0.0
    %3004 = vmatpush1.msra.mxu0 0.0
    %3005 = vmatprep.subr.mxu0 0.0
    %3006 = vmatpush1.msra.mxu0 0.0
    %3007 = vmatprep.subr.mxu0 0.0
    %3008 = vmatpush1.msra.mxu0 0.0
    %3009 = vmatprep.subr.mxu0 0.0
    %3010 = vmatpush1.msra.mxu0 0.0
    %3011 = vmatprep.subr.mxu0 0.0
    %3012 = vmatpush1.msra.mxu0 0.0
    %3013 = vmatprep.subr.mxu0 0.0
    %3014 = vmatpush1.msra.mxu0 0.0
    %3015 = vmatprep.subr.mxu0 0.0
    %3016 = vmatpush1.msra.mxu0 0.0
    %3017 = vmatprep.subr.mxu0 0.0
    %3018 = vmatpush1.msra.mxu0 0.0
    %3019 = vmatprep.subr.mxu0 0.0
    %3020 = vmatpush1.msra.mxu0 0.0
    %3021 = vmatprep.subr.mxu0 0.0
    %3022 = vmatpush1.msra.mxu0 0.0
    %3023 = vmatprep.subr.mxu0 0.0
    %3024 = vmatpush1.msra.mxu0 0.0
    %3025 = vmatprep.subr.mxu0 0.0
    %3026 = vmatpush1.msra.mxu0 0.0
    %3027 = vmatprep.subr.mxu0 0.0
    %3028 = vmatpush1.msra.mxu0 0.0
    %3029 = vmatprep.subr.mxu0 0.0
    %3030 = vmatpush1.msra.mxu0 0.0
    %3031 = vmatprep.subr.mxu0 0.0
    %3032 = vmatpush1.msra.mxu0 0.0
    %3033 = vmatprep.subr.mxu0 0.0
    %3034 = vmatpush1.msra.mxu0 0.0
    %3035 = vmatprep.mubr.f32.mxu0 0.0
    %3036 = vmatmul.mubr.f32.gmra.mrb[0].mxu0 %v2969
    %v3037 = vpop.f32.mrb[0].mxu0
    %v3038 = vadd.f32 %v2965, %v3037
    %v3039 = vpop.f32.mrb[0].mxu0
    %3040 = vdwg.mxu0
    %s3041 = smul.u32 0, 128
    %s3042 = sshra.s32 %s3041, 7
    %s3043 = sand.u32 %s3041, 127
    %s3044 = scalar_lea.vmem [#allocation5], %s3042
    %3045 = vst [vmem:[%s3044] sm:$0xff] %v3038
    %3046 = vmax.xlane.f32.xlu0 %v3038
    %v3047 = vpop.xlane.xlu0 %3046
    %v3048 = vld [vmem:[#allocation3] sm:$0xff]
    %v3049 = vmax.f32 %v3048, %v3047
    %v3050 = vld [vmem:[#allocation4] sm:$0xff]
    %v3051 = vsub.f32 %v3048, %v3049
    %v3052 = vmul.f32 %v3051, 1.442695
    %v3053 = vpow.pop %v3052
    %v3054 = vmul.f32 %v3050, %v3053
    %3056 = vset.pattern.permute.xlu0 0
    %3057 = vperm.xlu0 %3056, %v3049
    %v3058 = vpop.permute.xlu0 %3057
    %v3060 = vsub.f32 %v3038, %v3058
    %v3061 = vmul.f32 %v3060, 1.442695
    %v3062 = vpow.pop %v3061
    %3063 = vadd.xlane.f32.xlu0 %v3062
    %v3064 = vpop.xlane.xlu0 %3063
    %v3065 = vadd.f32 %v3054, %v3064
    %vm3066 = vcmask 7168
    %3067 = vst.msk [vmem:[#allocation4] sm:$0xff] %vm3066, %v3065
    %3068 = vst.msk [vmem:[#allocation3] sm:$0xff] %vm3066, %v3049
    // Predicated region
    $region38: #{tpu_custom_call.1} parent=1 // pred_check
      %p3069 = pneg %p34
    $region39: #{tpu_custom_call.1} parent=1 // pred_check_branch
      %3071 = sbr.rel (%p3069) target = $region41
    $region40: #{tpu_custom_call.1} parent=1 // pred_region
      %v3072 = vld [vmem:[#allocation3] sm:$0xff]
      %v3073 = vld [vmem:[#allocation4] sm:$0xff]
      %v3074 = vlog2.pop %v3073
      %v3075 = vmul.f32 %v3074, 0.6931472
      %v3076 = vadd.f32 %v3072, %v3075
      %v3077 = vld [vmem:[#allocation5] sm:$0xff]
      %3079 = vset.pattern.permute.xlu0 0
      %3080 = vperm.xlu0 %3079, %v3076
      %v3081 = vpop.permute.xlu0 %3080
      %v3083 = vsub.f32 %v3077, %v3081
      %3084 = vst [vmem:[#allocation5] sm:$0xff] %v3083
    $region41: #{tpu_custom_call.1} parent=1 // pred_fallthru
      _
    // Predicated region
    $region42: #{tpu_custom_call.1} parent=1 // pred_check
      _
    $region43: #{tpu_custom_call.1} parent=1 // pred_check_branch
      %3086 = sbr.rel (0) target = $region45
    $region44: #{tpu_custom_call.1} parent=1 // pred_region
      %s3088 = ssub.s32 128, 128
      %3089 = vsyncadd [#allocation6], %s3088
      %s3091 = sshll.u32 [#allocation5], 4
      %s3092 = int_to_ptr.vmem [resolvable:$true] %s3091
      %3094 = dma.vmem_to_hbm [thread:$0]  %s3092, 128, %s8, [#allocation6]
    $region45: #{tpu_custom_call.1} parent=1 // pred_fallthru
      _
    // Predicated region
    $region46: #{tpu_custom_call.1} parent=1 // pred_check
      _
    $region47: #{tpu_custom_call.1} parent=1 // pred_check_branch
      %3096 = sbr.rel (0) target = $region49
    $region48: #{tpu_custom_call.1} parent=1 // pred_region
      %s3098 = ssub.s32 128, 128
      %3099 = vsyncadd [#allocation8], %s3098
      %s3101 = sshll.u32 [#allocation7], 4
      %s3102 = int_to_ptr.vmem [resolvable:$true] %s3101
      %3104 = dma.vmem_to_hbm [thread:$0]  %s3102, 128, %s9, [#allocation8]
    $region49: #{tpu_custom_call.1} parent=1 // pred_fallthru
      _
    // Predicated region
    $region50: #{tpu_custom_call.1} parent=1 // pred_check
      _
    $region51: #{tpu_custom_call.1} parent=1 // pred_check_branch
      %3106 = sbr.rel (0) target = $region53
    $region52: #{tpu_custom_call.1} parent=1 // pred_region
      %s3108 = ssub.s32 128, 128
      %3109 = vsyncadd [#allocation8], %s3108
      %s3111 = sshll.u32 [#allocation9], 4
      %s3112 = int_to_ptr.vmem [resolvable:$true] %s3111
      %3114 = dma.vmem_to_hbm [thread:$0]  %s3112, 128, %s10, [#allocation8]
    $region53: #{tpu_custom_call.1} parent=1 // pred_fallthru
      _
    // Predicated region
    $region54: #{tpu_custom_call.1} parent=1 // pred_check
      _
    $region55: #{tpu_custom_call.1} parent=1 // pred_check_branch
      %3116 = sbr.rel (0) target = $region57
    $region56: #{tpu_custom_call.1} parent=1 // pred_region
      %3117 = dma.done [#allocation6], 128
    $region57: #{tpu_custom_call.1} parent=1 // pred_fallthru
      _
    // Predicated region
    $region58: #{tpu_custom_call.1} parent=1 // pred_check
      _
    $region59: #{tpu_custom_call.1} parent=1 // pred_check_branch
      %3119 = sbr.rel (0) target = $region61
    $region60: #{tpu_custom_call.1} parent=1 // pred_region
      %3120 = dma.done [#allocation8], 128
    $region61: #{tpu_custom_call.1} parent=1 // pred_fallthru
      _
    // Predicated region
    $region62: #{tpu_custom_call.1} parent=1 // pred_check
      _
    $region63: #{tpu_custom_call.1} parent=1 // pred_check_branch
      %3122 = sbr.rel (0) target = $region65
    $region64: #{tpu_custom_call.1} parent=1 // pred_region
      %3123 = dma.done [#allocation8], 128
    $region65: #{tpu_custom_call.1} parent=1 // pred_fallthru
      _
    %3124 = vsyncpa [#allocation6], 1
    %3125 = vsyncpa [#allocation8], 1

</llo_original>
